<compile_context>
chip_gen: v6e
topology: v6e:2x2x1
jax: 0.10.0
libtpu: 0.0.40
codegen_flags: <defaults>
</compile_context>

<pallas_src>
import math
import functools

import jax
import jax.numpy as jnp
from jax.experimental import pallas as pl
from jax.experimental.pallas import tpu as pltpu


# ----------------------------- configuration --------------------------------
D_EMBED = 32
N_HEADS = 4
D_HEAD = D_EMBED // N_HEADS
D_FF = 4 * D_EMBED
LN_EPS = 1e-5


def _layernorm(h, gamma, beta, eps=LN_EPS):
    mu = jnp.mean(h, axis=-1, keepdims=True)
    var = jnp.mean((h - mu) ** 2, axis=-1, keepdims=True)
    return (h - mu) * jax.lax.rsqrt(var + eps) * gamma + beta


# ------------------------------- the kernel ---------------------------------
def transformer_block_kernel(
    x_ref,
    g1_ref, b1_ref,                         # attn_norm weight/bias   (1, D)
    wqh_ref, bqh_ref,                       # per-head Wq (H, D, Dh), bq (H,1,Dh)
    wkh_ref, bkh_ref,
    wvh_ref, bvh_ref,
    woh_ref, bo_ref,                        # per-head Wo (H, Dh, D), bo (1, D)
    g2_ref, b2_ref,                         # ff_norm weight/bias     (1, D)
    w1_ref, c1_ref, w2_ref, c2_ref,         # FF linears
    o_ref,
    *, batch_tile,
):
    f32 = jnp.float32
    bf16 = jnp.bfloat16
    TB, H = batch_tile, N_HEADS
    scale = 1.0 / math.sqrt(D_HEAD)

    x = x_ref[...].astype(f32)              # (TB, S, D) residual stream, f32
    g1, b1 = g1_ref[...], b1_ref[...]
    g2, b2 = g2_ref[...], b2_ref[...]

    # ---------------- x = x + Attention(LayerNorm(x)) ----------------
    # Per-(batch, head) Q/K/V projections with head-pre-split weights: no lane
    # slicing of activations, contraction over the full d_embed.  Results are
    # stacked on a leading (batch*head) axis so scores / softmax / context run
    # as single batched ops.
    q_l, k_l, v_l = [], [], []
    for b in range(TB):                     # static, fully unrolled (TB small)
        hb = _layernorm(x[b], g1, b1).astype(bf16)            # (S, D) bf16
        for hd in range(H):
            q_l.append(jnp.dot(hb, wqh_ref[hd].astype(bf16),
                               preferred_element_type=f32) + bqh_ref[hd])
            k_l.append(jnp.dot(hb, wkh_ref[hd].astype(bf16),
                               preferred_element_type=f32) + bkh_ref[hd])
            v_l.append(jnp.dot(hb, wvh_ref[hd].astype(bf16),
                               preferred_element_type=f32) + bvh_ref[hd])
    q = jnp.stack(q_l)                      # (TB*H, S, Dh)
    k = jnp.stack(k_l)
    v = jnp.stack(v_l)

    s = jnp.einsum("bqd,bkd->bqk", q.astype(bf16), k.astype(bf16),
                   preferred_element_type=f32) * scale        # (TB*H, S, S)
    # TODO(synk): no causal / padding mask (matches the assumed Attention).
    m = jnp.max(s, axis=-1, keepdims=True)
    e = jnp.exp(s - m)
    p = e * pl.reciprocal(jnp.sum(e, axis=-1, keepdims=True), approx=True)
    ctx = jnp.einsum("bqk,bkd->bqd", p.astype(bf16), v.astype(bf16),
                     preferred_element_type=f32)              # (TB*H, S, Dh)

    out_rows = []
    for b in range(TB):
        # Output projection: accumulate per-head (S,Dh)@(Dh,D) contributions
        # (equivalent to concat-over-heads followed by one (S,D)@(D,D)).
        attn_b = bo_ref[...].astype(f32)                      # (1, D) -> bcast
        for hd in range(H):
            attn_b = attn_b + jnp.dot(ctx[b * H + hd].astype(bf16),
                                      woh_ref[hd].astype(bf16),
                                      preferred_element_type=f32)
        xb = x[b] + attn_b                                    # (S, D) f32

        # ---------------- x = x + FeedForward(LayerNorm(x)) ----------------
        h2 = _layernorm(xb, g2, b2)
        ff = jnp.dot(h2.astype(bf16), w1_ref[...].astype(bf16),
                     preferred_element_type=f32) + c1_ref[...]
        # TODO(synk): tanh-approx GELU; PyTorch nn.GELU default is exact erf.
        ff = jax.nn.gelu(ff)
        ff = jnp.dot(ff.astype(bf16), w2_ref[...].astype(bf16),
                     preferred_element_type=f32) + c2_ref[...]
        out_rows.append(xb + ff)

    o_ref[...] = jnp.stack(out_rows).astype(o_ref.dtype)      # (TB, S, D)


# ------------------------------- the wrapper ---------------------------------
def transformer_block(x, params, *, batch_tile=None):
    B, S, D = x.shape
    assert D == D_EMBED
    TB = B if batch_tile is None else batch_tile
    assert B % TB == 0

    H, Dh = N_HEADS, D_HEAD

    # ---- wrapper-side (free) param re-layouts for the kernel ----
    def split_w_in(w):          # (D, D) -> (H, D, Dh): per-head out-columns
        return w.reshape(D, H, Dh).transpose(1, 0, 2)

    def split_b(b):             # (D,) -> (H, 1, Dh)
        return b.reshape(H, 1, Dh)

    def row(v):                 # (n,) -> (1, n): 2-D lane vector
        return v.reshape(1, -1)

    kernel_params = [
        row(params["g1"]), row(params["b1"]),
        split_w_in(params["wq"]), split_b(params["bq"]),
        split_w_in(params["wk"]), split_b(params["bk"]),
        split_w_in(params["wv"]), split_b(params["bv"]),
        params["wo"].reshape(H, Dh, D), row(params["bo"]),
        row(params["g2"]), row(params["b2"]),
        params["w1"], row(params["c1"]),
        params["w2"], row(params["c2"]),
    ]

    # Whole-array, constant-index blocks: weights stay resident in VMEM
    # (grid has a single step for the test shapes anyway).
    def const_spec(shape):
        n = len(shape)
        return pl.BlockSpec(shape, lambda i, _n=n: (0,) * _n)

    in_specs = [pl.BlockSpec((TB, S, D), lambda i: (i, 0, 0))]
    in_specs += [const_spec(p.shape) for p in kernel_params]

    flops = 2 * B * S * (4 * D * D + 2 * S * D + 2 * D * D_FF)
    transcendentals = B * S * (H * S + D_FF)
    bytes_accessed = (2 * x.size * x.dtype.itemsize
                      + sum(int(p.size) * p.dtype.itemsize for p in kernel_params))

    kernel = functools.partial(transformer_block_kernel, batch_tile=TB)

    return pl.pallas_call(
        kernel,
        out_shape=jax.ShapeDtypeStruct((B, S, D), x.dtype),
        grid_spec=pltpu.PrefetchScalarGridSpec(
            num_scalar_prefetch=0,
            grid=(B // TB,),
            in_specs=in_specs,
            out_specs=pl.BlockSpec((TB, S, D), lambda i: (i, 0, 0)),
        ),
        compiler_params=pltpu.CompilerParams(
            dimension_semantics=("parallel",),
        ),
        cost_estimate=pl.CostEstimate(
            flops=flops,
            transcendentals=transcendentals,
            bytes_accessed=bytes_accessed,
        ),
    )(x, *kernel_params)


# --------------------------- deterministic params ----------------------------
def init_params(key):
    ks = jax.random.split(key, 8)
    scale = 0.05

    def lin(k, d_in, d_out):
        return scale * jax.random.normal(k, (d_in, d_out), jnp.float32)

    return {
        "g1": jnp.ones((D_EMBED,), jnp.float32),
        "b1": jnp.zeros((D_EMBED,), jnp.float32),
        "wq": lin(ks[0], D_EMBED, D_EMBED), "bq": jnp.zeros((D_EMBED,), jnp.float32),
        "wk": lin(ks[1], D_EMBED, D_EMBED), "bk": jnp.zeros((D_EMBED,), jnp.float32),
        "wv": lin(ks[2], D_EMBED, D_EMBED), "bv": jnp.zeros((D_EMBED,), jnp.float32),
        "wo": lin(ks[3], D_EMBED, D_EMBED), "bo": jnp.zeros((D_EMBED,), jnp.float32),
        "g2": jnp.ones((D_EMBED,), jnp.float32),
        "b2": jnp.zeros((D_EMBED,), jnp.float32),
        "w1": lin(ks[4], D_EMBED, D_FF), "c1": jnp.zeros((D_FF,), jnp.float32),
        "w2": lin(ks[5], D_FF, D_EMBED), "c2": jnp.zeros((D_EMBED,), jnp.float32),
    }


# ------------------------------ pure-JAX reference ---------------------------
def reference_block(x, p):
    def ln(h, g, b):
        mu = jnp.mean(h, axis=-1, keepdims=True)
        var = jnp.mean((h - mu) ** 2, axis=-1, keepdims=True)
        return (h - mu) * jax.lax.rsqrt(var + LN_EPS) * g + b

    B, S, D = x.shape
    h = ln(x, p["g1"], p["b1"])
    q = h @ p["wq"] + p["bq"]
    k = h @ p["wk"] + p["bk"]
    v = h @ p["wv"] + p["bv"]
    q = q.reshape(B, S, N_HEADS, D_HEAD).transpose(0, 2, 1, 3)
    k = k.reshape(B, S, N_HEADS, D_HEAD).transpose(0, 2, 1, 3)
    v = v.reshape(B, S, N_HEADS, D_HEAD).transpose(0, 2, 1, 3)
    scores = jnp.einsum("bhqd,bhkd->bhqk", q, k) / math.sqrt(D_HEAD)
    probs = jax.nn.softmax(scores, axis=-1)
    attn = jnp.einsum("bhqk,bhkd->bhqd", probs, v)
    attn = attn.transpose(0, 2, 1, 3).reshape(B, S, D)
    attn = attn @ p["wo"] + p["bo"]
    x = x + attn

    h2 = ln(x, p["g2"], p["b2"])
    ff = jax.nn.gelu(h2 @ p["w1"] + p["c1"]) @ p["w2"] + p["c2"]
    return x + ff


# ----------------------------------- main ------------------------------------
if __name__ == "__main__":
    key = jax.random.PRNGKey(0)
    kx, kp = jax.random.split(key)

    B, S = 2, 8
    x = jax.random.normal(kx, (B, S, D_EMBED), jnp.float32)
    params = init_params(kp)

    out = jax.block_until_ready(transformer_block(x, params))
    ref = reference_block(x, params)

    assert out.shape == (B, S, D_EMBED)
    # Kernel uses bf16 matmul operands (f32 accumulation), reference is f32.
    max_err = float(jnp.max(jnp.abs(out - ref)))
    assert jnp.allclose(out, ref, rtol=2e-2, atol=2e-2), (
        f"mismatch vs reference, max abs err {max_err}")

    print("KERNEL_OK")
</pallas_src>

<mosaic_0001>
module attributes {stable_mosaic.version = 11 : i64} {
  func.func @transformer_block_kernel(%arg0: i32, %arg1: memref<2x8x32xf32, #tpu.memory_space<vmem>>, %arg2: memref<1x32xf32, #tpu.memory_space<vmem>>, %arg3: memref<1x32xf32, #tpu.memory_space<vmem>>, %arg4: memref<4x32x8xf32, #tpu.memory_space<vmem>>, %arg5: memref<4x1x8xf32, #tpu.memory_space<vmem>>, %arg6: memref<4x32x8xf32, #tpu.memory_space<vmem>>, %arg7: memref<4x1x8xf32, #tpu.memory_space<vmem>>, %arg8: memref<4x32x8xf32, #tpu.memory_space<vmem>>, %arg9: memref<4x1x8xf32, #tpu.memory_space<vmem>>, %arg10: memref<4x8x32xf32, #tpu.memory_space<vmem>>, %arg11: memref<1x32xf32, #tpu.memory_space<vmem>>, %arg12: memref<1x32xf32, #tpu.memory_space<vmem>>, %arg13: memref<1x32xf32, #tpu.memory_space<vmem>>, %arg14: memref<32x128xf32, #tpu.memory_space<vmem>>, %arg15: memref<1x128xf32, #tpu.memory_space<vmem>>, %arg16: memref<128x32xf32, #tpu.memory_space<vmem>>, %arg17: memref<1x32xf32, #tpu.memory_space<vmem>>, %arg18: memref<2x8x32xf32, #tpu.memory_space<vmem>>) attributes {dimension_semantics = [#tpu.dimension_semantics<parallel>], iteration_bounds = array<i64: 1>, scalar_prefetch = 0 : i64, scratch_operands = 0 : i64, tpu.core_type = #tpu.core_type<tc>, window_params = [{transform_indices = @transform_0, window_bounds = array<i64: 2, 8, 32>}, {pipeline_mode = #tpu.pipeline_mode<synchronous>, transform_indices = @transform_1, window_bounds = array<i64: 1, 32>}, {pipeline_mode = #tpu.pipeline_mode<synchronous>, transform_indices = @transform_2, window_bounds = array<i64: 1, 32>}, {pipeline_mode = #tpu.pipeline_mode<synchronous>, transform_indices = @transform_3, window_bounds = array<i64: 4, 32, 8>}, {pipeline_mode = #tpu.pipeline_mode<synchronous>, transform_indices = @transform_4, window_bounds = array<i64: 4, 1, 8>}, {pipeline_mode = #tpu.pipeline_mode<synchronous>, transform_indices = @transform_5, window_bounds = array<i64: 4, 32, 8>}, {pipeline_mode = #tpu.pipeline_mode<synchronous>, transform_indices = @transform_6, window_bounds = array<i64: 4, 1, 8>}, {pipeline_mode = #tpu.pipeline_mode<synchronous>, transform_indices = @transform_7, window_bounds = array<i64: 4, 32, 8>}, {pipeline_mode = #tpu.pipeline_mode<synchronous>, transform_indices = @transform_8, window_bounds = array<i64: 4, 1, 8>}, {pipeline_mode = #tpu.pipeline_mode<synchronous>, transform_indices = @transform_9, window_bounds = array<i64: 4, 8, 32>}, {pipeline_mode = #tpu.pipeline_mode<synchronous>, transform_indices = @transform_10, window_bounds = array<i64: 1, 32>}, {pipeline_mode = #tpu.pipeline_mode<synchronous>, transform_indices = @transform_11, window_bounds = array<i64: 1, 32>}, {pipeline_mode = #tpu.pipeline_mode<synchronous>, transform_indices = @transform_12, window_bounds = array<i64: 1, 32>}, {pipeline_mode = #tpu.pipeline_mode<synchronous>, transform_indices = @transform_13, window_bounds = array<i64: 32, 128>}, {pipeline_mode = #tpu.pipeline_mode<synchronous>, transform_indices = @transform_14, window_bounds = array<i64: 1, 128>}, {pipeline_mode = #tpu.pipeline_mode<synchronous>, transform_indices = @transform_15, window_bounds = array<i64: 128, 32>}, {pipeline_mode = #tpu.pipeline_mode<synchronous>, transform_indices = @transform_16, window_bounds = array<i64: 1, 32>}, {transform_indices = @transform_17, window_bounds = array<i64: 2, 8, 32>}]} {
    %c0 = arith.constant 0 : index
    %c0_0 = arith.constant 0 : index
    %c0_1 = arith.constant 0 : index
    %0 = vector.load %arg1[%c0, %c0_0, %c0_1] : memref<2x8x32xf32, #tpu.memory_space<vmem>>, vector<2x8x32xf32>
    %c0_2 = arith.constant 0 : index
    %c0_3 = arith.constant 0 : index
    %1 = vector.load %arg2[%c0_2, %c0_3] : memref<1x32xf32, #tpu.memory_space<vmem>>, vector<1x32xf32>
    %c0_4 = arith.constant 0 : index
    %c0_5 = arith.constant 0 : index
    %2 = vector.load %arg3[%c0_4, %c0_5] : memref<1x32xf32, #tpu.memory_space<vmem>>, vector<1x32xf32>
    %c0_6 = arith.constant 0 : index
    %c0_7 = arith.constant 0 : index
    %3 = vector.load %arg12[%c0_6, %c0_7] : memref<1x32xf32, #tpu.memory_space<vmem>>, vector<1x32xf32>
    %c0_8 = arith.constant 0 : index
    %c0_9 = arith.constant 0 : index
    %4 = vector.load %arg13[%c0_8, %c0_9] : memref<1x32xf32, #tpu.memory_space<vmem>>, vector<1x32xf32>
    %5 = vector.extract_strided_slice %0 {offsets = [0, 0, 0], sizes = [1, 8, 32], strides = [1, 1, 1]} : vector<2x8x32xf32> to vector<1x8x32xf32>
    %6 = vector.shape_cast %5 : vector<1x8x32xf32> to vector<8x32xf32>
    %cst = arith.constant dense<0.000000e+00> : vector<8xf32>
    %7 = vector.multi_reduction <add>, %6, %cst [1] : vector<8x32xf32> to vector<8xf32>
    %8 = vector.shape_cast %7 : vector<8xf32> to vector<8x1xf32>
    %cst_10 = arith.constant 3.200000e+01 : f32
    %9 = vector.broadcast %cst_10 : f32 to vector<8x1xf32>
    %10 = arith.divf %8, %9 : vector<8x1xf32>
    %11 = vector.broadcast %10 : vector<8x1xf32> to vector<8x32xf32>
    %12 = arith.subf %6, %11 : vector<8x32xf32>
    %13 = arith.mulf %12, %12 : vector<8x32xf32>
    %cst_11 = arith.constant dense<0.000000e+00> : vector<8xf32>
    %14 = vector.multi_reduction <add>, %13, %cst_11 [1] : vector<8x32xf32> to vector<8xf32>
    %15 = vector.shape_cast %14 : vector<8xf32> to vector<8x1xf32>
    %cst_12 = arith.constant 3.200000e+01 : f32
    %16 = vector.broadcast %cst_12 : f32 to vector<8x1xf32>
    %17 = arith.divf %15, %16 : vector<8x1xf32>
    %18 = vector.broadcast %10 : vector<8x1xf32> to vector<8x32xf32>
    %19 = arith.subf %6, %18 : vector<8x32xf32>
    %cst_13 = arith.constant 9.99999974E-6 : f32
    %20 = vector.broadcast %cst_13 : f32 to vector<8x1xf32>
    %21 = arith.addf %17, %20 : vector<8x1xf32>
    %22 = math.rsqrt %21 : vector<8x1xf32>
    %23 = vector.broadcast %22 : vector<8x1xf32> to vector<8x32xf32>
    %24 = arith.mulf %19, %23 : vector<8x32xf32>
    %25 = vector.broadcast %1 : vector<1x32xf32> to vector<8x32xf32>
    %26 = arith.mulf %24, %25 : vector<8x32xf32>
    %27 = vector.broadcast %2 : vector<1x32xf32> to vector<8x32xf32>
    %28 = arith.addf %26, %27 : vector<8x32xf32>
    %29 = arith.truncf %28 : vector<8x32xf32> to vector<8x32xbf16>
    %c0_14 = arith.constant 0 : index
    %c0_15 = arith.constant 0 : index
    %c0_16 = arith.constant 0 : index
    %30 = vector.load %arg4[%c0_14, %c0_15, %c0_16] : memref<4x32x8xf32, #tpu.memory_space<vmem>>, vector<1x32x8xf32>
    %31 = vector.shape_cast %30 : vector<1x32x8xf32> to vector<32x8xf32>
    %32 = arith.truncf %31 : vector<32x8xf32> to vector<32x8xbf16>
    %cst_17 = arith.constant dense<0.000000e+00> : vector<8x8xf32>
    %33 = tpu.matmul %29, %32, %cst_17 {dimension_numbers = #tpu.dot_dimension_numbers<[1], [0], [0], [1], [0, 0, 1, 1], [], []>} : vector<8x32xbf16>, vector<32x8xbf16>, vector<8x8xf32> -> vector<8x8xf32>
    %c0_18 = arith.constant 0 : index
    %c0_19 = arith.constant 0 : index
    %c0_20 = arith.constant 0 : index
    %34 = vector.load %arg5[%c0_18, %c0_19, %c0_20] : memref<4x1x8xf32, #tpu.memory_space<vmem>>, vector<1x1x8xf32>
    %35 = vector.shape_cast %34 : vector<1x1x8xf32> to vector<1x8xf32>
    %36 = vector.broadcast %35 : vector<1x8xf32> to vector<8x8xf32>
    %37 = arith.addf %33, %36 : vector<8x8xf32>
    %c0_21 = arith.constant 0 : index
    %c0_22 = arith.constant 0 : index
    %c0_23 = arith.constant 0 : index
    %38 = vector.load %arg6[%c0_21, %c0_22, %c0_23] : memref<4x32x8xf32, #tpu.memory_space<vmem>>, vector<1x32x8xf32>
    %39 = vector.shape_cast %38 : vector<1x32x8xf32> to vector<32x8xf32>
    %40 = arith.truncf %39 : vector<32x8xf32> to vector<32x8xbf16>
    %cst_24 = arith.constant dense<0.000000e+00> : vector<8x8xf32>
    %41 = tpu.matmul %29, %40, %cst_24 {dimension_numbers = #tpu.dot_dimension_numbers<[1], [0], [0], [1], [0, 0, 1, 1], [], []>} : vector<8x32xbf16>, vector<32x8xbf16>, vector<8x8xf32> -> vector<8x8xf32>
    %c0_25 = arith.constant 0 : index
    %c0_26 = arith.constant 0 : index
    %c0_27 = arith.constant 0 : index
    %42 = vector.load %arg7[%c0_25, %c0_26, %c0_27] : memref<4x1x8xf32, #tpu.memory_space<vmem>>, vector<1x1x8xf32>
    %43 = vector.shape_cast %42 : vector<1x1x8xf32> to vector<1x8xf32>
    %44 = vector.broadcast %43 : vector<1x8xf32> to vector<8x8xf32>
    %45 = arith.addf %41, %44 : vector<8x8xf32>
    %c0_28 = arith.constant 0 : index
    %c0_29 = arith.constant 0 : index
    %c0_30 = arith.constant 0 : index
    %46 = vector.load %arg8[%c0_28, %c0_29, %c0_30] : memref<4x32x8xf32, #tpu.memory_space<vmem>>, vector<1x32x8xf32>
    %47 = vector.shape_cast %46 : vector<1x32x8xf32> to vector<32x8xf32>
    %48 = arith.truncf %47 : vector<32x8xf32> to vector<32x8xbf16>
    %cst_31 = arith.constant dense<0.000000e+00> : vector<8x8xf32>
    %49 = tpu.matmul %29, %48, %cst_31 {dimension_numbers = #tpu.dot_dimension_numbers<[1], [0], [0], [1], [0, 0, 1, 1], [], []>} : vector<8x32xbf16>, vector<32x8xbf16>, vector<8x8xf32> -> vector<8x8xf32>
    %c0_32 = arith.constant 0 : index
    %c0_33 = arith.constant 0 : index
    %c0_34 = arith.constant 0 : index
    %50 = vector.load %arg9[%c0_32, %c0_33, %c0_34] : memref<4x1x8xf32, #tpu.memory_space<vmem>>, vector<1x1x8xf32>
    %51 = vector.shape_cast %50 : vector<1x1x8xf32> to vector<1x8xf32>
    %52 = vector.broadcast %51 : vector<1x8xf32> to vector<8x8xf32>
    %53 = arith.addf %49, %52 : vector<8x8xf32>
    %c1 = arith.constant 1 : index
    %c0_35 = arith.constant 0 : index
    %c0_36 = arith.constant 0 : index
    %54 = vector.load %arg4[%c1, %c0_35, %c0_36] : memref<4x32x8xf32, #tpu.memory_space<vmem>>, vector<1x32x8xf32>
    %55 = vector.shape_cast %54 : vector<1x32x8xf32> to vector<32x8xf32>
    %56 = arith.truncf %55 : vector<32x8xf32> to vector<32x8xbf16>
    %cst_37 = arith.constant dense<0.000000e+00> : vector<8x8xf32>
    %57 = tpu.matmul %29, %56, %cst_37 {dimension_numbers = #tpu.dot_dimension_numbers<[1], [0], [0], [1], [0, 0, 1, 1], [], []>} : vector<8x32xbf16>, vector<32x8xbf16>, vector<8x8xf32> -> vector<8x8xf32>
    %c1_38 = arith.constant 1 : index
    %c0_39 = arith.constant 0 : index
    %c0_40 = arith.constant 0 : index
    %58 = vector.load %arg5[%c1_38, %c0_39, %c0_40] : memref<4x1x8xf32, #tpu.memory_space<vmem>>, vector<1x1x8xf32>
    %59 = vector.shape_cast %58 : vector<1x1x8xf32> to vector<1x8xf32>
    %60 = vector.broadcast %59 : vector<1x8xf32> to vector<8x8xf32>
    %61 = arith.addf %57, %60 : vector<8x8xf32>
    %c1_41 = arith.constant 1 : index
    %c0_42 = arith.constant 0 : index
    %c0_43 = arith.constant 0 : index
    %62 = vector.load %arg6[%c1_41, %c0_42, %c0_43] : memref<4x32x8xf32, #tpu.memory_space<vmem>>, vector<1x32x8xf32>
    %63 = vector.shape_cast %62 : vector<1x32x8xf32> to vector<32x8xf32>
    %64 = arith.truncf %63 : vector<32x8xf32> to vector<32x8xbf16>
    %cst_44 = arith.constant dense<0.000000e+00> : vector<8x8xf32>
    %65 = tpu.matmul %29, %64, %cst_44 {dimension_numbers = #tpu.dot_dimension_numbers<[1], [0], [0], [1], [0, 0, 1, 1], [], []>} : vector<8x32xbf16>, vector<32x8xbf16>, vector<8x8xf32> -> vector<8x8xf32>
    %c1_45 = arith.constant 1 : index
    %c0_46 = arith.constant 0 : index
    %c0_47 = arith.constant 0 : index
    %66 = vector.load %arg7[%c1_45, %c0_46, %c0_47] : memref<4x1x8xf32, #tpu.memory_space<vmem>>, vector<1x1x8xf32>
    %67 = vector.shape_cast %66 : vector<1x1x8xf32> to vector<1x8xf32>
    %68 = vector.broadcast %67 : vector<1x8xf32> to vector<8x8xf32>
    %69 = arith.addf %65, %68 : vector<8x8xf32>
    %c1_48 = arith.constant 1 : index
    %c0_49 = arith.constant 0 : index
    %c0_50 = arith.constant 0 : index
    %70 = vector.load %arg8[%c1_48, %c0_49, %c0_50] : memref<4x32x8xf32, #tpu.memory_space<vmem>>, vector<1x32x8xf32>
    %71 = vector.shape_cast %70 : vector<1x32x8xf32> to vector<32x8xf32>
    %72 = arith.truncf %71 : vector<32x8xf32> to vector<32x8xbf16>
    %cst_51 = arith.constant dense<0.000000e+00> : vector<8x8xf32>
    %73 = tpu.matmul %29, %72, %cst_51 {dimension_numbers = #tpu.dot_dimension_numbers<[1], [0], [0], [1], [0, 0, 1, 1], [], []>} : vector<8x32xbf16>, vector<32x8xbf16>, vector<8x8xf32> -> vector<8x8xf32>
    %c1_52 = arith.constant 1 : index
    %c0_53 = arith.constant 0 : index
    %c0_54 = arith.constant 0 : index
    %74 = vector.load %arg9[%c1_52, %c0_53, %c0_54] : memref<4x1x8xf32, #tpu.memory_space<vmem>>, vector<1x1x8xf32>
    %75 = vector.shape_cast %74 : vector<1x1x8xf32> to vector<1x8xf32>
    %76 = vector.broadcast %75 : vector<1x8xf32> to vector<8x8xf32>
    %77 = arith.addf %73, %76 : vector<8x8xf32>
    %c2 = arith.constant 2 : index
    %c0_55 = arith.constant 0 : index
    %c0_56 = arith.constant 0 : index
    %78 = vector.load %arg4[%c2, %c0_55, %c0_56] : memref<4x32x8xf32, #tpu.memory_space<vmem>>, vector<1x32x8xf32>
    %79 = vector.shape_cast %78 : vector<1x32x8xf32> to vector<32x8xf32>
    %80 = arith.truncf %79 : vector<32x8xf32> to vector<32x8xbf16>
    %cst_57 = arith.constant dense<0.000000e+00> : vector<8x8xf32>
    %81 = tpu.matmul %29, %80, %cst_57 {dimension_numbers = #tpu.dot_dimension_numbers<[1], [0], [0], [1], [0, 0, 1, 1], [], []>} : vector<8x32xbf16>, vector<32x8xbf16>, vector<8x8xf32> -> vector<8x8xf32>
    %c2_58 = arith.constant 2 : index
    %c0_59 = arith.constant 0 : index
    %c0_60 = arith.constant 0 : index
    %82 = vector.load %arg5[%c2_58, %c0_59, %c0_60] : memref<4x1x8xf32, #tpu.memory_space<vmem>>, vector<1x1x8xf32>
    %83 = vector.shape_cast %82 : vector<1x1x8xf32> to vector<1x8xf32>
    %84 = vector.broadcast %83 : vector<1x8xf32> to vector<8x8xf32>
    %85 = arith.addf %81, %84 : vector<8x8xf32>
    %c2_61 = arith.constant 2 : index
    %c0_62 = arith.constant 0 : index
    %c0_63 = arith.constant 0 : index
    %86 = vector.load %arg6[%c2_61, %c0_62, %c0_63] : memref<4x32x8xf32, #tpu.memory_space<vmem>>, vector<1x32x8xf32>
    %87 = vector.shape_cast %86 : vector<1x32x8xf32> to vector<32x8xf32>
    %88 = arith.truncf %87 : vector<32x8xf32> to vector<32x8xbf16>
    %cst_64 = arith.constant dense<0.000000e+00> : vector<8x8xf32>
    %89 = tpu.matmul %29, %88, %cst_64 {dimension_numbers = #tpu.dot_dimension_numbers<[1], [0], [0], [1], [0, 0, 1, 1], [], []>} : vector<8x32xbf16>, vector<32x8xbf16>, vector<8x8xf32> -> vector<8x8xf32>
    %c2_65 = arith.constant 2 : index
    %c0_66 = arith.constant 0 : index
    %c0_67 = arith.constant 0 : index
    %90 = vector.load %arg7[%c2_65, %c0_66, %c0_67] : memref<4x1x8xf32, #tpu.memory_space<vmem>>, vector<1x1x8xf32>
    %91 = vector.shape_cast %90 : vector<1x1x8xf32> to vector<1x8xf32>
    %92 = vector.broadcast %91 : vector<1x8xf32> to vector<8x8xf32>
    %93 = arith.addf %89, %92 : vector<8x8xf32>
    %c2_68 = arith.constant 2 : index
    %c0_69 = arith.constant 0 : index
    %c0_70 = arith.constant 0 : index
    %94 = vector.load %arg8[%c2_68, %c0_69, %c0_70] : memref<4x32x8xf32, #tpu.memory_space<vmem>>, vector<1x32x8xf32>
    %95 = vector.shape_cast %94 : vector<1x32x8xf32> to vector<32x8xf32>
    %96 = arith.truncf %95 : vector<32x8xf32> to vector<32x8xbf16>
    %cst_71 = arith.constant dense<0.000000e+00> : vector<8x8xf32>
    %97 = tpu.matmul %29, %96, %cst_71 {dimension_numbers = #tpu.dot_dimension_numbers<[1], [0], [0], [1], [0, 0, 1, 1], [], []>} : vector<8x32xbf16>, vector<32x8xbf16>, vector<8x8xf32> -> vector<8x8xf32>
    %c2_72 = arith.constant 2 : index
    %c0_73 = arith.constant 0 : index
    %c0_74 = arith.constant 0 : index
    %98 = vector.load %arg9[%c2_72, %c0_73, %c0_74] : memref<4x1x8xf32, #tpu.memory_space<vmem>>, vector<1x1x8xf32>
    %99 = vector.shape_cast %98 : vector<1x1x8xf32> to vector<1x8xf32>
    %100 = vector.broadcast %99 : vector<1x8xf32> to vector<8x8xf32>
    %101 = arith.addf %97, %100 : vector<8x8xf32>
    %c3 = arith.constant 3 : index
    %c0_75 = arith.constant 0 : index
    %c0_76 = arith.constant 0 : index
    %102 = vector.load %arg4[%c3, %c0_75, %c0_76] : memref<4x32x8xf32, #tpu.memory_space<vmem>>, vector<1x32x8xf32>
    %103 = vector.shape_cast %102 : vector<1x32x8xf32> to vector<32x8xf32>
    %104 = arith.truncf %103 : vector<32x8xf32> to vector<32x8xbf16>
    %cst_77 = arith.constant dense<0.000000e+00> : vector<8x8xf32>
    %105 = tpu.matmul %29, %104, %cst_77 {dimension_numbers = #tpu.dot_dimension_numbers<[1], [0], [0], [1], [0, 0, 1, 1], [], []>} : vector<8x32xbf16>, vector<32x8xbf16>, vector<8x8xf32> -> vector<8x8xf32>
    %c3_78 = arith.constant 3 : index
    %c0_79 = arith.constant 0 : index
    %c0_80 = arith.constant 0 : index
    %106 = vector.load %arg5[%c3_78, %c0_79, %c0_80] : memref<4x1x8xf32, #tpu.memory_space<vmem>>, vector<1x1x8xf32>
    %107 = vector.shape_cast %106 : vector<1x1x8xf32> to vector<1x8xf32>
    %108 = vector.broadcast %107 : vector<1x8xf32> to vector<8x8xf32>
    %109 = arith.addf %105, %108 : vector<8x8xf32>
    %c3_81 = arith.constant 3 : index
    %c0_82 = arith.constant 0 : index
    %c0_83 = arith.constant 0 : index
    %110 = vector.load %arg6[%c3_81, %c0_82, %c0_83] : memref<4x32x8xf32, #tpu.memory_space<vmem>>, vector<1x32x8xf32>
    %111 = vector.shape_cast %110 : vector<1x32x8xf32> to vector<32x8xf32>
    %112 = arith.truncf %111 : vector<32x8xf32> to vector<32x8xbf16>
    %cst_84 = arith.constant dense<0.000000e+00> : vector<8x8xf32>
    %113 = tpu.matmul %29, %112, %cst_84 {dimension_numbers = #tpu.dot_dimension_numbers<[1], [0], [0], [1], [0, 0, 1, 1], [], []>} : vector<8x32xbf16>, vector<32x8xbf16>, vector<8x8xf32> -> vector<8x8xf32>
    %c3_85 = arith.constant 3 : index
    %c0_86 = arith.constant 0 : index
    %c0_87 = arith.constant 0 : index
    %114 = vector.load %arg7[%c3_85, %c0_86, %c0_87] : memref<4x1x8xf32, #tpu.memory_space<vmem>>, vector<1x1x8xf32>
    %115 = vector.shape_cast %114 : vector<1x1x8xf32> to vector<1x8xf32>
    %116 = vector.broadcast %115 : vector<1x8xf32> to vector<8x8xf32>
    %117 = arith.addf %113, %116 : vector<8x8xf32>
    %c3_88 = arith.constant 3 : index
    %c0_89 = arith.constant 0 : index
    %c0_90 = arith.constant 0 : index
    %118 = vector.load %arg8[%c3_88, %c0_89, %c0_90] : memref<4x32x8xf32, #tpu.memory_space<vmem>>, vector<1x32x8xf32>
    %119 = vector.shape_cast %118 : vector<1x32x8xf32> to vector<32x8xf32>
    %120 = arith.truncf %119 : vector<32x8xf32> to vector<32x8xbf16>
    %cst_91 = arith.constant dense<0.000000e+00> : vector<8x8xf32>
    %121 = tpu.matmul %29, %120, %cst_91 {dimension_numbers = #tpu.dot_dimension_numbers<[1], [0], [0], [1], [0, 0, 1, 1], [], []>} : vector<8x32xbf16>, vector<32x8xbf16>, vector<8x8xf32> -> vector<8x8xf32>
    %c3_92 = arith.constant 3 : index
    %c0_93 = arith.constant 0 : index
    %c0_94 = arith.constant 0 : index
    %122 = vector.load %arg9[%c3_92, %c0_93, %c0_94] : memref<4x1x8xf32, #tpu.memory_space<vmem>>, vector<1x1x8xf32>
    %123 = vector.shape_cast %122 : vector<1x1x8xf32> to vector<1x8xf32>
    %124 = vector.broadcast %123 : vector<1x8xf32> to vector<8x8xf32>
    %125 = arith.addf %121, %124 : vector<8x8xf32>
    %126 = vector.extract_strided_slice %0 {offsets = [1, 0, 0], sizes = [1, 8, 32], strides = [1, 1, 1]} : vector<2x8x32xf32> to vector<1x8x32xf32>
    %127 = vector.shape_cast %126 : vector<1x8x32xf32> to vector<8x32xf32>
    %cst_95 = arith.constant dense<0.000000e+00> : vector<8xf32>
    %128 = vector.multi_reduction <add>, %127, %cst_95 [1] : vector<8x32xf32> to vector<8xf32>
    %129 = vector.shape_cast %128 : vector<8xf32> to vector<8x1xf32>
    %cst_96 = arith.constant 3.200000e+01 : f32
    %130 = vector.broadcast %cst_96 : f32 to vector<8x1xf32>
    %131 = arith.divf %129, %130 : vector<8x1xf32>
    %132 = vector.broadcast %131 : vector<8x1xf32> to vector<8x32xf32>
    %133 = arith.subf %127, %132 : vector<8x32xf32>
    %134 = arith.mulf %133, %133 : vector<8x32xf32>
    %cst_97 = arith.constant dense<0.000000e+00> : vector<8xf32>
    %135 = vector.multi_reduction <add>, %134, %cst_97 [1] : vector<8x32xf32> to vector<8xf32>
    %136 = vector.shape_cast %135 : vector<8xf32> to vector<8x1xf32>
    %cst_98 = arith.constant 3.200000e+01 : f32
    %137 = vector.broadcast %cst_98 : f32 to vector<8x1xf32>
    %138 = arith.divf %136, %137 : vector<8x1xf32>
    %139 = vector.broadcast %131 : vector<8x1xf32> to vector<8x32xf32>
    %140 = arith.subf %127, %139 : vector<8x32xf32>
    %cst_99 = arith.constant 9.99999974E-6 : f32
    %141 = vector.broadcast %cst_99 : f32 to vector<8x1xf32>
    %142 = arith.addf %138, %141 : vector<8x1xf32>
    %143 = math.rsqrt %142 : vector<8x1xf32>
    %144 = vector.broadcast %143 : vector<8x1xf32> to vector<8x32xf32>
    %145 = arith.mulf %140, %144 : vector<8x32xf32>
    %146 = vector.broadcast %1 : vector<1x32xf32> to vector<8x32xf32>
    %147 = arith.mulf %145, %146 : vector<8x32xf32>
    %148 = vector.broadcast %2 : vector<1x32xf32> to vector<8x32xf32>
    %149 = arith.addf %147, %148 : vector<8x32xf32>
    %150 = arith.truncf %149 : vector<8x32xf32> to vector<8x32xbf16>
    %c0_100 = arith.constant 0 : index
    %c0_101 = arith.constant 0 : index
    %c0_102 = arith.constant 0 : index
    %151 = vector.load %arg4[%c0_100, %c0_101, %c0_102] : memref<4x32x8xf32, #tpu.memory_space<vmem>>, vector<1x32x8xf32>
    %152 = vector.shape_cast %151 : vector<1x32x8xf32> to vector<32x8xf32>
    %153 = arith.truncf %152 : vector<32x8xf32> to vector<32x8xbf16>
    %cst_103 = arith.constant dense<0.000000e+00> : vector<8x8xf32>
    %154 = tpu.matmul %150, %153, %cst_103 {dimension_numbers = #tpu.dot_dimension_numbers<[1], [0], [0], [1], [0, 0, 1, 1], [], []>} : vector<8x32xbf16>, vector<32x8xbf16>, vector<8x8xf32> -> vector<8x8xf32>
    %c0_104 = arith.constant 0 : index
    %c0_105 = arith.constant 0 : index
    %c0_106 = arith.constant 0 : index
    %155 = vector.load %arg5[%c0_104, %c0_105, %c0_106] : memref<4x1x8xf32, #tpu.memory_space<vmem>>, vector<1x1x8xf32>
    %156 = vector.shape_cast %155 : vector<1x1x8xf32> to vector<1x8xf32>
    %157 = vector.broadcast %156 : vector<1x8xf32> to vector<8x8xf32>
    %158 = arith.addf %154, %157 : vector<8x8xf32>
    %c0_107 = arith.constant 0 : index
    %c0_108 = arith.constant 0 : index
    %c0_109 = arith.constant 0 : index
    %159 = vector.load %arg6[%c0_107, %c0_108, %c0_109] : memref<4x32x8xf32, #tpu.memory_space<vmem>>, vector<1x32x8xf32>
    %160 = vector.shape_cast %159 : vector<1x32x8xf32> to vector<32x8xf32>
    %161 = arith.truncf %160 : vector<32x8xf32> to vector<32x8xbf16>
    %cst_110 = arith.constant dense<0.000000e+00> : vector<8x8xf32>
    %162 = tpu.matmul %150, %161, %cst_110 {dimension_numbers = #tpu.dot_dimension_numbers<[1], [0], [0], [1], [0, 0, 1, 1], [], []>} : vector<8x32xbf16>, vector<32x8xbf16>, vector<8x8xf32> -> vector<8x8xf32>
    %c0_111 = arith.constant 0 : index
    %c0_112 = arith.constant 0 : index
    %c0_113 = arith.constant 0 : index
    %163 = vector.load %arg7[%c0_111, %c0_112, %c0_113] : memref<4x1x8xf32, #tpu.memory_space<vmem>>, vector<1x1x8xf32>
    %164 = vector.shape_cast %163 : vector<1x1x8xf32> to vector<1x8xf32>
    %165 = vector.broadcast %164 : vector<1x8xf32> to vector<8x8xf32>
    %166 = arith.addf %162, %165 : vector<8x8xf32>
    %c0_114 = arith.constant 0 : index
    %c0_115 = arith.constant 0 : index
    %c0_116 = arith.constant 0 : index
    %167 = vector.load %arg8[%c0_114, %c0_115, %c0_116] : memref<4x32x8xf32, #tpu.memory_space<vmem>>, vector<1x32x8xf32>
    %168 = vector.shape_cast %167 : vector<1x32x8xf32> to vector<32x8xf32>
    %169 = arith.truncf %168 : vector<32x8xf32> to vector<32x8xbf16>
    %cst_117 = arith.constant dense<0.000000e+00> : vector<8x8xf32>
    %170 = tpu.matmul %150, %169, %cst_117 {dimension_numbers = #tpu.dot_dimension_numbers<[1], [0], [0], [1], [0, 0, 1, 1], [], []>} : vector<8x32xbf16>, vector<32x8xbf16>, vector<8x8xf32> -> vector<8x8xf32>
    %c0_118 = arith.constant 0 : index
    %c0_119 = arith.constant 0 : index
    %c0_120 = arith.constant 0 : index
    %171 = vector.load %arg9[%c0_118, %c0_119, %c0_120] : memref<4x1x8xf32, #tpu.memory_space<vmem>>, vector<1x1x8xf32>
    %172 = vector.shape_cast %171 : vector<1x1x8xf32> to vector<1x8xf32>
    %173 = vector.broadcast %172 : vector<1x8xf32> to vector<8x8xf32>
    %174 = arith.addf %170, %173 : vector<8x8xf32>
    %c1_121 = arith.constant 1 : index
    %c0_122 = arith.constant 0 : index
    %c0_123 = arith.constant 0 : index
    %175 = vector.load %arg4[%c1_121, %c0_122, %c0_123] : memref<4x32x8xf32, #tpu.memory_space<vmem>>, vector<1x32x8xf32>
    %176 = vector.shape_cast %175 : vector<1x32x8xf32> to vector<32x8xf32>
    %177 = arith.truncf %176 : vector<32x8xf32> to vector<32x8xbf16>
    %cst_124 = arith.constant dense<0.000000e+00> : vector<8x8xf32>
    %178 = tpu.matmul %150, %177, %cst_124 {dimension_numbers = #tpu.dot_dimension_numbers<[1], [0], [0], [1], [0, 0, 1, 1], [], []>} : vector<8x32xbf16>, vector<32x8xbf16>, vector<8x8xf32> -> vector<8x8xf32>
    %c1_125 = arith.constant 1 : index
    %c0_126 = arith.constant 0 : index
    %c0_127 = arith.constant 0 : index
    %179 = vector.load %arg5[%c1_125, %c0_126, %c0_127] : memref<4x1x8xf32, #tpu.memory_space<vmem>>, vector<1x1x8xf32>
    %180 = vector.shape_cast %179 : vector<1x1x8xf32> to vector<1x8xf32>
    %181 = vector.broadcast %180 : vector<1x8xf32> to vector<8x8xf32>
    %182 = arith.addf %178, %181 : vector<8x8xf32>
    %c1_128 = arith.constant 1 : index
    %c0_129 = arith.constant 0 : index
    %c0_130 = arith.constant 0 : index
    %183 = vector.load %arg6[%c1_128, %c0_129, %c0_130] : memref<4x32x8xf32, #tpu.memory_space<vmem>>, vector<1x32x8xf32>
    %184 = vector.shape_cast %183 : vector<1x32x8xf32> to vector<32x8xf32>
    %185 = arith.truncf %184 : vector<32x8xf32> to vector<32x8xbf16>
    %cst_131 = arith.constant dense<0.000000e+00> : vector<8x8xf32>
    %186 = tpu.matmul %150, %185, %cst_131 {dimension_numbers = #tpu.dot_dimension_numbers<[1], [0], [0], [1], [0, 0, 1, 1], [], []>} : vector<8x32xbf16>, vector<32x8xbf16>, vector<8x8xf32> -> vector<8x8xf32>
    %c1_132 = arith.constant 1 : index
    %c0_133 = arith.constant 0 : index
    %c0_134 = arith.constant 0 : index
    %187 = vector.load %arg7[%c1_132, %c0_133, %c0_134] : memref<4x1x8xf32, #tpu.memory_space<vmem>>, vector<1x1x8xf32>
    %188 = vector.shape_cast %187 : vector<1x1x8xf32> to vector<1x8xf32>
    %189 = vector.broadcast %188 : vector<1x8xf32> to vector<8x8xf32>
    %190 = arith.addf %186, %189 : vector<8x8xf32>
    %c1_135 = arith.constant 1 : index
    %c0_136 = arith.constant 0 : index
    %c0_137 = arith.constant 0 : index
    %191 = vector.load %arg8[%c1_135, %c0_136, %c0_137] : memref<4x32x8xf32, #tpu.memory_space<vmem>>, vector<1x32x8xf32>
    %192 = vector.shape_cast %191 : vector<1x32x8xf32> to vector<32x8xf32>
    %193 = arith.truncf %192 : vector<32x8xf32> to vector<32x8xbf16>
    %cst_138 = arith.constant dense<0.000000e+00> : vector<8x8xf32>
    %194 = tpu.matmul %150, %193, %cst_138 {dimension_numbers = #tpu.dot_dimension_numbers<[1], [0], [0], [1], [0, 0, 1, 1], [], []>} : vector<8x32xbf16>, vector<32x8xbf16>, vector<8x8xf32> -> vector<8x8xf32>
    %c1_139 = arith.constant 1 : index
    %c0_140 = arith.constant 0 : index
    %c0_141 = arith.constant 0 : index
    %195 = vector.load %arg9[%c1_139, %c0_140, %c0_141] : memref<4x1x8xf32, #tpu.memory_space<vmem>>, vector<1x1x8xf32>
    %196 = vector.shape_cast %195 : vector<1x1x8xf32> to vector<1x8xf32>
    %197 = vector.broadcast %196 : vector<1x8xf32> to vector<8x8xf32>
    %198 = arith.addf %194, %197 : vector<8x8xf32>
    %c2_142 = arith.constant 2 : index
    %c0_143 = arith.constant 0 : index
    %c0_144 = arith.constant 0 : index
    %199 = vector.load %arg4[%c2_142, %c0_143, %c0_144] : memref<4x32x8xf32, #tpu.memory_space<vmem>>, vector<1x32x8xf32>
    %200 = vector.shape_cast %199 : vector<1x32x8xf32> to vector<32x8xf32>
    %201 = arith.truncf %200 : vector<32x8xf32> to vector<32x8xbf16>
    %cst_145 = arith.constant dense<0.000000e+00> : vector<8x8xf32>
    %202 = tpu.matmul %150, %201, %cst_145 {dimension_numbers = #tpu.dot_dimension_numbers<[1], [0], [0], [1], [0, 0, 1, 1], [], []>} : vector<8x32xbf16>, vector<32x8xbf16>, vector<8x8xf32> -> vector<8x8xf32>
    %c2_146 = arith.constant 2 : index
    %c0_147 = arith.constant 0 : index
    %c0_148 = arith.constant 0 : index
    %203 = vector.load %arg5[%c2_146, %c0_147, %c0_148] : memref<4x1x8xf32, #tpu.memory_space<vmem>>, vector<1x1x8xf32>
    %204 = vector.shape_cast %203 : vector<1x1x8xf32> to vector<1x8xf32>
    %205 = vector.broadcast %204 : vector<1x8xf32> to vector<8x8xf32>
    %206 = arith.addf %202, %205 : vector<8x8xf32>
    %c2_149 = arith.constant 2 : index
    %c0_150 = arith.constant 0 : index
    %c0_151 = arith.constant 0 : index
    %207 = vector.load %arg6[%c2_149, %c0_150, %c0_151] : memref<4x32x8xf32, #tpu.memory_space<vmem>>, vector<1x32x8xf32>
    %208 = vector.shape_cast %207 : vector<1x32x8xf32> to vector<32x8xf32>
    %209 = arith.truncf %208 : vector<32x8xf32> to vector<32x8xbf16>
    %cst_152 = arith.constant dense<0.000000e+00> : vector<8x8xf32>
    %210 = tpu.matmul %150, %209, %cst_152 {dimension_numbers = #tpu.dot_dimension_numbers<[1], [0], [0], [1], [0, 0, 1, 1], [], []>} : vector<8x32xbf16>, vector<32x8xbf16>, vector<8x8xf32> -> vector<8x8xf32>
    %c2_153 = arith.constant 2 : index
    %c0_154 = arith.constant 0 : index
    %c0_155 = arith.constant 0 : index
    %211 = vector.load %arg7[%c2_153, %c0_154, %c0_155] : memref<4x1x8xf32, #tpu.memory_space<vmem>>, vector<1x1x8xf32>
    %212 = vector.shape_cast %211 : vector<1x1x8xf32> to vector<1x8xf32>
    %213 = vector.broadcast %212 : vector<1x8xf32> to vector<8x8xf32>
    %214 = arith.addf %210, %213 : vector<8x8xf32>
    %c2_156 = arith.constant 2 : index
    %c0_157 = arith.constant 0 : index
    %c0_158 = arith.constant 0 : index
    %215 = vector.load %arg8[%c2_156, %c0_157, %c0_158] : memref<4x32x8xf32, #tpu.memory_space<vmem>>, vector<1x32x8xf32>
    %216 = vector.shape_cast %215 : vector<1x32x8xf32> to vector<32x8xf32>
    %217 = arith.truncf %216 : vector<32x8xf32> to vector<32x8xbf16>
    %cst_159 = arith.constant dense<0.000000e+00> : vector<8x8xf32>
    %218 = tpu.matmul %150, %217, %cst_159 {dimension_numbers = #tpu.dot_dimension_numbers<[1], [0], [0], [1], [0, 0, 1, 1], [], []>} : vector<8x32xbf16>, vector<32x8xbf16>, vector<8x8xf32> -> vector<8x8xf32>
    %c2_160 = arith.constant 2 : index
    %c0_161 = arith.constant 0 : index
    %c0_162 = arith.constant 0 : index
    %219 = vector.load %arg9[%c2_160, %c0_161, %c0_162] : memref<4x1x8xf32, #tpu.memory_space<vmem>>, vector<1x1x8xf32>
    %220 = vector.shape_cast %219 : vector<1x1x8xf32> to vector<1x8xf32>
    %221 = vector.broadcast %220 : vector<1x8xf32> to vector<8x8xf32>
    %222 = arith.addf %218, %221 : vector<8x8xf32>
    %c3_163 = arith.constant 3 : index
    %c0_164 = arith.constant 0 : index
    %c0_165 = arith.constant 0 : index
    %223 = vector.load %arg4[%c3_163, %c0_164, %c0_165] : memref<4x32x8xf32, #tpu.memory_space<vmem>>, vector<1x32x8xf32>
    %224 = vector.shape_cast %223 : vector<1x32x8xf32> to vector<32x8xf32>
    %225 = arith.truncf %224 : vector<32x8xf32> to vector<32x8xbf16>
    %cst_166 = arith.constant dense<0.000000e+00> : vector<8x8xf32>
    %226 = tpu.matmul %150, %225, %cst_166 {dimension_numbers = #tpu.dot_dimension_numbers<[1], [0], [0], [1], [0, 0, 1, 1], [], []>} : vector<8x32xbf16>, vector<32x8xbf16>, vector<8x8xf32> -> vector<8x8xf32>
    %c3_167 = arith.constant 3 : index
    %c0_168 = arith.constant 0 : index
    %c0_169 = arith.constant 0 : index
    %227 = vector.load %arg5[%c3_167, %c0_168, %c0_169] : memref<4x1x8xf32, #tpu.memory_space<vmem>>, vector<1x1x8xf32>
    %228 = vector.shape_cast %227 : vector<1x1x8xf32> to vector<1x8xf32>
    %229 = vector.broadcast %228 : vector<1x8xf32> to vector<8x8xf32>
    %230 = arith.addf %226, %229 : vector<8x8xf32>
    %c3_170 = arith.constant 3 : index
    %c0_171 = arith.constant 0 : index
    %c0_172 = arith.constant 0 : index
    %231 = vector.load %arg6[%c3_170, %c0_171, %c0_172] : memref<4x32x8xf32, #tpu.memory_space<vmem>>, vector<1x32x8xf32>
    %232 = vector.shape_cast %231 : vector<1x32x8xf32> to vector<32x8xf32>
    %233 = arith.truncf %232 : vector<32x8xf32> to vector<32x8xbf16>
    %cst_173 = arith.constant dense<0.000000e+00> : vector<8x8xf32>
    %234 = tpu.matmul %150, %233, %cst_173 {dimension_numbers = #tpu.dot_dimension_numbers<[1], [0], [0], [1], [0, 0, 1, 1], [], []>} : vector<8x32xbf16>, vector<32x8xbf16>, vector<8x8xf32> -> vector<8x8xf32>
    %c3_174 = arith.constant 3 : index
    %c0_175 = arith.constant 0 : index
    %c0_176 = arith.constant 0 : index
    %235 = vector.load %arg7[%c3_174, %c0_175, %c0_176] : memref<4x1x8xf32, #tpu.memory_space<vmem>>, vector<1x1x8xf32>
    %236 = vector.shape_cast %235 : vector<1x1x8xf32> to vector<1x8xf32>
    %237 = vector.broadcast %236 : vector<1x8xf32> to vector<8x8xf32>
    %238 = arith.addf %234, %237 : vector<8x8xf32>
    %c3_177 = arith.constant 3 : index
    %c0_178 = arith.constant 0 : index
    %c0_179 = arith.constant 0 : index
    %239 = vector.load %arg8[%c3_177, %c0_178, %c0_179] : memref<4x32x8xf32, #tpu.memory_space<vmem>>, vector<1x32x8xf32>
    %240 = vector.shape_cast %239 : vector<1x32x8xf32> to vector<32x8xf32>
    %241 = arith.truncf %240 : vector<32x8xf32> to vector<32x8xbf16>
    %cst_180 = arith.constant dense<0.000000e+00> : vector<8x8xf32>
    %242 = tpu.matmul %150, %241, %cst_180 {dimension_numbers = #tpu.dot_dimension_numbers<[1], [0], [0], [1], [0, 0, 1, 1], [], []>} : vector<8x32xbf16>, vector<32x8xbf16>, vector<8x8xf32> -> vector<8x8xf32>
    %c3_181 = arith.constant 3 : index
    %c0_182 = arith.constant 0 : index
    %c0_183 = arith.constant 0 : index
    %243 = vector.load %arg9[%c3_181, %c0_182, %c0_183] : memref<4x1x8xf32, #tpu.memory_space<vmem>>, vector<1x1x8xf32>
    %244 = vector.shape_cast %243 : vector<1x1x8xf32> to vector<1x8xf32>
    %245 = vector.broadcast %244 : vector<1x8xf32> to vector<8x8xf32>
    %246 = arith.addf %242, %245 : vector<8x8xf32>
    %247 = vector.shape_cast %37 : vector<8x8xf32> to vector<1x8x8xf32>
    %248 = vector.shape_cast %61 : vector<8x8xf32> to vector<1x8x8xf32>
    %249 = vector.shape_cast %85 : vector<8x8xf32> to vector<1x8x8xf32>
    %250 = vector.shape_cast %109 : vector<8x8xf32> to vector<1x8x8xf32>
    %251 = vector.shape_cast %158 : vector<8x8xf32> to vector<1x8x8xf32>
    %252 = vector.shape_cast %182 : vector<8x8xf32> to vector<1x8x8xf32>
    %253 = vector.shape_cast %206 : vector<8x8xf32> to vector<1x8x8xf32>
    %254 = vector.shape_cast %230 : vector<8x8xf32> to vector<1x8x8xf32>
    %255 = tpu.concatenate %247, %248, %249, %250, %251, %252, %253, %254 in 0 : vector<1x8x8xf32>, vector<1x8x8xf32>, vector<1x8x8xf32>, vector<1x8x8xf32>, vector<1x8x8xf32>, vector<1x8x8xf32>, vector<1x8x8xf32>, vector<1x8x8xf32> -> vector<8x8x8xf32>
    %256 = vector.shape_cast %45 : vector<8x8xf32> to vector<1x8x8xf32>
    %257 = vector.shape_cast %69 : vector<8x8xf32> to vector<1x8x8xf32>
    %258 = vector.shape_cast %93 : vector<8x8xf32> to vector<1x8x8xf32>
    %259 = vector.shape_cast %117 : vector<8x8xf32> to vector<1x8x8xf32>
    %260 = vector.shape_cast %166 : vector<8x8xf32> to vector<1x8x8xf32>
    %261 = vector.shape_cast %190 : vector<8x8xf32> to vector<1x8x8xf32>
    %262 = vector.shape_cast %214 : vector<8x8xf32> to vector<1x8x8xf32>
    %263 = vector.shape_cast %238 : vector<8x8xf32> to vector<1x8x8xf32>
    %264 = tpu.concatenate %256, %257, %258, %259, %260, %261, %262, %263 in 0 : vector<1x8x8xf32>, vector<1x8x8xf32>, vector<1x8x8xf32>, vector<1x8x8xf32>, vector<1x8x8xf32>, vector<1x8x8xf32>, vector<1x8x8xf32>, vector<1x8x8xf32> -> vector<8x8x8xf32>
    %265 = vector.shape_cast %53 : vector<8x8xf32> to vector<1x8x8xf32>
    %266 = vector.shape_cast %77 : vector<8x8xf32> to vector<1x8x8xf32>
    %267 = vector.shape_cast %101 : vector<8x8xf32> to vector<1x8x8xf32>
    %268 = vector.shape_cast %125 : vector<8x8xf32> to vector<1x8x8xf32>
    %269 = vector.shape_cast %174 : vector<8x8xf32> to vector<1x8x8xf32>
    %270 = vector.shape_cast %198 : vector<8x8xf32> to vector<1x8x8xf32>
    %271 = vector.shape_cast %222 : vector<8x8xf32> to vector<1x8x8xf32>
    %272 = vector.shape_cast %246 : vector<8x8xf32> to vector<1x8x8xf32>
    %273 = tpu.concatenate %265, %266, %267, %268, %269, %270, %271, %272 in 0 : vector<1x8x8xf32>, vector<1x8x8xf32>, vector<1x8x8xf32>, vector<1x8x8xf32>, vector<1x8x8xf32>, vector<1x8x8xf32>, vector<1x8x8xf32>, vector<1x8x8xf32> -> vector<8x8x8xf32>
    %274 = arith.truncf %255 : vector<8x8x8xf32> to vector<8x8x8xbf16>
    %275 = arith.truncf %264 : vector<8x8x8xf32> to vector<8x8x8xbf16>
    "tpu.trace_start"() <{level = 10 : i32, message = "bqd,bkd->bqk"}> : () -> ()
    %cst_184 = arith.constant dense<0.000000e+00> : vector<8x8x8xf32>
    %276 = tpu.matmul %274, %275, %cst_184 {dimension_numbers = #tpu.dot_dimension_numbers<[2], [2], [1], [1], [0, 0, 0, 1, 1, 1], [0], [0]>} : vector<8x8x8xbf16>, vector<8x8x8xbf16>, vector<8x8x8xf32> -> vector<8x8x8xf32>
    "tpu.trace_stop"() : () -> ()
    %cst_185 = arith.constant 0.353553385 : f32
    %277 = vector.broadcast %cst_185 : f32 to vector<8x8x8xf32>
    %278 = arith.mulf %276, %277 : vector<8x8x8xf32>
    %cst_186 = arith.constant dense<0xFF800000> : vector<8x8xf32>
    %279 = vector.multi_reduction <maximumf>, %278, %cst_186 [2] : vector<8x8x8xf32> to vector<8x8xf32>
    %280 = vector.shape_cast %279 : vector<8x8xf32> to vector<8x8x1xf32>
    %281 = vector.broadcast %280 : vector<8x8x1xf32> to vector<8x8x8xf32>
    %282 = arith.subf %278, %281 : vector<8x8x8xf32>
    %283 = math.exp %282 : vector<8x8x8xf32>
    %cst_187 = arith.constant dense<0.000000e+00> : vector<8x8xf32>
    %284 = vector.multi_reduction <add>, %283, %cst_187 [2] : vector<8x8x8xf32> to vector<8x8xf32>
    %285 = vector.shape_cast %284 : vector<8x8xf32> to vector<8x8x1xf32>
    %286 = tpu.reciprocal %285 {approx = true} : vector<8x8x1xf32> -> vector<8x8x1xf32>
    %287 = vector.broadcast %286 : vector<8x8x1xf32> to vector<8x8x8xf32>
    %288 = arith.mulf %283, %287 : vector<8x8x8xf32>
    %289 = arith.truncf %288 : vector<8x8x8xf32> to vector<8x8x8xbf16>
    %290 = arith.truncf %273 : vector<8x8x8xf32> to vector<8x8x8xbf16>
    "tpu.trace_start"() <{level = 10 : i32, message = "bqk,bkd->bqd"}> : () -> ()
    %cst_188 = arith.constant dense<0.000000e+00> : vector<8x8x8xf32>
    %291 = tpu.matmul %289, %290, %cst_188 {dimension_numbers = #tpu.dot_dimension_numbers<[2], [1], [1], [2], [0, 0, 0, 1, 1, 2], [0], [0]>} : vector<8x8x8xbf16>, vector<8x8x8xbf16>, vector<8x8x8xf32> -> vector<8x8x8xf32>
    "tpu.trace_stop"() : () -> ()
    %c0_189 = arith.constant 0 : index
    %c0_190 = arith.constant 0 : index
    %292 = vector.load %arg11[%c0_189, %c0_190] : memref<1x32xf32, #tpu.memory_space<vmem>>, vector<1x32xf32>
    %293 = vector.extract_strided_slice %291 {offsets = [0, 0, 0], sizes = [1, 8, 8], strides = [1, 1, 1]} : vector<8x8x8xf32> to vector<1x8x8xf32>
    %294 = vector.shape_cast %293 : vector<1x8x8xf32> to vector<8x8xf32>
    %295 = arith.truncf %294 : vector<8x8xf32> to vector<8x8xbf16>
    %c0_191 = arith.constant 0 : index
    %c0_192 = arith.constant 0 : index
    %c0_193 = arith.constant 0 : index
    %296 = vector.load %arg10[%c0_191, %c0_192, %c0_193] : memref<4x8x32xf32, #tpu.memory_space<vmem>>, vector<1x8x32xf32>
    %297 = vector.shape_cast %296 : vector<1x8x32xf32> to vector<8x32xf32>
    %298 = arith.truncf %297 : vector<8x32xf32> to vector<8x32xbf16>
    %cst_194 = arith.constant dense<0.000000e+00> : vector<8x32xf32>
    %299 = tpu.matmul %295, %298, %cst_194 {dimension_numbers = #tpu.dot_dimension_numbers<[1], [0], [0], [1], [0, 0, 1, 1], [], []>} : vector<8x8xbf16>, vector<8x32xbf16>, vector<8x32xf32> -> vector<8x32xf32>
    %300 = vector.broadcast %292 : vector<1x32xf32> to vector<8x32xf32>
    %301 = arith.addf %300, %299 : vector<8x32xf32>
    %302 = vector.extract_strided_slice %291 {offsets = [1, 0, 0], sizes = [1, 8, 8], strides = [1, 1, 1]} : vector<8x8x8xf32> to vector<1x8x8xf32>
    %303 = vector.shape_cast %302 : vector<1x8x8xf32> to vector<8x8xf32>
    %304 = arith.truncf %303 : vector<8x8xf32> to vector<8x8xbf16>
    %c1_195 = arith.constant 1 : index
    %c0_196 = arith.constant 0 : index
    %c0_197 = arith.constant 0 : index
    %305 = vector.load %arg10[%c1_195, %c0_196, %c0_197] : memref<4x8x32xf32, #tpu.memory_space<vmem>>, vector<1x8x32xf32>
    %306 = vector.shape_cast %305 : vector<1x8x32xf32> to vector<8x32xf32>
    %307 = arith.truncf %306 : vector<8x32xf32> to vector<8x32xbf16>
    %cst_198 = arith.constant dense<0.000000e+00> : vector<8x32xf32>
    %308 = tpu.matmul %304, %307, %cst_198 {dimension_numbers = #tpu.dot_dimension_numbers<[1], [0], [0], [1], [0, 0, 1, 1], [], []>} : vector<8x8xbf16>, vector<8x32xbf16>, vector<8x32xf32> -> vector<8x32xf32>
    %309 = arith.addf %301, %308 : vector<8x32xf32>
    %310 = vector.extract_strided_slice %291 {offsets = [2, 0, 0], sizes = [1, 8, 8], strides = [1, 1, 1]} : vector<8x8x8xf32> to vector<1x8x8xf32>
    %311 = vector.shape_cast %310 : vector<1x8x8xf32> to vector<8x8xf32>
    %312 = arith.truncf %311 : vector<8x8xf32> to vector<8x8xbf16>
    %c2_199 = arith.constant 2 : index
    %c0_200 = arith.constant 0 : index
    %c0_201 = arith.constant 0 : index
    %313 = vector.load %arg10[%c2_199, %c0_200, %c0_201] : memref<4x8x32xf32, #tpu.memory_space<vmem>>, vector<1x8x32xf32>
    %314 = vector.shape_cast %313 : vector<1x8x32xf32> to vector<8x32xf32>
    %315 = arith.truncf %314 : vector<8x32xf32> to vector<8x32xbf16>
    %cst_202 = arith.constant dense<0.000000e+00> : vector<8x32xf32>
    %316 = tpu.matmul %312, %315, %cst_202 {dimension_numbers = #tpu.dot_dimension_numbers<[1], [0], [0], [1], [0, 0, 1, 1], [], []>} : vector<8x8xbf16>, vector<8x32xbf16>, vector<8x32xf32> -> vector<8x32xf32>
    %317 = arith.addf %309, %316 : vector<8x32xf32>
    %318 = vector.extract_strided_slice %291 {offsets = [3, 0, 0], sizes = [1, 8, 8], strides = [1, 1, 1]} : vector<8x8x8xf32> to vector<1x8x8xf32>
    %319 = vector.shape_cast %318 : vector<1x8x8xf32> to vector<8x8xf32>
    %320 = arith.truncf %319 : vector<8x8xf32> to vector<8x8xbf16>
    %c3_203 = arith.constant 3 : index
    %c0_204 = arith.constant 0 : index
    %c0_205 = arith.constant 0 : index
    %321 = vector.load %arg10[%c3_203, %c0_204, %c0_205] : memref<4x8x32xf32, #tpu.memory_space<vmem>>, vector<1x8x32xf32>
    %322 = vector.shape_cast %321 : vector<1x8x32xf32> to vector<8x32xf32>
    %323 = arith.truncf %322 : vector<8x32xf32> to vector<8x32xbf16>
    %cst_206 = arith.constant dense<0.000000e+00> : vector<8x32xf32>
    %324 = tpu.matmul %320, %323, %cst_206 {dimension_numbers = #tpu.dot_dimension_numbers<[1], [0], [0], [1], [0, 0, 1, 1], [], []>} : vector<8x8xbf16>, vector<8x32xbf16>, vector<8x32xf32> -> vector<8x32xf32>
    %325 = arith.addf %317, %324 : vector<8x32xf32>
    %326 = vector.extract_strided_slice %0 {offsets = [0, 0, 0], sizes = [1, 8, 32], strides = [1, 1, 1]} : vector<2x8x32xf32> to vector<1x8x32xf32>
    %327 = vector.shape_cast %326 : vector<1x8x32xf32> to vector<8x32xf32>
    %328 = arith.addf %327, %325 : vector<8x32xf32>
    %cst_207 = arith.constant dense<0.000000e+00> : vector<8xf32>
    %329 = vector.multi_reduction <add>, %328, %cst_207 [1] : vector<8x32xf32> to vector<8xf32>
    %330 = vector.shape_cast %329 : vector<8xf32> to vector<8x1xf32>
    %cst_208 = arith.constant 3.200000e+01 : f32
    %331 = vector.broadcast %cst_208 : f32 to vector<8x1xf32>
    %332 = arith.divf %330, %331 : vector<8x1xf32>
    %333 = vector.broadcast %332 : vector<8x1xf32> to vector<8x32xf32>
    %334 = arith.subf %328, %333 : vector<8x32xf32>
    %335 = arith.mulf %334, %334 : vector<8x32xf32>
    %cst_209 = arith.constant dense<0.000000e+00> : vector<8xf32>
    %336 = vector.multi_reduction <add>, %335, %cst_209 [1] : vector<8x32xf32> to vector<8xf32>
    %337 = vector.shape_cast %336 : vector<8xf32> to vector<8x1xf32>
    %cst_210 = arith.constant 3.200000e+01 : f32
    %338 = vector.broadcast %cst_210 : f32 to vector<8x1xf32>
    %339 = arith.divf %337, %338 : vector<8x1xf32>
    %340 = vector.broadcast %332 : vector<8x1xf32> to vector<8x32xf32>
    %341 = arith.subf %328, %340 : vector<8x32xf32>
    %cst_211 = arith.constant 9.99999974E-6 : f32
    %342 = vector.broadcast %cst_211 : f32 to vector<8x1xf32>
    %343 = arith.addf %339, %342 : vector<8x1xf32>
    %344 = math.rsqrt %343 : vector<8x1xf32>
    %345 = vector.broadcast %344 : vector<8x1xf32> to vector<8x32xf32>
    %346 = arith.mulf %341, %345 : vector<8x32xf32>
    %347 = vector.broadcast %3 : vector<1x32xf32> to vector<8x32xf32>
    %348 = arith.mulf %346, %347 : vector<8x32xf32>
    %349 = vector.broadcast %4 : vector<1x32xf32> to vector<8x32xf32>
    %350 = arith.addf %348, %349 : vector<8x32xf32>
    %351 = arith.truncf %350 : vector<8x32xf32> to vector<8x32xbf16>
    %c0_212 = arith.constant 0 : index
    %c0_213 = arith.constant 0 : index
    %352 = vector.load %arg14[%c0_212, %c0_213] : memref<32x128xf32, #tpu.memory_space<vmem>>, vector<32x128xf32>
    %353 = arith.truncf %352 : vector<32x128xf32> to vector<32x128xbf16>
    %cst_214 = arith.constant dense<0.000000e+00> : vector<8x128xf32>
    %354 = tpu.matmul %351, %353, %cst_214 {dimension_numbers = #tpu.dot_dimension_numbers<[1], [0], [0], [1], [0, 0, 1, 1], [], []>} : vector<8x32xbf16>, vector<32x128xbf16>, vector<8x128xf32> -> vector<8x128xf32>
    %c0_215 = arith.constant 0 : index
    %c0_216 = arith.constant 0 : index
    %355 = vector.load %arg15[%c0_215, %c0_216] : memref<1x128xf32, #tpu.memory_space<vmem>>, vector<1x128xf32>
    %356 = vector.broadcast %355 : vector<1x128xf32> to vector<8x128xf32>
    %357 = arith.addf %354, %356 : vector<8x128xf32>
    %358 = arith.mulf %357, %357 : vector<8x128xf32>
    %359 = arith.mulf %357, %358 : vector<8x128xf32>
    %cst_217 = arith.constant 4.471500e-02 : f32
    %360 = vector.broadcast %cst_217 : f32 to vector<8x128xf32>
    %361 = arith.mulf %360, %359 : vector<8x128xf32>
    %362 = arith.addf %357, %361 : vector<8x128xf32>
    %cst_218 = arith.constant 0.797884583 : f32
    %363 = vector.broadcast %cst_218 : f32 to vector<8x128xf32>
    %364 = arith.mulf %363, %362 : vector<8x128xf32>
    %365 = math.tanh %364 : vector<8x128xf32>
    %cst_219 = arith.constant 1.000000e+00 : f32
    %366 = vector.broadcast %cst_219 : f32 to vector<8x128xf32>
    %367 = arith.addf %366, %365 : vector<8x128xf32>
    %cst_220 = arith.constant 5.000000e-01 : f32
    %368 = vector.broadcast %cst_220 : f32 to vector<8x128xf32>
    %369 = arith.mulf %368, %367 : vector<8x128xf32>
    %370 = arith.mulf %357, %369 : vector<8x128xf32>
    %371 = arith.truncf %370 : vector<8x128xf32> to vector<8x128xbf16>
    %c0_221 = arith.constant 0 : index
    %c0_222 = arith.constant 0 : index
    %372 = vector.load %arg16[%c0_221, %c0_222] : memref<128x32xf32, #tpu.memory_space<vmem>>, vector<128x32xf32>
    %373 = arith.truncf %372 : vector<128x32xf32> to vector<128x32xbf16>
    %cst_223 = arith.constant dense<0.000000e+00> : vector<8x32xf32>
    %374 = tpu.matmul %371, %373, %cst_223 {dimension_numbers = #tpu.dot_dimension_numbers<[1], [0], [0], [1], [0, 0, 1, 1], [], []>} : vector<8x128xbf16>, vector<128x32xbf16>, vector<8x32xf32> -> vector<8x32xf32>
    %c0_224 = arith.constant 0 : index
    %c0_225 = arith.constant 0 : index
    %375 = vector.load %arg17[%c0_224, %c0_225] : memref<1x32xf32, #tpu.memory_space<vmem>>, vector<1x32xf32>
    %376 = vector.broadcast %375 : vector<1x32xf32> to vector<8x32xf32>
    %377 = arith.addf %374, %376 : vector<8x32xf32>
    %378 = arith.addf %328, %377 : vector<8x32xf32>
    %c0_226 = arith.constant 0 : index
    %c0_227 = arith.constant 0 : index
    %379 = vector.load %arg11[%c0_226, %c0_227] : memref<1x32xf32, #tpu.memory_space<vmem>>, vector<1x32xf32>
    %380 = vector.extract_strided_slice %291 {offsets = [4, 0, 0], sizes = [1, 8, 8], strides = [1, 1, 1]} : vector<8x8x8xf32> to vector<1x8x8xf32>
    %381 = vector.shape_cast %380 : vector<1x8x8xf32> to vector<8x8xf32>
    %382 = arith.truncf %381 : vector<8x8xf32> to vector<8x8xbf16>
    %c0_228 = arith.constant 0 : index
    %c0_229 = arith.constant 0 : index
    %c0_230 = arith.constant 0 : index
    %383 = vector.load %arg10[%c0_228, %c0_229, %c0_230] : memref<4x8x32xf32, #tpu.memory_space<vmem>>, vector<1x8x32xf32>
    %384 = vector.shape_cast %383 : vector<1x8x32xf32> to vector<8x32xf32>
    %385 = arith.truncf %384 : vector<8x32xf32> to vector<8x32xbf16>
    %cst_231 = arith.constant dense<0.000000e+00> : vector<8x32xf32>
    %386 = tpu.matmul %382, %385, %cst_231 {dimension_numbers = #tpu.dot_dimension_numbers<[1], [0], [0], [1], [0, 0, 1, 1], [], []>} : vector<8x8xbf16>, vector<8x32xbf16>, vector<8x32xf32> -> vector<8x32xf32>
    %387 = vector.broadcast %379 : vector<1x32xf32> to vector<8x32xf32>
    %388 = arith.addf %387, %386 : vector<8x32xf32>
    %389 = vector.extract_strided_slice %291 {offsets = [5, 0, 0], sizes = [1, 8, 8], strides = [1, 1, 1]} : vector<8x8x8xf32> to vector<1x8x8xf32>
    %390 = vector.shape_cast %389 : vector<1x8x8xf32> to vector<8x8xf32>
    %391 = arith.truncf %390 : vector<8x8xf32> to vector<8x8xbf16>
    %c1_232 = arith.constant 1 : index
    %c0_233 = arith.constant 0 : index
    %c0_234 = arith.constant 0 : index
    %392 = vector.load %arg10[%c1_232, %c0_233, %c0_234] : memref<4x8x32xf32, #tpu.memory_space<vmem>>, vector<1x8x32xf32>
    %393 = vector.shape_cast %392 : vector<1x8x32xf32> to vector<8x32xf32>
    %394 = arith.truncf %393 : vector<8x32xf32> to vector<8x32xbf16>
    %cst_235 = arith.constant dense<0.000000e+00> : vector<8x32xf32>
    %395 = tpu.matmul %391, %394, %cst_235 {dimension_numbers = #tpu.dot_dimension_numbers<[1], [0], [0], [1], [0, 0, 1, 1], [], []>} : vector<8x8xbf16>, vector<8x32xbf16>, vector<8x32xf32> -> vector<8x32xf32>
    %396 = arith.addf %388, %395 : vector<8x32xf32>
    %397 = vector.extract_strided_slice %291 {offsets = [6, 0, 0], sizes = [1, 8, 8], strides = [1, 1, 1]} : vector<8x8x8xf32> to vector<1x8x8xf32>
    %398 = vector.shape_cast %397 : vector<1x8x8xf32> to vector<8x8xf32>
    %399 = arith.truncf %398 : vector<8x8xf32> to vector<8x8xbf16>
    %c2_236 = arith.constant 2 : index
    %c0_237 = arith.constant 0 : index
    %c0_238 = arith.constant 0 : index
    %400 = vector.load %arg10[%c2_236, %c0_237, %c0_238] : memref<4x8x32xf32, #tpu.memory_space<vmem>>, vector<1x8x32xf32>
    %401 = vector.shape_cast %400 : vector<1x8x32xf32> to vector<8x32xf32>
    %402 = arith.truncf %401 : vector<8x32xf32> to vector<8x32xbf16>
    %cst_239 = arith.constant dense<0.000000e+00> : vector<8x32xf32>
    %403 = tpu.matmul %399, %402, %cst_239 {dimension_numbers = #tpu.dot_dimension_numbers<[1], [0], [0], [1], [0, 0, 1, 1], [], []>} : vector<8x8xbf16>, vector<8x32xbf16>, vector<8x32xf32> -> vector<8x32xf32>
    %404 = arith.addf %396, %403 : vector<8x32xf32>
    %405 = vector.extract_strided_slice %291 {offsets = [7, 0, 0], sizes = [1, 8, 8], strides = [1, 1, 1]} : vector<8x8x8xf32> to vector<1x8x8xf32>
    %406 = vector.shape_cast %405 : vector<1x8x8xf32> to vector<8x8xf32>
    %407 = arith.truncf %406 : vector<8x8xf32> to vector<8x8xbf16>
    %c3_240 = arith.constant 3 : index
    %c0_241 = arith.constant 0 : index
    %c0_242 = arith.constant 0 : index
    %408 = vector.load %arg10[%c3_240, %c0_241, %c0_242] : memref<4x8x32xf32, #tpu.memory_space<vmem>>, vector<1x8x32xf32>
    %409 = vector.shape_cast %408 : vector<1x8x32xf32> to vector<8x32xf32>
    %410 = arith.truncf %409 : vector<8x32xf32> to vector<8x32xbf16>
    %cst_243 = arith.constant dense<0.000000e+00> : vector<8x32xf32>
    %411 = tpu.matmul %407, %410, %cst_243 {dimension_numbers = #tpu.dot_dimension_numbers<[1], [0], [0], [1], [0, 0, 1, 1], [], []>} : vector<8x8xbf16>, vector<8x32xbf16>, vector<8x32xf32> -> vector<8x32xf32>
    %412 = arith.addf %404, %411 : vector<8x32xf32>
    %413 = vector.extract_strided_slice %0 {offsets = [1, 0, 0], sizes = [1, 8, 32], strides = [1, 1, 1]} : vector<2x8x32xf32> to vector<1x8x32xf32>
    %414 = vector.shape_cast %413 : vector<1x8x32xf32> to vector<8x32xf32>
    %415 = arith.addf %414, %412 : vector<8x32xf32>
    %cst_244 = arith.constant dense<0.000000e+00> : vector<8xf32>
    %416 = vector.multi_reduction <add>, %415, %cst_244 [1] : vector<8x32xf32> to vector<8xf32>
    %417 = vector.shape_cast %416 : vector<8xf32> to vector<8x1xf32>
    %cst_245 = arith.constant 3.200000e+01 : f32
    %418 = vector.broadcast %cst_245 : f32 to vector<8x1xf32>
    %419 = arith.divf %417, %418 : vector<8x1xf32>
    %420 = vector.broadcast %419 : vector<8x1xf32> to vector<8x32xf32>
    %421 = arith.subf %415, %420 : vector<8x32xf32>
    %422 = arith.mulf %421, %421 : vector<8x32xf32>
    %cst_246 = arith.constant dense<0.000000e+00> : vector<8xf32>
    %423 = vector.multi_reduction <add>, %422, %cst_246 [1] : vector<8x32xf32> to vector<8xf32>
    %424 = vector.shape_cast %423 : vector<8xf32> to vector<8x1xf32>
    %cst_247 = arith.constant 3.200000e+01 : f32
    %425 = vector.broadcast %cst_247 : f32 to vector<8x1xf32>
    %426 = arith.divf %424, %425 : vector<8x1xf32>
    %427 = vector.broadcast %419 : vector<8x1xf32> to vector<8x32xf32>
    %428 = arith.subf %415, %427 : vector<8x32xf32>
    %cst_248 = arith.constant 9.99999974E-6 : f32
    %429 = vector.broadcast %cst_248 : f32 to vector<8x1xf32>
    %430 = arith.addf %426, %429 : vector<8x1xf32>
    %431 = math.rsqrt %430 : vector<8x1xf32>
    %432 = vector.broadcast %431 : vector<8x1xf32> to vector<8x32xf32>
    %433 = arith.mulf %428, %432 : vector<8x32xf32>
    %434 = vector.broadcast %3 : vector<1x32xf32> to vector<8x32xf32>
    %435 = arith.mulf %433, %434 : vector<8x32xf32>
    %436 = vector.broadcast %4 : vector<1x32xf32> to vector<8x32xf32>
    %437 = arith.addf %435, %436 : vector<8x32xf32>
    %438 = arith.truncf %437 : vector<8x32xf32> to vector<8x32xbf16>
    %c0_249 = arith.constant 0 : index
    %c0_250 = arith.constant 0 : index
    %439 = vector.load %arg14[%c0_249, %c0_250] : memref<32x128xf32, #tpu.memory_space<vmem>>, vector<32x128xf32>
    %440 = arith.truncf %439 : vector<32x128xf32> to vector<32x128xbf16>
    %cst_251 = arith.constant dense<0.000000e+00> : vector<8x128xf32>
    %441 = tpu.matmul %438, %440, %cst_251 {dimension_numbers = #tpu.dot_dimension_numbers<[1], [0], [0], [1], [0, 0, 1, 1], [], []>} : vector<8x32xbf16>, vector<32x128xbf16>, vector<8x128xf32> -> vector<8x128xf32>
    %c0_252 = arith.constant 0 : index
    %c0_253 = arith.constant 0 : index
    %442 = vector.load %arg15[%c0_252, %c0_253] : memref<1x128xf32, #tpu.memory_space<vmem>>, vector<1x128xf32>
    %443 = vector.broadcast %442 : vector<1x128xf32> to vector<8x128xf32>
    %444 = arith.addf %441, %443 : vector<8x128xf32>
    %445 = arith.mulf %444, %444 : vector<8x128xf32>
    %446 = arith.mulf %444, %445 : vector<8x128xf32>
    %cst_254 = arith.constant 4.471500e-02 : f32
    %447 = vector.broadcast %cst_254 : f32 to vector<8x128xf32>
    %448 = arith.mulf %447, %446 : vector<8x128xf32>
    %449 = arith.addf %444, %448 : vector<8x128xf32>
    %cst_255 = arith.constant 0.797884583 : f32
    %450 = vector.broadcast %cst_255 : f32 to vector<8x128xf32>
    %451 = arith.mulf %450, %449 : vector<8x128xf32>
    %452 = math.tanh %451 : vector<8x128xf32>
    %cst_256 = arith.constant 1.000000e+00 : f32
    %453 = vector.broadcast %cst_256 : f32 to vector<8x128xf32>
    %454 = arith.addf %453, %452 : vector<8x128xf32>
    %cst_257 = arith.constant 5.000000e-01 : f32
    %455 = vector.broadcast %cst_257 : f32 to vector<8x128xf32>
    %456 = arith.mulf %455, %454 : vector<8x128xf32>
    %457 = arith.mulf %444, %456 : vector<8x128xf32>
    %458 = arith.truncf %457 : vector<8x128xf32> to vector<8x128xbf16>
    %c0_258 = arith.constant 0 : index
    %c0_259 = arith.constant 0 : index
    %459 = vector.load %arg16[%c0_258, %c0_259] : memref<128x32xf32, #tpu.memory_space<vmem>>, vector<128x32xf32>
    %460 = arith.truncf %459 : vector<128x32xf32> to vector<128x32xbf16>
    %cst_260 = arith.constant dense<0.000000e+00> : vector<8x32xf32>
    %461 = tpu.matmul %458, %460, %cst_260 {dimension_numbers = #tpu.dot_dimension_numbers<[1], [0], [0], [1], [0, 0, 1, 1], [], []>} : vector<8x128xbf16>, vector<128x32xbf16>, vector<8x32xf32> -> vector<8x32xf32>
    %c0_261 = arith.constant 0 : index
    %c0_262 = arith.constant 0 : index
    %462 = vector.load %arg17[%c0_261, %c0_262] : memref<1x32xf32, #tpu.memory_space<vmem>>, vector<1x32xf32>
    %463 = vector.broadcast %462 : vector<1x32xf32> to vector<8x32xf32>
    %464 = arith.addf %461, %463 : vector<8x32xf32>
    %465 = arith.addf %415, %464 : vector<8x32xf32>
    %466 = vector.shape_cast %378 : vector<8x32xf32> to vector<1x8x32xf32>
    %467 = vector.shape_cast %465 : vector<8x32xf32> to vector<1x8x32xf32>
    %468 = tpu.concatenate %466, %467 in 0 : vector<1x8x32xf32>, vector<1x8x32xf32> -> vector<2x8x32xf32>
    %c0_263 = arith.constant 0 : index
    %c0_264 = arith.constant 0 : index
    %c0_265 = arith.constant 0 : index
    %469 = vector.load %arg18[%c0_263, %c0_264, %c0_265] : memref<2x8x32xf32, #tpu.memory_space<vmem>>, vector<2x8x32xf32>
    tpu.vector_store %arg18[%c0_263, %c0_264, %c0_265], %468 {strides = array<i32>} : memref<2x8x32xf32, #tpu.memory_space<vmem>>, vector<2x8x32xf32>,
    return
  }
  func.func @transform_0(%arg0: i32) -> (i32, i32, i32) {
    %c0_i32 = arith.constant 0 : i32
    %c0_i32_0 = arith.constant 0 : i32
    %c0_i32_1 = arith.constant 0 : i32
    return %arg0, %c0_i32, %c0_i32_0 : i32, i32, i32
  }
  func.func @transform_1(%arg0: i32) -> (i32, i32) {
    %c0_i32 = arith.constant 0 : i32
    %c0_i32_0 = arith.constant 0 : i32
    %c0_i32_1 = arith.constant 0 : i32
    return %c0_i32, %c0_i32_0 : i32, i32
  }
  func.func @transform_2(%arg0: i32) -> (i32, i32) {
    %c0_i32 = arith.constant 0 : i32
    %c0_i32_0 = arith.constant 0 : i32
    %c0_i32_1 = arith.constant 0 : i32
    return %c0_i32, %c0_i32_0 : i32, i32
  }
  func.func @transform_3(%arg0: i32) -> (i32, i32, i32) {
    %c0_i32 = arith.constant 0 : i32
    %c0_i32_0 = arith.constant 0 : i32
    %c0_i32_1 = arith.constant 0 : i32
    %c0_i32_2 = arith.constant 0 : i32
    return %c0_i32, %c0_i32_0, %c0_i32_1 : i32, i32, i32
  }
  func.func @transform_4(%arg0: i32) -> (i32, i32, i32) {
    %c0_i32 = arith.constant 0 : i32
    %c0_i32_0 = arith.constant 0 : i32
    %c0_i32_1 = arith.constant 0 : i32
    %c0_i32_2 = arith.constant 0 : i32
    return %c0_i32, %c0_i32_0, %c0_i32_1 : i32, i32, i32
  }
  func.func @transform_5(%arg0: i32) -> (i32, i32, i32) {
    %c0_i32 = arith.constant 0 : i32
    %c0_i32_0 = arith.constant 0 : i32
    %c0_i32_1 = arith.constant 0 : i32
    %c0_i32_2 = arith.constant 0 : i32
    return %c0_i32, %c0_i32_0, %c0_i32_1 : i32, i32, i32
  }
  func.func @transform_6(%arg0: i32) -> (i32, i32, i32) {
    %c0_i32 = arith.constant 0 : i32
    %c0_i32_0 = arith.constant 0 : i32
    %c0_i32_1 = arith.constant 0 : i32
    %c0_i32_2 = arith.constant 0 : i32
    return %c0_i32, %c0_i32_0, %c0_i32_1 : i32, i32, i32
  }
  func.func @transform_7(%arg0: i32) -> (i32, i32, i32) {
    %c0_i32 = arith.constant 0 : i32
    %c0_i32_0 = arith.constant 0 : i32
    %c0_i32_1 = arith.constant 0 : i32
    %c0_i32_2 = arith.constant 0 : i32
    return %c0_i32, %c0_i32_0, %c0_i32_1 : i32, i32, i32
  }
  func.func @transform_8(%arg0: i32) -> (i32, i32, i32) {
    %c0_i32 = arith.constant 0 : i32
    %c0_i32_0 = arith.constant 0 : i32
    %c0_i32_1 = arith.constant 0 : i32
    %c0_i32_2 = arith.constant 0 : i32
    return %c0_i32, %c0_i32_0, %c0_i32_1 : i32, i32, i32
  }
  func.func @transform_9(%arg0: i32) -> (i32, i32, i32) {
    %c0_i32 = arith.constant 0 : i32
    %c0_i32_0 = arith.constant 0 : i32
    %c0_i32_1 = arith.constant 0 : i32
    %c0_i32_2 = arith.constant 0 : i32
    return %c0_i32, %c0_i32_0, %c0_i32_1 : i32, i32, i32
  }
  func.func @transform_10(%arg0: i32) -> (i32, i32) {
    %c0_i32 = arith.constant 0 : i32
    %c0_i32_0 = arith.constant 0 : i32
    %c0_i32_1 = arith.constant 0 : i32
    return %c0_i32, %c0_i32_0 : i32, i32
  }
  func.func @transform_11(%arg0: i32) -> (i32, i32) {
    %c0_i32 = arith.constant 0 : i32
    %c0_i32_0 = arith.constant 0 : i32
    %c0_i32_1 = arith.constant 0 : i32
    return %c0_i32, %c0_i32_0 : i32, i32
  }
  func.func @transform_12(%arg0: i32) -> (i32, i32) {
    %c0_i32 = arith.constant 0 : i32
    %c0_i32_0 = arith.constant 0 : i32
    %c0_i32_1 = arith.constant 0 : i32
    return %c0_i32, %c0_i32_0 : i32, i32
  }
  func.func @transform_13(%arg0: i32) -> (i32, i32) {
    %c0_i32 = arith.constant 0 : i32
    %c0_i32_0 = arith.constant 0 : i32
    %c0_i32_1 = arith.constant 0 : i32
    return %c0_i32, %c0_i32_0 : i32, i32
  }
  func.func @transform_14(%arg0: i32) -> (i32, i32) {
    %c0_i32 = arith.constant 0 : i32
    %c0_i32_0 = arith.constant 0 : i32
    %c0_i32_1 = arith.constant 0 : i32
    return %c0_i32, %c0_i32_0 : i32, i32
  }
  func.func @transform_15(%arg0: i32) -> (i32, i32) {
    %c0_i32 = arith.constant 0 : i32
    %c0_i32_0 = arith.constant 0 : i32
    %c0_i32_1 = arith.constant 0 : i32
    return %c0_i32, %c0_i32_0 : i32, i32
  }
  func.func @transform_16(%arg0: i32) -> (i32, i32) {
    %c0_i32 = arith.constant 0 : i32
    %c0_i32_0 = arith.constant 0 : i32
    %c0_i32_1 = arith.constant 0 : i32
    return %c0_i32, %c0_i32_0 : i32, i32
  }
  func.func @transform_17(%arg0: i32) -> (i32, i32, i32) {
    %c0_i32 = arith.constant 0 : i32
    %c0_i32_0 = arith.constant 0 : i32
    %c0_i32_1 = arith.constant 0 : i32
    return %arg0, %c0_i32, %c0_i32_0 : i32, i32, i32
  }
}

</mosaic_0001>

<llo_original>
// kernel: tpu_custom_call.1
$region0: #{tpu_custom_call.1}
  #allocation0 [shape = 'u32[]', space=smem, size = 0x4, offset = 0x4, fixed_abs, tag = 'smem constant byte address 0x4 - core index']
  #allocation1 [shape = 'u32[144,128]{1,0:T(1,128)}', space=vmem, size = 0x12000, scoped, tag = 'internal scratch']
  %s0 = inlined_call_operand.vmem [shape: f32[2,8,32], index: 0, kind: input, shape index: {}]
  %s1 = inlined_call_operand.vmem [shape: f32[1,32], index: 1, kind: input, shape index: {}]
  %s2 = inlined_call_operand.vmem [shape: f32[1,32], index: 2, kind: input, shape index: {}]
  %s3 = inlined_call_operand.vmem [shape: f32[4,32,8], index: 3, kind: input, shape index: {}]
  %s4 = inlined_call_operand.vmem [shape: f32[4,1,8], index: 4, kind: input, shape index: {}]
  %s5 = inlined_call_operand.vmem [shape: f32[4,32,8], index: 5, kind: input, shape index: {}]
  %s6 = inlined_call_operand.vmem [shape: f32[4,1,8], index: 6, kind: input, shape index: {}]
  %s7 = inlined_call_operand.vmem [shape: f32[4,32,8], index: 7, kind: input, shape index: {}]
  %s8 = inlined_call_operand.vmem [shape: f32[4,1,8], index: 8, kind: input, shape index: {}]
  %s9 = inlined_call_operand.vmem [shape: f32[4,8,32], index: 9, kind: input, shape index: {}]
  %s10 = inlined_call_operand.vmem [shape: f32[1,32], index: 10, kind: input, shape index: {}]
  %s11 = inlined_call_operand.vmem [shape: f32[1,32], index: 11, kind: input, shape index: {}]
  %s12 = inlined_call_operand.vmem [shape: f32[1,32], index: 12, kind: input, shape index: {}]
  %s13 = inlined_call_operand.vmem [shape: f32[32,128], index: 13, kind: input, shape index: {}]
  %s14 = inlined_call_operand.vmem [shape: f32[1,128], index: 14, kind: input, shape index: {}]
  %s15 = inlined_call_operand.vmem [shape: f32[128,32], index: 15, kind: input, shape index: {}]
  %s16 = inlined_call_operand.vmem [shape: f32[1,32], index: 16, kind: input, shape index: {}]
  %s17 = inlined_call_operand.hbm [shape: f32[2,8,32], index: 17, kind: output, shape index: {}]
  %s18 = sld [smem:[#allocation0]]
  $region78: #{tpu_custom_call.1} parent=0
    _
  %s20 = ssub.s32 1, %s18
  %s21 = scalar_select 0, %s20, %s18
  $region1: #{tpu_custom_call.1} parent=0
    #allocation2 [shape = 'u8[8192]{0}', space=vmem, size = 0x2000, scoped, tag = 'output window, operand 0, single buffered']
    #allocation3 [shape = 's32[1]{0}', space=sflag, size = 0x4, scoped, tag = 'scoped memory for tpu_custom_call.1']
    %22 = vsyncpa [#allocation3], 0
    // Predicated region
    $region2: #{tpu_custom_call.1} parent=1 // pred_check
      _
    $region3: #{tpu_custom_call.1} parent=1 // pred_check_branch
      %24 = sbr.rel (0) target = $region5
    $region4: #{tpu_custom_call.1} parent=1 // pred_region
      _
    $region5: #{tpu_custom_call.1} parent=1 // pred_fallthru
      _
    // Predicated region
    $region6: #{tpu_custom_call.1} parent=1 // pred_check
      _
    $region7: #{tpu_custom_call.1} parent=1 // pred_check_branch
      %26 = sbr.rel (0) target = $region9
    $region8: #{tpu_custom_call.1} parent=1 // pred_region
      _
    $region9: #{tpu_custom_call.1} parent=1 // pred_fallthru
      _
    // Predicated region
    $region10: #{tpu_custom_call.1} parent=1 // pred_check
      _
    $region11: #{tpu_custom_call.1} parent=1 // pred_check_branch
      %28 = sbr.rel (0) target = $region13
    $region12: #{tpu_custom_call.1} parent=1 // pred_region
      _
    $region13: #{tpu_custom_call.1} parent=1 // pred_fallthru
      _
    // Predicated region
    $region14: #{tpu_custom_call.1} parent=1 // pred_check
      _
    $region15: #{tpu_custom_call.1} parent=1 // pred_check_branch
      %30 = sbr.rel (0) target = $region17
    $region16: #{tpu_custom_call.1} parent=1 // pred_region
      _
    $region17: #{tpu_custom_call.1} parent=1 // pred_fallthru
      _
    // Predicated region
    $region18: #{tpu_custom_call.1} parent=1 // pred_check
      _
    $region19: #{tpu_custom_call.1} parent=1 // pred_check_branch
      %32 = sbr.rel (0) target = $region21
    $region20: #{tpu_custom_call.1} parent=1 // pred_region
      _
    $region21: #{tpu_custom_call.1} parent=1 // pred_fallthru
      _
    // Predicated region
    $region22: #{tpu_custom_call.1} parent=1 // pred_check
      _
    $region23: #{tpu_custom_call.1} parent=1 // pred_check_branch
      %34 = sbr.rel (0) target = $region25
    $region24: #{tpu_custom_call.1} parent=1 // pred_region
      _
    $region25: #{tpu_custom_call.1} parent=1 // pred_fallthru
      _
    // Predicated region
    $region26: #{tpu_custom_call.1} parent=1 // pred_check
      _
    $region27: #{tpu_custom_call.1} parent=1 // pred_check_branch
      %36 = sbr.rel (0) target = $region29
    $region28: #{tpu_custom_call.1} parent=1 // pred_region
      _
    $region29: #{tpu_custom_call.1} parent=1 // pred_fallthru
      _
    // Predicated region
    $region30: #{tpu_custom_call.1} parent=1 // pred_check
      _
    $region31: #{tpu_custom_call.1} parent=1 // pred_check_branch
      %38 = sbr.rel (0) target = $region33
    $region32: #{tpu_custom_call.1} parent=1 // pred_region
      _
    $region33: #{tpu_custom_call.1} parent=1 // pred_fallthru
      _
    // Predicated region
    $region34: #{tpu_custom_call.1} parent=1 // pred_check
      _
    $region35: #{tpu_custom_call.1} parent=1 // pred_check_branch
      %40 = sbr.rel (0) target = $region37
    $region36: #{tpu_custom_call.1} parent=1 // pred_region
      _
    $region37: #{tpu_custom_call.1} parent=1 // pred_fallthru
      _
    // Predicated region
    $region38: #{tpu_custom_call.1} parent=1 // pred_check
      _
    $region39: #{tpu_custom_call.1} parent=1 // pred_check_branch
      %42 = sbr.rel (0) target = $region41
    $region40: #{tpu_custom_call.1} parent=1 // pred_region
      _
    $region41: #{tpu_custom_call.1} parent=1 // pred_fallthru
      _
    // Predicated region
    $region42: #{tpu_custom_call.1} parent=1 // pred_check
      _
    $region43: #{tpu_custom_call.1} parent=1 // pred_check_branch
      %44 = sbr.rel (0) target = $region45
    $region44: #{tpu_custom_call.1} parent=1 // pred_region
      _
    $region45: #{tpu_custom_call.1} parent=1 // pred_fallthru
      _
    // Predicated region
    $region46: #{tpu_custom_call.1} parent=1 // pred_check
      _
    $region47: #{tpu_custom_call.1} parent=1 // pred_check_branch
      %46 = sbr.rel (0) target = $region49
    $region48: #{tpu_custom_call.1} parent=1 // pred_region
      _
    $region49: #{tpu_custom_call.1} parent=1 // pred_fallthru
      _
    // Predicated region
    $region50: #{tpu_custom_call.1} parent=1 // pred_check
      _
    $region51: #{tpu_custom_call.1} parent=1 // pred_check_branch
      %48 = sbr.rel (0) target = $region53
    $region52: #{tpu_custom_call.1} parent=1 // pred_region
      _
    $region53: #{tpu_custom_call.1} parent=1 // pred_fallthru
      _
    // Predicated region
    $region54: #{tpu_custom_call.1} parent=1 // pred_check
      _
    $region55: #{tpu_custom_call.1} parent=1 // pred_check_branch
      %50 = sbr.rel (0) target = $region57
    $region56: #{tpu_custom_call.1} parent=1 // pred_region
      _
    $region57: #{tpu_custom_call.1} parent=1 // pred_fallthru
      _
    // Predicated region
    $region58: #{tpu_custom_call.1} parent=1 // pred_check
      _
    $region59: #{tpu_custom_call.1} parent=1 // pred_check_branch
      %52 = sbr.rel (0) target = $region61
    $region60: #{tpu_custom_call.1} parent=1 // pred_region
      _
    $region61: #{tpu_custom_call.1} parent=1 // pred_fallthru
      _
    // Predicated region
    $region62: #{tpu_custom_call.1} parent=1 // pred_check
      _
    $region63: #{tpu_custom_call.1} parent=1 // pred_check_branch
      %54 = sbr.rel (0) target = $region65
    $region64: #{tpu_custom_call.1} parent=1 // pred_region
      _
    $region65: #{tpu_custom_call.1} parent=1 // pred_fallthru
      _
    // Predicated region
    $region66: #{tpu_custom_call.1} parent=1 // pred_check
      _
    $region67: #{tpu_custom_call.1} parent=1 // pred_check_branch
      %56 = sbr.rel (0) target = $region69
    $region68: #{tpu_custom_call.1} parent=1 // pred_region
      _
    $region69: #{tpu_custom_call.1} parent=1 // pred_fallthru
      _
    %v58 = vld [vmem:[%s0] sm:$0xff]
    %v59 = vld [vmem:[%s0 + $0x8] sm:$0xff]
    %v60 = vld [vmem:[%s1] sm:$0x1]
    %v61 = vld [vmem:[%s2] sm:$0x1]
    %v62 = vld [vmem:[%s11] sm:$0x1]
    %v63 = vld [vmem:[%s12] sm:$0x1]
    %vm64 = vcmask 261120
    %v65 = vsel %vm64, %v58, 0.0
    %66 = vadd.xlane.f32.xlu0 %v65
    %v67 = vpop.xlane.xlu0 %66
    %v68 = vrcp.pop 32.0
    %v69 = vmul.f32 %v67, %v68
    %v70 = vsub.f32 %v58, %v69
    %v71 = vmul.f32 %v70, %v70
    %v72 = vsel %vm64, %v71, 0.0
    %73 = vadd.xlane.f32.xlu0 %v72
    %v74 = vpop.xlane.xlu0 %73
    %v75 = vmul.f32 %v74, %v68
    %v76 = vadd.f32 %v75, 1e-05
    %v77 = vrsqrt.pop %v76
    %v78 = vmul.f32 %v70, %v77
    %v80 = vlaneseq
    %v81 = vshrl.u32 %v80, 7
    %v82 = vsub.s32 0, %v81
    %v83 = vrot.slane %v60, %v82
    %v85 = vmul.f32 %v78, %v83
    %v87 = vlaneseq
    %v88 = vshrl.u32 %v87, 7
    %v89 = vsub.s32 0, %v88
    %v90 = vrot.slane %v61, %v89
    %v92 = vadd.f32 %v85, %v90
    %v93 = vpack.c.bf16 %v92, %v92
    %v94 = vld [vmem:[%s3] sm:$0xff]
    %v95 = vld [vmem:[%s3 + $0x8] sm:$0xff]
    %v96 = vld [vmem:[%s3 + $0x10] sm:$0xff]
    %v97 = vld [vmem:[%s3 + $0x18] sm:$0xff]
    %v98 = vpack.c.bf16 %v95, %v94
    %v99 = vpack.c.bf16 %v97, %v96
    %v100 = vld [vmem:[%s4] sm:$0x1]
    %v102 = vlaneseq
    %v103 = vshrl.u32 %v102, 7
    %v104 = vsub.s32 0, %v103
    %v105 = vrot.slane %v100, %v104
    %v108 = vsel %vm64, %v93, 0
    %110 = vmatprep.subr.bf16.mxu0 0
    %111 = vmatpush1.bf16.msra.mxu0 0
    %112 = vmatprep.subr.bf16.mxu0 0
    %113 = vmatpush1.bf16.msra.mxu0 0
    %114 = vmatprep.subr.bf16.mxu0 0
    %115 = vmatpush1.bf16.msra.mxu0 0
    %116 = vmatprep.subr.bf16.mxu0 0
    %117 = vmatpush1.bf16.msra.mxu0 0
    %118 = vmatprep.subr.bf16.mxu0 0
    %119 = vmatpush1.bf16.msra.mxu0 0
    %120 = vmatprep.subr.bf16.mxu0 0
    %121 = vmatpush1.bf16.msra.mxu0 0
    %122 = vmatprep.subr.bf16.mxu0 0
    %123 = vmatpush1.bf16.msra.mxu0 %v99
    %124 = vmatprep.subr.bf16.mxu0 0
    %125 = vmatpush1.bf16.msra.mxu0 %v98
    %126 = vmatprep.subr.bf16.mxu0 0
    %127 = vmatpush2.bf16.msra.mxu0 0
    %128 = vmatprep.subr.bf16.mxu0 0
    %129 = vmatpush2.bf16.msra.mxu0 0
    %130 = vmatprep.subr.bf16.mxu0 0
    %131 = vmatpush2.bf16.msra.mxu0 0
    %132 = vmatprep.subr.bf16.mxu0 0
    %133 = vmatpush2.bf16.msra.mxu0 0
    %134 = vmatprep.subr.bf16.mxu0 0
    %135 = vmatpush2.bf16.msra.mxu0 0
    %136 = vmatprep.subr.bf16.mxu0 0
    %137 = vmatpush2.bf16.msra.mxu0 0
    %138 = vmatprep.subr.bf16.mxu0 0
    %139 = vmatpush2.bf16.msra.mxu0 0
    %140 = vmatprep.subr.bf16.mxu0 0
    %141 = vmatpush2.bf16.msra.mxu0 0
    %142 = vmatprep.mubr.bf16.mxu0 0
    %143 = vmatmul.mubr.bf16.gmra.mxu0 %v108
    %v144 = vpop.f32.mrf.mxu0
    %v145 = vadd.f32 %v105, %v144
    %v146 = vpop.f32.mrf.mxu0
    %v147 = vpop.f32.mrf.mxu0
    %v148 = vpop.f32.mrf.mxu0
    %149 = vdwg.mxu0
    %v150 = vld [vmem:[%s5] sm:$0xff]
    %v151 = vld [vmem:[%s5 + $0x8] sm:$0xff]
    %v152 = vld [vmem:[%s5 + $0x10] sm:$0xff]
    %v153 = vld [vmem:[%s5 + $0x18] sm:$0xff]
    %v154 = vpack.c.bf16 %v151, %v150
    %v155 = vpack.c.bf16 %v153, %v152
    %v156 = vld [vmem:[%s6] sm:$0x1]
    %v158 = vlaneseq
    %v159 = vshrl.u32 %v158, 7
    %v160 = vsub.s32 0, %v159
    %v161 = vrot.slane %v156, %v160
    %163 = vmatprep.subr.bf16.mxu0 0
    %164 = vmatpush1.bf16.msra.mxu0 0
    %165 = vmatprep.subr.bf16.mxu0 0
    %166 = vmatpush1.bf16.msra.mxu0 0
    %167 = vmatprep.subr.bf16.mxu0 0
    %168 = vmatpush1.bf16.msra.mxu0 0
    %169 = vmatprep.subr.bf16.mxu0 0
    %170 = vmatpush1.bf16.msra.mxu0 0
    %171 = vmatprep.subr.bf16.mxu0 0
    %172 = vmatpush1.bf16.msra.mxu0 0
    %173 = vmatprep.subr.bf16.mxu0 0
    %174 = vmatpush1.bf16.msra.mxu0 0
    %175 = vmatprep.subr.bf16.mxu0 0
    %176 = vmatpush1.bf16.msra.mxu0 %v155
    %177 = vmatprep.subr.bf16.mxu0 0
    %178 = vmatpush1.bf16.msra.mxu0 %v154
    %179 = vmatprep.subr.bf16.mxu0 0
    %180 = vmatpush2.bf16.msra.mxu0 0
    %181 = vmatprep.subr.bf16.mxu0 0
    %182 = vmatpush2.bf16.msra.mxu0 0
    %183 = vmatprep.subr.bf16.mxu0 0
    %184 = vmatpush2.bf16.msra.mxu0 0
    %185 = vmatprep.subr.bf16.mxu0 0
    %186 = vmatpush2.bf16.msra.mxu0 0
    %187 = vmatprep.subr.bf16.mxu0 0
    %188 = vmatpush2.bf16.msra.mxu0 0
    %189 = vmatprep.subr.bf16.mxu0 0
    %190 = vmatpush2.bf16.msra.mxu0 0
    %191 = vmatprep.subr.bf16.mxu0 0
    %192 = vmatpush2.bf16.msra.mxu0 0
    %193 = vmatprep.subr.bf16.mxu0 0
    %194 = vmatpush2.bf16.msra.mxu0 0
    %195 = vmatprep.mubr.bf16.mxu0 0
    %196 = vmatmul.mubr.bf16.gmra.mxu0 %v108
    %v197 = vpop.f32.mrf.mxu0
    %v198 = vadd.f32 %v161, %v197
    %v199 = vpop.f32.mrf.mxu0
    %v200 = vpop.f32.mrf.mxu0
    %v201 = vpop.f32.mrf.mxu0
    %202 = vdwg.mxu0
    %v203 = vld [vmem:[%s7] sm:$0xff]
    %v204 = vld [vmem:[%s7 + $0x8] sm:$0xff]
    %v205 = vld [vmem:[%s7 + $0x10] sm:$0xff]
    %v206 = vld [vmem:[%s7 + $0x18] sm:$0xff]
    %v207 = vpack.c.bf16 %v204, %v203
    %v208 = vpack.c.bf16 %v206, %v205
    %v209 = vld [vmem:[%s8] sm:$0x1]
    %v211 = vlaneseq
    %v212 = vshrl.u32 %v211, 7
    %v213 = vsub.s32 0, %v212
    %v214 = vrot.slane %v209, %v213
    %216 = vmatprep.subr.bf16.mxu0 0
    %217 = vmatpush1.bf16.msra.mxu0 0
    %218 = vmatprep.subr.bf16.mxu0 0
    %219 = vmatpush1.bf16.msra.mxu0 0
    %220 = vmatprep.subr.bf16.mxu0 0
    %221 = vmatpush1.bf16.msra.mxu0 0
    %222 = vmatprep.subr.bf16.mxu0 0
    %223 = vmatpush1.bf16.msra.mxu0 0
    %224 = vmatprep.subr.bf16.mxu0 0
    %225 = vmatpush1.bf16.msra.mxu0 0
    %226 = vmatprep.subr.bf16.mxu0 0
    %227 = vmatpush1.bf16.msra.mxu0 0
    %228 = vmatprep.subr.bf16.mxu0 0
    %229 = vmatpush1.bf16.msra.mxu0 %v208
    %230 = vmatprep.subr.bf16.mxu0 0
    %231 = vmatpush1.bf16.msra.mxu0 %v207
    %232 = vmatprep.subr.bf16.mxu0 0
    %233 = vmatpush2.bf16.msra.mxu0 0
    %234 = vmatprep.subr.bf16.mxu0 0
    %235 = vmatpush2.bf16.msra.mxu0 0
    %236 = vmatprep.subr.bf16.mxu0 0
    %237 = vmatpush2.bf16.msra.mxu0 0
    %238 = vmatprep.subr.bf16.mxu0 0
    %239 = vmatpush2.bf16.msra.mxu0 0
    %240 = vmatprep.subr.bf16.mxu0 0
    %241 = vmatpush2.bf16.msra.mxu0 0
    %242 = vmatprep.subr.bf16.mxu0 0
    %243 = vmatpush2.bf16.msra.mxu0 0
    %244 = vmatprep.subr.bf16.mxu0 0
    %245 = vmatpush2.bf16.msra.mxu0 0
    %246 = vmatprep.subr.bf16.mxu0 0
    %247 = vmatpush2.bf16.msra.mxu0 0
    %248 = vmatprep.mubr.bf16.mxu0 0
    %249 = vmatmul.mubr.bf16.gmra.mxu0 %v108
    %v250 = vpop.f32.mrf.mxu0
    %v251 = vadd.f32 %v214, %v250
    %v252 = vpop.f32.mrf.mxu0
    %v253 = vpop.f32.mrf.mxu0
    %v254 = vpop.f32.mrf.mxu0
    %255 = vdwg.mxu0
    %s256 = scalar_lea.vmem %s3, 32
    %v257 = vld [vmem:[%s256] sm:$0xff]
    %v258 = vld [vmem:[%s256 + $0x8] sm:$0xff]
    %v259 = vld [vmem:[%s256 + $0x10] sm:$0xff]
    %v260 = vld [vmem:[%s256 + $0x18] sm:$0xff]
    %v261 = vpack.c.bf16 %v258, %v257
    %v262 = vpack.c.bf16 %v260, %v259
    %s263 = scalar_lea.vmem %s4, 1
    %v264 = vld [vmem:[%s263] sm:$0x1]
    %v266 = vlaneseq
    %v267 = vshrl.u32 %v266, 7
    %v268 = vsub.s32 0, %v267
    %v269 = vrot.slane %v264, %v268
    %271 = vmatprep.subr.bf16.mxu0 0
    %272 = vmatpush1.bf16.msra.mxu0 0
    %273 = vmatprep.subr.bf16.mxu0 0
    %274 = vmatpush1.bf16.msra.mxu0 0
    %275 = vmatprep.subr.bf16.mxu0 0
    %276 = vmatpush1.bf16.msra.mxu0 0
    %277 = vmatprep.subr.bf16.mxu0 0
    %278 = vmatpush1.bf16.msra.mxu0 0
    %279 = vmatprep.subr.bf16.mxu0 0
    %280 = vmatpush1.bf16.msra.mxu0 0
    %281 = vmatprep.subr.bf16.mxu0 0
    %282 = vmatpush1.bf16.msra.mxu0 0
    %283 = vmatprep.subr.bf16.mxu0 0
    %284 = vmatpush1.bf16.msra.mxu0 %v262
    %285 = vmatprep.subr.bf16.mxu0 0
    %286 = vmatpush1.bf16.msra.mxu0 %v261
    %287 = vmatprep.subr.bf16.mxu0 0
    %288 = vmatpush2.bf16.msra.mxu0 0
    %289 = vmatprep.subr.bf16.mxu0 0
    %290 = vmatpush2.bf16.msra.mxu0 0
    %291 = vmatprep.subr.bf16.mxu0 0
    %292 = vmatpush2.bf16.msra.mxu0 0
    %293 = vmatprep.subr.bf16.mxu0 0
    %294 = vmatpush2.bf16.msra.mxu0 0
    %295 = vmatprep.subr.bf16.mxu0 0
    %296 = vmatpush2.bf16.msra.mxu0 0
    %297 = vmatprep.subr.bf16.mxu0 0
    %298 = vmatpush2.bf16.msra.mxu0 0
    %299 = vmatprep.subr.bf16.mxu0 0
    %300 = vmatpush2.bf16.msra.mxu0 0
    %301 = vmatprep.subr.bf16.mxu0 0
    %302 = vmatpush2.bf16.msra.mxu0 0
    %303 = vmatprep.mubr.bf16.mxu0 0
    %304 = vmatmul.mubr.bf16.gmra.mxu0 %v108
    %v305 = vpop.f32.mrf.mxu0
    %v306 = vadd.f32 %v269, %v305
    %v307 = vpop.f32.mrf.mxu0
    %v308 = vpop.f32.mrf.mxu0
    %v309 = vpop.f32.mrf.mxu0
    %310 = vdwg.mxu0
    %s311 = scalar_lea.vmem %s5, 32
    %v312 = vld [vmem:[%s311] sm:$0xff]
    %v313 = vld [vmem:[%s311 + $0x8] sm:$0xff]
    %v314 = vld [vmem:[%s311 + $0x10] sm:$0xff]
    %v315 = vld [vmem:[%s311 + $0x18] sm:$0xff]
    %v316 = vpack.c.bf16 %v313, %v312
    %v317 = vpack.c.bf16 %v315, %v314
    %s318 = scalar_lea.vmem %s6, 1
    %v319 = vld [vmem:[%s318] sm:$0x1]
    %v321 = vlaneseq
    %v322 = vshrl.u32 %v321, 7
    %v323 = vsub.s32 0, %v322
    %v324 = vrot.slane %v319, %v323
    %326 = vmatprep.subr.bf16.mxu0 0
    %327 = vmatpush1.bf16.msra.mxu0 0
    %328 = vmatprep.subr.bf16.mxu0 0
    %329 = vmatpush1.bf16.msra.mxu0 0
    %330 = vmatprep.subr.bf16.mxu0 0
    %331 = vmatpush1.bf16.msra.mxu0 0
    %332 = vmatprep.subr.bf16.mxu0 0
    %333 = vmatpush1.bf16.msra.mxu0 0
    %334 = vmatprep.subr.bf16.mxu0 0
    %335 = vmatpush1.bf16.msra.mxu0 0
    %336 = vmatprep.subr.bf16.mxu0 0
    %337 = vmatpush1.bf16.msra.mxu0 0
    %338 = vmatprep.subr.bf16.mxu0 0
    %339 = vmatpush1.bf16.msra.mxu0 %v317
    %340 = vmatprep.subr.bf16.mxu0 0
    %341 = vmatpush1.bf16.msra.mxu0 %v316
    %342 = vmatprep.subr.bf16.mxu0 0
    %343 = vmatpush2.bf16.msra.mxu0 0
    %344 = vmatprep.subr.bf16.mxu0 0
    %345 = vmatpush2.bf16.msra.mxu0 0
    %346 = vmatprep.subr.bf16.mxu0 0
    %347 = vmatpush2.bf16.msra.mxu0 0
    %348 = vmatprep.subr.bf16.mxu0 0
    %349 = vmatpush2.bf16.msra.mxu0 0
    %350 = vmatprep.subr.bf16.mxu0 0
    %351 = vmatpush2.bf16.msra.mxu0 0
    %352 = vmatprep.subr.bf16.mxu0 0
    %353 = vmatpush2.bf16.msra.mxu0 0
    %354 = vmatprep.subr.bf16.mxu0 0
    %355 = vmatpush2.bf16.msra.mxu0 0
    %356 = vmatprep.subr.bf16.mxu0 0
    %357 = vmatpush2.bf16.msra.mxu0 0
    %358 = vmatprep.mubr.bf16.mxu0 0
    %359 = vmatmul.mubr.bf16.gmra.mxu0 %v108
    %v360 = vpop.f32.mrf.mxu0
    %v361 = vadd.f32 %v324, %v360
    %v362 = vpop.f32.mrf.mxu0
    %v363 = vpop.f32.mrf.mxu0
    %v364 = vpop.f32.mrf.mxu0
    %365 = vdwg.mxu0
    %s366 = scalar_lea.vmem %s7, 32
    %v367 = vld [vmem:[%s366] sm:$0xff]
    %v368 = vld [vmem:[%s366 + $0x8] sm:$0xff]
    %v369 = vld [vmem:[%s366 + $0x10] sm:$0xff]
    %v370 = vld [vmem:[%s366 + $0x18] sm:$0xff]
    %v371 = vpack.c.bf16 %v368, %v367
    %v372 = vpack.c.bf16 %v370, %v369
    %s373 = scalar_lea.vmem %s8, 1
    %v374 = vld [vmem:[%s373] sm:$0x1]
    %v376 = vlaneseq
    %v377 = vshrl.u32 %v376, 7
    %v378 = vsub.s32 0, %v377
    %v379 = vrot.slane %v374, %v378
    %381 = vmatprep.subr.bf16.mxu0 0
    %382 = vmatpush1.bf16.msra.mxu0 0
    %383 = vmatprep.subr.bf16.mxu0 0
    %384 = vmatpush1.bf16.msra.mxu0 0
    %385 = vmatprep.subr.bf16.mxu0 0
    %386 = vmatpush1.bf16.msra.mxu0 0
    %387 = vmatprep.subr.bf16.mxu0 0
    %388 = vmatpush1.bf16.msra.mxu0 0
    %389 = vmatprep.subr.bf16.mxu0 0
    %390 = vmatpush1.bf16.msra.mxu0 0
    %391 = vmatprep.subr.bf16.mxu0 0
    %392 = vmatpush1.bf16.msra.mxu0 0
    %393 = vmatprep.subr.bf16.mxu0 0
    %394 = vmatpush1.bf16.msra.mxu0 %v372
    %395 = vmatprep.subr.bf16.mxu0 0
    %396 = vmatpush1.bf16.msra.mxu0 %v371
    %397 = vmatprep.subr.bf16.mxu0 0
    %398 = vmatpush2.bf16.msra.mxu0 0
    %399 = vmatprep.subr.bf16.mxu0 0
    %400 = vmatpush2.bf16.msra.mxu0 0
    %401 = vmatprep.subr.bf16.mxu0 0
    %402 = vmatpush2.bf16.msra.mxu0 0
    %403 = vmatprep.subr.bf16.mxu0 0
    %404 = vmatpush2.bf16.msra.mxu0 0
    %405 = vmatprep.subr.bf16.mxu0 0
    %406 = vmatpush2.bf16.msra.mxu0 0
    %407 = vmatprep.subr.bf16.mxu0 0
    %408 = vmatpush2.bf16.msra.mxu0 0
    %409 = vmatprep.subr.bf16.mxu0 0
    %410 = vmatpush2.bf16.msra.mxu0 0
    %411 = vmatprep.subr.bf16.mxu0 0
    %412 = vmatpush2.bf16.msra.mxu0 0
    %413 = vmatprep.mubr.bf16.mxu0 0
    %414 = vmatmul.mubr.bf16.gmra.mxu0 %v108
    %v415 = vpop.f32.mrf.mxu0
    %v416 = vadd.f32 %v379, %v415
    %v417 = vpop.f32.mrf.mxu0
    %v418 = vpop.f32.mrf.mxu0
    %v419 = vpop.f32.mrf.mxu0
    %420 = vdwg.mxu0
    %s421 = scalar_lea.vmem %s3, 64
    %v422 = vld [vmem:[%s421] sm:$0xff]
    %v423 = vld [vmem:[%s421 + $0x8] sm:$0xff]
    %v424 = vld [vmem:[%s421 + $0x10] sm:$0xff]
    %v425 = vld [vmem:[%s421 + $0x18] sm:$0xff]
    %v426 = vpack.c.bf16 %v423, %v422
    %v427 = vpack.c.bf16 %v425, %v424
    %s428 = scalar_lea.vmem %s4, 2
    %v429 = vld [vmem:[%s428] sm:$0x1]
    %v431 = vlaneseq
    %v432 = vshrl.u32 %v431, 7
    %v433 = vsub.s32 0, %v432
    %v434 = vrot.slane %v429, %v433
    %436 = vmatprep.subr.bf16.mxu0 0
    %437 = vmatpush1.bf16.msra.mxu0 0
    %438 = vmatprep.subr.bf16.mxu0 0
    %439 = vmatpush1.bf16.msra.mxu0 0
    %440 = vmatprep.subr.bf16.mxu0 0
    %441 = vmatpush1.bf16.msra.mxu0 0
    %442 = vmatprep.subr.bf16.mxu0 0
    %443 = vmatpush1.bf16.msra.mxu0 0
    %444 = vmatprep.subr.bf16.mxu0 0
    %445 = vmatpush1.bf16.msra.mxu0 0
    %446 = vmatprep.subr.bf16.mxu0 0
    %447 = vmatpush1.bf16.msra.mxu0 0
    %448 = vmatprep.subr.bf16.mxu0 0
    %449 = vmatpush1.bf16.msra.mxu0 %v427
    %450 = vmatprep.subr.bf16.mxu0 0
    %451 = vmatpush1.bf16.msra.mxu0 %v426
    %452 = vmatprep.subr.bf16.mxu0 0
    %453 = vmatpush2.bf16.msra.mxu0 0
    %454 = vmatprep.subr.bf16.mxu0 0
    %455 = vmatpush2.bf16.msra.mxu0 0
    %456 = vmatprep.subr.bf16.mxu0 0
    %457 = vmatpush2.bf16.msra.mxu0 0
    %458 = vmatprep.subr.bf16.mxu0 0
    %459 = vmatpush2.bf16.msra.mxu0 0
    %460 = vmatprep.subr.bf16.mxu0 0
    %461 = vmatpush2.bf16.msra.mxu0 0
    %462 = vmatprep.subr.bf16.mxu0 0
    %463 = vmatpush2.bf16.msra.mxu0 0
    %464 = vmatprep.subr.bf16.mxu0 0
    %465 = vmatpush2.bf16.msra.mxu0 0
    %466 = vmatprep.subr.bf16.mxu0 0
    %467 = vmatpush2.bf16.msra.mxu0 0
    %468 = vmatprep.mubr.bf16.mxu0 0
    %469 = vmatmul.mubr.bf16.gmra.mxu0 %v108
    %v470 = vpop.f32.mrf.mxu0
    %v471 = vadd.f32 %v434, %v470
    %v472 = vpop.f32.mrf.mxu0
    %v473 = vpop.f32.mrf.mxu0
    %v474 = vpop.f32.mrf.mxu0
    %475 = vdwg.mxu0
    %s476 = scalar_lea.vmem %s5, 64
    %v477 = vld [vmem:[%s476] sm:$0xff]
    %v478 = vld [vmem:[%s476 + $0x8] sm:$0xff]
    %v479 = vld [vmem:[%s476 + $0x10] sm:$0xff]
    %v480 = vld [vmem:[%s476 + $0x18] sm:$0xff]
    %v481 = vpack.c.bf16 %v478, %v477
    %v482 = vpack.c.bf16 %v480, %v479
    %s483 = scalar_lea.vmem %s6, 2
    %v484 = vld [vmem:[%s483] sm:$0x1]
    %v486 = vlaneseq
    %v487 = vshrl.u32 %v486, 7
    %v488 = vsub.s32 0, %v487
    %v489 = vrot.slane %v484, %v488
    %491 = vmatprep.subr.bf16.mxu0 0
    %492 = vmatpush1.bf16.msra.mxu0 0
    %493 = vmatprep.subr.bf16.mxu0 0
    %494 = vmatpush1.bf16.msra.mxu0 0
    %495 = vmatprep.subr.bf16.mxu0 0
    %496 = vmatpush1.bf16.msra.mxu0 0
    %497 = vmatprep.subr.bf16.mxu0 0
    %498 = vmatpush1.bf16.msra.mxu0 0
    %499 = vmatprep.subr.bf16.mxu0 0
    %500 = vmatpush1.bf16.msra.mxu0 0
    %501 = vmatprep.subr.bf16.mxu0 0
    %502 = vmatpush1.bf16.msra.mxu0 0
    %503 = vmatprep.subr.bf16.mxu0 0
    %504 = vmatpush1.bf16.msra.mxu0 %v482
    %505 = vmatprep.subr.bf16.mxu0 0
    %506 = vmatpush1.bf16.msra.mxu0 %v481
    %507 = vmatprep.subr.bf16.mxu0 0
    %508 = vmatpush2.bf16.msra.mxu0 0
    %509 = vmatprep.subr.bf16.mxu0 0
    %510 = vmatpush2.bf16.msra.mxu0 0
    %511 = vmatprep.subr.bf16.mxu0 0
    %512 = vmatpush2.bf16.msra.mxu0 0
    %513 = vmatprep.subr.bf16.mxu0 0
    %514 = vmatpush2.bf16.msra.mxu0 0
    %515 = vmatprep.subr.bf16.mxu0 0
    %516 = vmatpush2.bf16.msra.mxu0 0
    %517 = vmatprep.subr.bf16.mxu0 0
    %518 = vmatpush2.bf16.msra.mxu0 0
    %519 = vmatprep.subr.bf16.mxu0 0
    %520 = vmatpush2.bf16.msra.mxu0 0
    %521 = vmatprep.subr.bf16.mxu0 0
    %522 = vmatpush2.bf16.msra.mxu0 0
    %523 = vmatprep.mubr.bf16.mxu0 0
    %524 = vmatmul.mubr.bf16.gmra.mxu0 %v108
    %v525 = vpop.f32.mrf.mxu0
    %v526 = vadd.f32 %v489, %v525
    %v527 = vpop.f32.mrf.mxu0
    %v528 = vpop.f32.mrf.mxu0
    %v529 = vpop.f32.mrf.mxu0
    %530 = vdwg.mxu0
    %s531 = scalar_lea.vmem %s7, 64
    %v532 = vld [vmem:[%s531] sm:$0xff]
    %v533 = vld [vmem:[%s531 + $0x8] sm:$0xff]
    %v534 = vld [vmem:[%s531 + $0x10] sm:$0xff]
    %v535 = vld [vmem:[%s531 + $0x18] sm:$0xff]
    %v536 = vpack.c.bf16 %v533, %v532
    %v537 = vpack.c.bf16 %v535, %v534
    %s538 = scalar_lea.vmem %s8, 2
    %v539 = vld [vmem:[%s538] sm:$0x1]
    %v541 = vlaneseq
    %v542 = vshrl.u32 %v541, 7
    %v543 = vsub.s32 0, %v542
    %v544 = vrot.slane %v539, %v543
    %546 = vmatprep.subr.bf16.mxu0 0
    %547 = vmatpush1.bf16.msra.mxu0 0
    %548 = vmatprep.subr.bf16.mxu0 0
    %549 = vmatpush1.bf16.msra.mxu0 0
    %550 = vmatprep.subr.bf16.mxu0 0
    %551 = vmatpush1.bf16.msra.mxu0 0
    %552 = vmatprep.subr.bf16.mxu0 0
    %553 = vmatpush1.bf16.msra.mxu0 0
    %554 = vmatprep.subr.bf16.mxu0 0
    %555 = vmatpush1.bf16.msra.mxu0 0
    %556 = vmatprep.subr.bf16.mxu0 0
    %557 = vmatpush1.bf16.msra.mxu0 0
    %558 = vmatprep.subr.bf16.mxu0 0
    %559 = vmatpush1.bf16.msra.mxu0 %v537
    %560 = vmatprep.subr.bf16.mxu0 0
    %561 = vmatpush1.bf16.msra.mxu0 %v536
    %562 = vmatprep.subr.bf16.mxu0 0
    %563 = vmatpush2.bf16.msra.mxu0 0
    %564 = vmatprep.subr.bf16.mxu0 0
    %565 = vmatpush2.bf16.msra.mxu0 0
    %566 = vmatprep.subr.bf16.mxu0 0
    %567 = vmatpush2.bf16.msra.mxu0 0
    %568 = vmatprep.subr.bf16.mxu0 0
    %569 = vmatpush2.bf16.msra.mxu0 0
    %570 = vmatprep.subr.bf16.mxu0 0
    %571 = vmatpush2.bf16.msra.mxu0 0
    %572 = vmatprep.subr.bf16.mxu0 0
    %573 = vmatpush2.bf16.msra.mxu0 0
    %574 = vmatprep.subr.bf16.mxu0 0
    %575 = vmatpush2.bf16.msra.mxu0 0
    %576 = vmatprep.subr.bf16.mxu0 0
    %577 = vmatpush2.bf16.msra.mxu0 0
    %578 = vmatprep.mubr.bf16.mxu0 0
    %579 = vmatmul.mubr.bf16.gmra.mxu0 %v108
    %v580 = vpop.f32.mrf.mxu0
    %v581 = vadd.f32 %v544, %v580
    %v582 = vpop.f32.mrf.mxu0
    %v583 = vpop.f32.mrf.mxu0
    %v584 = vpop.f32.mrf.mxu0
    %585 = vdwg.mxu0
    %s586 = scalar_lea.vmem %s3, 96
    %v587 = vld [vmem:[%s586] sm:$0xff]
    %v588 = vld [vmem:[%s586 + $0x8] sm:$0xff]
    %v589 = vld [vmem:[%s586 + $0x10] sm:$0xff]
    %v590 = vld [vmem:[%s586 + $0x18] sm:$0xff]
    %v591 = vpack.c.bf16 %v588, %v587
    %v592 = vpack.c.bf16 %v590, %v589
    %s593 = scalar_lea.vmem %s4, 3
    %v594 = vld [vmem:[%s593] sm:$0x1]
    %v596 = vlaneseq
    %v597 = vshrl.u32 %v596, 7
    %v598 = vsub.s32 0, %v597
    %v599 = vrot.slane %v594, %v598
    %601 = vmatprep.subr.bf16.mxu0 0
    %602 = vmatpush1.bf16.msra.mxu0 0
    %603 = vmatprep.subr.bf16.mxu0 0
    %604 = vmatpush1.bf16.msra.mxu0 0
    %605 = vmatprep.subr.bf16.mxu0 0
    %606 = vmatpush1.bf16.msra.mxu0 0
    %607 = vmatprep.subr.bf16.mxu0 0
    %608 = vmatpush1.bf16.msra.mxu0 0
    %609 = vmatprep.subr.bf16.mxu0 0
    %610 = vmatpush1.bf16.msra.mxu0 0
    %611 = vmatprep.subr.bf16.mxu0 0
    %612 = vmatpush1.bf16.msra.mxu0 0
    %613 = vmatprep.subr.bf16.mxu0 0
    %614 = vmatpush1.bf16.msra.mxu0 %v592
    %615 = vmatprep.subr.bf16.mxu0 0
    %616 = vmatpush1.bf16.msra.mxu0 %v591
    %617 = vmatprep.subr.bf16.mxu0 0
    %618 = vmatpush2.bf16.msra.mxu0 0
    %619 = vmatprep.subr.bf16.mxu0 0
    %620 = vmatpush2.bf16.msra.mxu0 0
    %621 = vmatprep.subr.bf16.mxu0 0
    %622 = vmatpush2.bf16.msra.mxu0 0
    %623 = vmatprep.subr.bf16.mxu0 0
    %624 = vmatpush2.bf16.msra.mxu0 0
    %625 = vmatprep.subr.bf16.mxu0 0
    %626 = vmatpush2.bf16.msra.mxu0 0
    %627 = vmatprep.subr.bf16.mxu0 0
    %628 = vmatpush2.bf16.msra.mxu0 0
    %629 = vmatprep.subr.bf16.mxu0 0
    %630 = vmatpush2.bf16.msra.mxu0 0
    %631 = vmatprep.subr.bf16.mxu0 0
    %632 = vmatpush2.bf16.msra.mxu0 0
    %633 = vmatprep.mubr.bf16.mxu0 0
    %634 = vmatmul.mubr.bf16.gmra.mxu0 %v108
    %v635 = vpop.f32.mrf.mxu0
    %v636 = vadd.f32 %v599, %v635
    %v637 = vpop.f32.mrf.mxu0
    %v638 = vpop.f32.mrf.mxu0
    %v639 = vpop.f32.mrf.mxu0
    %640 = vdwg.mxu0
    %s641 = scalar_lea.vmem %s5, 96
    %v642 = vld [vmem:[%s641] sm:$0xff]
    %v643 = vld [vmem:[%s641 + $0x8] sm:$0xff]
    %v644 = vld [vmem:[%s641 + $0x10] sm:$0xff]
    %v645 = vld [vmem:[%s641 + $0x18] sm:$0xff]
    %v646 = vpack.c.bf16 %v643, %v642
    %v647 = vpack.c.bf16 %v645, %v644
    %s648 = scalar_lea.vmem %s6, 3
    %v649 = vld [vmem:[%s648] sm:$0x1]
    %v651 = vlaneseq
    %v652 = vshrl.u32 %v651, 7
    %v653 = vsub.s32 0, %v652
    %v654 = vrot.slane %v649, %v653
    %656 = vmatprep.subr.bf16.mxu0 0
    %657 = vmatpush1.bf16.msra.mxu0 0
    %658 = vmatprep.subr.bf16.mxu0 0
    %659 = vmatpush1.bf16.msra.mxu0 0
    %660 = vmatprep.subr.bf16.mxu0 0
    %661 = vmatpush1.bf16.msra.mxu0 0
    %662 = vmatprep.subr.bf16.mxu0 0
    %663 = vmatpush1.bf16.msra.mxu0 0
    %664 = vmatprep.subr.bf16.mxu0 0
    %665 = vmatpush1.bf16.msra.mxu0 0
    %666 = vmatprep.subr.bf16.mxu0 0
    %667 = vmatpush1.bf16.msra.mxu0 0
    %668 = vmatprep.subr.bf16.mxu0 0
    %669 = vmatpush1.bf16.msra.mxu0 %v647
    %670 = vmatprep.subr.bf16.mxu0 0
    %671 = vmatpush1.bf16.msra.mxu0 %v646
    %672 = vmatprep.subr.bf16.mxu0 0
    %673 = vmatpush2.bf16.msra.mxu0 0
    %674 = vmatprep.subr.bf16.mxu0 0
    %675 = vmatpush2.bf16.msra.mxu0 0
    %676 = vmatprep.subr.bf16.mxu0 0
    %677 = vmatpush2.bf16.msra.mxu0 0
    %678 = vmatprep.subr.bf16.mxu0 0
    %679 = vmatpush2.bf16.msra.mxu0 0
    %680 = vmatprep.subr.bf16.mxu0 0
    %681 = vmatpush2.bf16.msra.mxu0 0
    %682 = vmatprep.subr.bf16.mxu0 0
    %683 = vmatpush2.bf16.msra.mxu0 0
    %684 = vmatprep.subr.bf16.mxu0 0
    %685 = vmatpush2.bf16.msra.mxu0 0
    %686 = vmatprep.subr.bf16.mxu0 0
    %687 = vmatpush2.bf16.msra.mxu0 0
    %688 = vmatprep.mubr.bf16.mxu0 0
    %689 = vmatmul.mubr.bf16.gmra.mxu0 %v108
    %v690 = vpop.f32.mrf.mxu0
    %v691 = vadd.f32 %v654, %v690
    %v692 = vpop.f32.mrf.mxu0
    %v693 = vpop.f32.mrf.mxu0
    %v694 = vpop.f32.mrf.mxu0
    %695 = vdwg.mxu0
    %s696 = scalar_lea.vmem %s7, 96
    %v697 = vld [vmem:[%s696] sm:$0xff]
    %v698 = vld [vmem:[%s696 + $0x8] sm:$0xff]
    %v699 = vld [vmem:[%s696 + $0x10] sm:$0xff]
    %v700 = vld [vmem:[%s696 + $0x18] sm:$0xff]
    %v701 = vpack.c.bf16 %v698, %v697
    %v702 = vpack.c.bf16 %v700, %v699
    %s703 = scalar_lea.vmem %s8, 3
    %v704 = vld [vmem:[%s703] sm:$0x1]
    %v706 = vlaneseq
    %v707 = vshrl.u32 %v706, 7
    %v708 = vsub.s32 0, %v707
    %v709 = vrot.slane %v704, %v708
    %711 = vmatprep.subr.bf16.mxu0 0
    %712 = vmatpush1.bf16.msra.mxu0 0
    %713 = vmatprep.subr.bf16.mxu0 0
    %714 = vmatpush1.bf16.msra.mxu0 0
    %715 = vmatprep.subr.bf16.mxu0 0
    %716 = vmatpush1.bf16.msra.mxu0 0
    %717 = vmatprep.subr.bf16.mxu0 0
    %718 = vmatpush1.bf16.msra.mxu0 0
    %719 = vmatprep.subr.bf16.mxu0 0
    %720 = vmatpush1.bf16.msra.mxu0 0
    %721 = vmatprep.subr.bf16.mxu0 0
    %722 = vmatpush1.bf16.msra.mxu0 0
    %723 = vmatprep.subr.bf16.mxu0 0
    %724 = vmatpush1.bf16.msra.mxu0 %v702
    %725 = vmatprep.subr.bf16.mxu0 0
    %726 = vmatpush1.bf16.msra.mxu0 %v701
    %727 = vmatprep.subr.bf16.mxu0 0
    %728 = vmatpush2.bf16.msra.mxu0 0
    %729 = vmatprep.subr.bf16.mxu0 0
    %730 = vmatpush2.bf16.msra.mxu0 0
    %731 = vmatprep.subr.bf16.mxu0 0
    %732 = vmatpush2.bf16.msra.mxu0 0
    %733 = vmatprep.subr.bf16.mxu0 0
    %734 = vmatpush2.bf16.msra.mxu0 0
    %735 = vmatprep.subr.bf16.mxu0 0
    %736 = vmatpush2.bf16.msra.mxu0 0
    %737 = vmatprep.subr.bf16.mxu0 0
    %738 = vmatpush2.bf16.msra.mxu0 0
    %739 = vmatprep.subr.bf16.mxu0 0
    %740 = vmatpush2.bf16.msra.mxu0 0
    %741 = vmatprep.subr.bf16.mxu0 0
    %742 = vmatpush2.bf16.msra.mxu0 0
    %743 = vmatprep.mubr.bf16.mxu0 0
    %744 = vmatmul.mubr.bf16.gmra.mxu0 %v108
    %v745 = vpop.f32.mrf.mxu0
    %v746 = vadd.f32 %v709, %v745
    %v747 = vpop.f32.mrf.mxu0
    %v748 = vpop.f32.mrf.mxu0
    %v749 = vpop.f32.mrf.mxu0
    %750 = vdwg.mxu0
    %v751 = vsel %vm64, %v59, 0.0
    %752 = vadd.xlane.f32.xlu0 %v751
    %v753 = vpop.xlane.xlu0 %752
    %v754 = vmul.f32 %v753, %v68
    %v755 = vsub.f32 %v59, %v754
    %v756 = vmul.f32 %v755, %v755
    %v757 = vsel %vm64, %v756, 0.0
    %758 = vadd.xlane.f32.xlu0 %v757
    %v759 = vpop.xlane.xlu0 %758
    %v760 = vmul.f32 %v759, %v68
    %v761 = vadd.f32 %v760, 1e-05
    %v762 = vrsqrt.pop %v761
    %v763 = vmul.f32 %v755, %v762
    %v764 = vmul.f32 %v763, %v83
    %v765 = vadd.f32 %v764, %v90
    %v766 = vpack.c.bf16 %v765, %v765
    %v768 = vsel %vm64, %v766, 0
    %770 = vmatprep.subr.bf16.mxu0 0
    %771 = vmatpush1.bf16.msra.mxu0 0
    %772 = vmatprep.subr.bf16.mxu0 0
    %773 = vmatpush1.bf16.msra.mxu0 0
    %774 = vmatprep.subr.bf16.mxu0 0
    %775 = vmatpush1.bf16.msra.mxu0 0
    %776 = vmatprep.subr.bf16.mxu0 0
    %777 = vmatpush1.bf16.msra.mxu0 0
    %778 = vmatprep.subr.bf16.mxu0 0
    %779 = vmatpush1.bf16.msra.mxu0 0
    %780 = vmatprep.subr.bf16.mxu0 0
    %781 = vmatpush1.bf16.msra.mxu0 0
    %782 = vmatprep.subr.bf16.mxu0 0
    %783 = vmatpush1.bf16.msra.mxu0 %v99
    %784 = vmatprep.subr.bf16.mxu0 0
    %785 = vmatpush1.bf16.msra.mxu0 %v98
    %786 = vmatprep.subr.bf16.mxu0 0
    %787 = vmatpush2.bf16.msra.mxu0 0
    %788 = vmatprep.subr.bf16.mxu0 0
    %789 = vmatpush2.bf16.msra.mxu0 0
    %790 = vmatprep.subr.bf16.mxu0 0
    %791 = vmatpush2.bf16.msra.mxu0 0
    %792 = vmatprep.subr.bf16.mxu0 0
    %793 = vmatpush2.bf16.msra.mxu0 0
    %794 = vmatprep.subr.bf16.mxu0 0
    %795 = vmatpush2.bf16.msra.mxu0 0
    %796 = vmatprep.subr.bf16.mxu0 0
    %797 = vmatpush2.bf16.msra.mxu0 0
    %798 = vmatprep.subr.bf16.mxu0 0
    %799 = vmatpush2.bf16.msra.mxu0 0
    %800 = vmatprep.subr.bf16.mxu0 0
    %801 = vmatpush2.bf16.msra.mxu0 0
    %802 = vmatprep.mubr.bf16.mxu0 0
    %803 = vmatmul.mubr.bf16.gmra.mxu0 %v768
    %v804 = vpop.f32.mrf.mxu0
    %v805 = vadd.f32 %v105, %v804
    %v806 = vpop.f32.mrf.mxu0
    %v807 = vpop.f32.mrf.mxu0
    %v808 = vpop.f32.mrf.mxu0
    %809 = vdwg.mxu0
    %810 = vmatprep.subr.bf16.mxu0 0
    %811 = vmatpush1.bf16.msra.mxu0 0
    %812 = vmatprep.subr.bf16.mxu0 0
    %813 = vmatpush1.bf16.msra.mxu0 0
    %814 = vmatprep.subr.bf16.mxu0 0
    %815 = vmatpush1.bf16.msra.mxu0 0
    %816 = vmatprep.subr.bf16.mxu0 0
    %817 = vmatpush1.bf16.msra.mxu0 0
    %818 = vmatprep.subr.bf16.mxu0 0
    %819 = vmatpush1.bf16.msra.mxu0 0
    %820 = vmatprep.subr.bf16.mxu0 0
    %821 = vmatpush1.bf16.msra.mxu0 0
    %822 = vmatprep.subr.bf16.mxu0 0
    %823 = vmatpush1.bf16.msra.mxu0 %v155
    %824 = vmatprep.subr.bf16.mxu0 0
    %825 = vmatpush1.bf16.msra.mxu0 %v154
    %826 = vmatprep.subr.bf16.mxu0 0
    %827 = vmatpush2.bf16.msra.mxu0 0
    %828 = vmatprep.subr.bf16.mxu0 0
    %829 = vmatpush2.bf16.msra.mxu0 0
    %830 = vmatprep.subr.bf16.mxu0 0
    %831 = vmatpush2.bf16.msra.mxu0 0
    %832 = vmatprep.subr.bf16.mxu0 0
    %833 = vmatpush2.bf16.msra.mxu0 0
    %834 = vmatprep.subr.bf16.mxu0 0
    %835 = vmatpush2.bf16.msra.mxu0 0
    %836 = vmatprep.subr.bf16.mxu0 0
    %837 = vmatpush2.bf16.msra.mxu0 0
    %838 = vmatprep.subr.bf16.mxu0 0
    %839 = vmatpush2.bf16.msra.mxu0 0
    %840 = vmatprep.subr.bf16.mxu0 0
    %841 = vmatpush2.bf16.msra.mxu0 0
    %842 = vmatprep.mubr.bf16.mxu0 0
    %843 = vmatmul.mubr.bf16.gmra.mxu0 %v768
    %v844 = vpop.f32.mrf.mxu0
    %v845 = vadd.f32 %v161, %v844
    %v846 = vpop.f32.mrf.mxu0
    %v847 = vpop.f32.mrf.mxu0
    %v848 = vpop.f32.mrf.mxu0
    %849 = vdwg.mxu0
    %850 = vmatprep.subr.bf16.mxu0 0
    %851 = vmatpush1.bf16.msra.mxu0 0
    %852 = vmatprep.subr.bf16.mxu0 0
    %853 = vmatpush1.bf16.msra.mxu0 0
    %854 = vmatprep.subr.bf16.mxu0 0
    %855 = vmatpush1.bf16.msra.mxu0 0
    %856 = vmatprep.subr.bf16.mxu0 0
    %857 = vmatpush1.bf16.msra.mxu0 0
    %858 = vmatprep.subr.bf16.mxu0 0
    %859 = vmatpush1.bf16.msra.mxu0 0
    %860 = vmatprep.subr.bf16.mxu0 0
    %861 = vmatpush1.bf16.msra.mxu0 0
    %862 = vmatprep.subr.bf16.mxu0 0
    %863 = vmatpush1.bf16.msra.mxu0 %v208
    %864 = vmatprep.subr.bf16.mxu0 0
    %865 = vmatpush1.bf16.msra.mxu0 %v207
    %866 = vmatprep.subr.bf16.mxu0 0
    %867 = vmatpush2.bf16.msra.mxu0 0
    %868 = vmatprep.subr.bf16.mxu0 0
    %869 = vmatpush2.bf16.msra.mxu0 0
    %870 = vmatprep.subr.bf16.mxu0 0
    %871 = vmatpush2.bf16.msra.mxu0 0
    %872 = vmatprep.subr.bf16.mxu0 0
    %873 = vmatpush2.bf16.msra.mxu0 0
    %874 = vmatprep.subr.bf16.mxu0 0
    %875 = vmatpush2.bf16.msra.mxu0 0
    %876 = vmatprep.subr.bf16.mxu0 0
    %877 = vmatpush2.bf16.msra.mxu0 0
    %878 = vmatprep.subr.bf16.mxu0 0
    %879 = vmatpush2.bf16.msra.mxu0 0
    %880 = vmatprep.subr.bf16.mxu0 0
    %881 = vmatpush2.bf16.msra.mxu0 0
    %882 = vmatprep.mubr.bf16.mxu0 0
    %883 = vmatmul.mubr.bf16.gmra.mxu0 %v768
    %v884 = vpop.f32.mrf.mxu0
    %v885 = vadd.f32 %v214, %v884
    %v886 = vpop.f32.mrf.mxu0
    %v887 = vpop.f32.mrf.mxu0
    %v888 = vpop.f32.mrf.mxu0
    %889 = vdwg.mxu0
    %890 = vmatprep.subr.bf16.mxu0 0
    %891 = vmatpush1.bf16.msra.mxu0 0
    %892 = vmatprep.subr.bf16.mxu0 0
    %893 = vmatpush1.bf16.msra.mxu0 0
    %894 = vmatprep.subr.bf16.mxu0 0
    %895 = vmatpush1.bf16.msra.mxu0 0
    %896 = vmatprep.subr.bf16.mxu0 0
    %897 = vmatpush1.bf16.msra.mxu0 0
    %898 = vmatprep.subr.bf16.mxu0 0
    %899 = vmatpush1.bf16.msra.mxu0 0
    %900 = vmatprep.subr.bf16.mxu0 0
    %901 = vmatpush1.bf16.msra.mxu0 0
    %902 = vmatprep.subr.bf16.mxu0 0
    %903 = vmatpush1.bf16.msra.mxu0 %v262
    %904 = vmatprep.subr.bf16.mxu0 0
    %905 = vmatpush1.bf16.msra.mxu0 %v261
    %906 = vmatprep.subr.bf16.mxu0 0
    %907 = vmatpush2.bf16.msra.mxu0 0
    %908 = vmatprep.subr.bf16.mxu0 0
    %909 = vmatpush2.bf16.msra.mxu0 0
    %910 = vmatprep.subr.bf16.mxu0 0
    %911 = vmatpush2.bf16.msra.mxu0 0
    %912 = vmatprep.subr.bf16.mxu0 0
    %913 = vmatpush2.bf16.msra.mxu0 0
    %914 = vmatprep.subr.bf16.mxu0 0
    %915 = vmatpush2.bf16.msra.mxu0 0
    %916 = vmatprep.subr.bf16.mxu0 0
    %917 = vmatpush2.bf16.msra.mxu0 0
    %918 = vmatprep.subr.bf16.mxu0 0
    %919 = vmatpush2.bf16.msra.mxu0 0
    %920 = vmatprep.subr.bf16.mxu0 0
    %921 = vmatpush2.bf16.msra.mxu0 0
    %922 = vmatprep.mubr.bf16.mxu0 0
    %923 = vmatmul.mubr.bf16.gmra.mxu0 %v768
    %v924 = vpop.f32.mrf.mxu0
    %v925 = vadd.f32 %v269, %v924
    %v926 = vpop.f32.mrf.mxu0
    %v927 = vpop.f32.mrf.mxu0
    %v928 = vpop.f32.mrf.mxu0
    %929 = vdwg.mxu0
    %930 = vmatprep.subr.bf16.mxu0 0
    %931 = vmatpush1.bf16.msra.mxu0 0
    %932 = vmatprep.subr.bf16.mxu0 0
    %933 = vmatpush1.bf16.msra.mxu0 0
    %934 = vmatprep.subr.bf16.mxu0 0
    %935 = vmatpush1.bf16.msra.mxu0 0
    %936 = vmatprep.subr.bf16.mxu0 0
    %937 = vmatpush1.bf16.msra.mxu0 0
    %938 = vmatprep.subr.bf16.mxu0 0
    %939 = vmatpush1.bf16.msra.mxu0 0
    %940 = vmatprep.subr.bf16.mxu0 0
    %941 = vmatpush1.bf16.msra.mxu0 0
    %942 = vmatprep.subr.bf16.mxu0 0
    %943 = vmatpush1.bf16.msra.mxu0 %v317
    %944 = vmatprep.subr.bf16.mxu0 0
    %945 = vmatpush1.bf16.msra.mxu0 %v316
    %946 = vmatprep.subr.bf16.mxu0 0
    %947 = vmatpush2.bf16.msra.mxu0 0
    %948 = vmatprep.subr.bf16.mxu0 0
    %949 = vmatpush2.bf16.msra.mxu0 0
    %950 = vmatprep.subr.bf16.mxu0 0
    %951 = vmatpush2.bf16.msra.mxu0 0
    %952 = vmatprep.subr.bf16.mxu0 0
    %953 = vmatpush2.bf16.msra.mxu0 0
    %954 = vmatprep.subr.bf16.mxu0 0
    %955 = vmatpush2.bf16.msra.mxu0 0
    %956 = vmatprep.subr.bf16.mxu0 0
    %957 = vmatpush2.bf16.msra.mxu0 0
    %958 = vmatprep.subr.bf16.mxu0 0
    %959 = vmatpush2.bf16.msra.mxu0 0
    %960 = vmatprep.subr.bf16.mxu0 0
    %961 = vmatpush2.bf16.msra.mxu0 0
    %962 = vmatprep.mubr.bf16.mxu0 0
    %963 = vmatmul.mubr.bf16.gmra.mxu0 %v768
    %v964 = vpop.f32.mrf.mxu0
    %v965 = vadd.f32 %v324, %v964
    %v966 = vpop.f32.mrf.mxu0
    %v967 = vpop.f32.mrf.mxu0
    %v968 = vpop.f32.mrf.mxu0
    %969 = vdwg.mxu0
    %970 = vmatprep.subr.bf16.mxu0 0
    %971 = vmatpush1.bf16.msra.mxu0 0
    %972 = vmatprep.subr.bf16.mxu0 0
    %973 = vmatpush1.bf16.msra.mxu0 0
    %974 = vmatprep.subr.bf16.mxu0 0
    %975 = vmatpush1.bf16.msra.mxu0 0
    %976 = vmatprep.subr.bf16.mxu0 0
    %977 = vmatpush1.bf16.msra.mxu0 0
    %978 = vmatprep.subr.bf16.mxu0 0
    %979 = vmatpush1.bf16.msra.mxu0 0
    %980 = vmatprep.subr.bf16.mxu0 0
    %981 = vmatpush1.bf16.msra.mxu0 0
    %982 = vmatprep.subr.bf16.mxu0 0
    %983 = vmatpush1.bf16.msra.mxu0 %v372
    %984 = vmatprep.subr.bf16.mxu0 0
    %985 = vmatpush1.bf16.msra.mxu0 %v371
    %986 = vmatprep.subr.bf16.mxu0 0
    %987 = vmatpush2.bf16.msra.mxu0 0
    %988 = vmatprep.subr.bf16.mxu0 0
    %989 = vmatpush2.bf16.msra.mxu0 0
    %990 = vmatprep.subr.bf16.mxu0 0
    %991 = vmatpush2.bf16.msra.mxu0 0
    %992 = vmatprep.subr.bf16.mxu0 0
    %993 = vmatpush2.bf16.msra.mxu0 0
    %994 = vmatprep.subr.bf16.mxu0 0
    %995 = vmatpush2.bf16.msra.mxu0 0
    %996 = vmatprep.subr.bf16.mxu0 0
    %997 = vmatpush2.bf16.msra.mxu0 0
    %998 = vmatprep.subr.bf16.mxu0 0
    %999 = vmatpush2.bf16.msra.mxu0 0
    %1000 = vmatprep.subr.bf16.mxu0 0
    %1001 = vmatpush2.bf16.msra.mxu0 0
    %1002 = vmatprep.mubr.bf16.mxu0 0
    %1003 = vmatmul.mubr.bf16.gmra.mxu0 %v768
    %v1004 = vpop.f32.mrf.mxu0
    %v1005 = vadd.f32 %v379, %v1004
    %v1006 = vpop.f32.mrf.mxu0
    %v1007 = vpop.f32.mrf.mxu0
    %v1008 = vpop.f32.mrf.mxu0
    %1009 = vdwg.mxu0
    %1010 = vmatprep.subr.bf16.mxu0 0
    %1011 = vmatpush1.bf16.msra.mxu0 0
    %1012 = vmatprep.subr.bf16.mxu0 0
    %1013 = vmatpush1.bf16.msra.mxu0 0
    %1014 = vmatprep.subr.bf16.mxu0 0
    %1015 = vmatpush1.bf16.msra.mxu0 0
    %1016 = vmatprep.subr.bf16.mxu0 0
    %1017 = vmatpush1.bf16.msra.mxu0 0
    %1018 = vmatprep.subr.bf16.mxu0 0
    %1019 = vmatpush1.bf16.msra.mxu0 0
    %1020 = vmatprep.subr.bf16.mxu0 0
    %1021 = vmatpush1.bf16.msra.mxu0 0
    %1022 = vmatprep.subr.bf16.mxu0 0
    %1023 = vmatpush1.bf16.msra.mxu0 %v427
    %1024 = vmatprep.subr.bf16.mxu0 0
    %1025 = vmatpush1.bf16.msra.mxu0 %v426
    %1026 = vmatprep.subr.bf16.mxu0 0
    %1027 = vmatpush2.bf16.msra.mxu0 0
    %1028 = vmatprep.subr.bf16.mxu0 0
    %1029 = vmatpush2.bf16.msra.mxu0 0
    %1030 = vmatprep.subr.bf16.mxu0 0
    %1031 = vmatpush2.bf16.msra.mxu0 0
    %1032 = vmatprep.subr.bf16.mxu0 0
    %1033 = vmatpush2.bf16.msra.mxu0 0
    %1034 = vmatprep.subr.bf16.mxu0 0
    %1035 = vmatpush2.bf16.msra.mxu0 0
    %1036 = vmatprep.subr.bf16.mxu0 0
    %1037 = vmatpush2.bf16.msra.mxu0 0
    %1038 = vmatprep.subr.bf16.mxu0 0
    %1039 = vmatpush2.bf16.msra.mxu0 0
    %1040 = vmatprep.subr.bf16.mxu0 0
    %1041 = vmatpush2.bf16.msra.mxu0 0
    %1042 = vmatprep.mubr.bf16.mxu0 0
    %1043 = vmatmul.mubr.bf16.gmra.mxu0 %v768
    %v1044 = vpop.f32.mrf.mxu0
    %v1045 = vadd.f32 %v434, %v1044
    %v1046 = vpop.f32.mrf.mxu0
    %v1047 = vpop.f32.mrf.mxu0
    %v1048 = vpop.f32.mrf.mxu0
    %1049 = vdwg.mxu0
    %1050 = vmatprep.subr.bf16.mxu0 0
    %1051 = vmatpush1.bf16.msra.mxu0 0
    %1052 = vmatprep.subr.bf16.mxu0 0
    %1053 = vmatpush1.bf16.msra.mxu0 0
    %1054 = vmatprep.subr.bf16.mxu0 0
    %1055 = vmatpush1.bf16.msra.mxu0 0
    %1056 = vmatprep.subr.bf16.mxu0 0
    %1057 = vmatpush1.bf16.msra.mxu0 0
    %1058 = vmatprep.subr.bf16.mxu0 0
    %1059 = vmatpush1.bf16.msra.mxu0 0
    %1060 = vmatprep.subr.bf16.mxu0 0
    %1061 = vmatpush1.bf16.msra.mxu0 0
    %1062 = vmatprep.subr.bf16.mxu0 0
    %1063 = vmatpush1.bf16.msra.mxu0 %v482
    %1064 = vmatprep.subr.bf16.mxu0 0
    %1065 = vmatpush1.bf16.msra.mxu0 %v481
    %1066 = vmatprep.subr.bf16.mxu0 0
    %1067 = vmatpush2.bf16.msra.mxu0 0
    %1068 = vmatprep.subr.bf16.mxu0 0
    %1069 = vmatpush2.bf16.msra.mxu0 0
    %1070 = vmatprep.subr.bf16.mxu0 0
    %1071 = vmatpush2.bf16.msra.mxu0 0
    %1072 = vmatprep.subr.bf16.mxu0 0
    %1073 = vmatpush2.bf16.msra.mxu0 0
    %1074 = vmatprep.subr.bf16.mxu0 0
    %1075 = vmatpush2.bf16.msra.mxu0 0
    %1076 = vmatprep.subr.bf16.mxu0 0
    %1077 = vmatpush2.bf16.msra.mxu0 0
    %1078 = vmatprep.subr.bf16.mxu0 0
    %1079 = vmatpush2.bf16.msra.mxu0 0
    %1080 = vmatprep.subr.bf16.mxu0 0
    %1081 = vmatpush2.bf16.msra.mxu0 0
    %1082 = vmatprep.mubr.bf16.mxu0 0
    %1083 = vmatmul.mubr.bf16.gmra.mxu0 %v768
    %v1084 = vpop.f32.mrf.mxu0
    %v1085 = vadd.f32 %v489, %v1084
    %v1086 = vpop.f32.mrf.mxu0
    %v1087 = vpop.f32.mrf.mxu0
    %v1088 = vpop.f32.mrf.mxu0
    %1089 = vdwg.mxu0
    %1090 = vmatprep.subr.bf16.mxu0 0
    %1091 = vmatpush1.bf16.msra.mxu0 0
    %1092 = vmatprep.subr.bf16.mxu0 0
    %1093 = vmatpush1.bf16.msra.mxu0 0
    %1094 = vmatprep.subr.bf16.mxu0 0
    %1095 = vmatpush1.bf16.msra.mxu0 0
    %1096 = vmatprep.subr.bf16.mxu0 0
    %1097 = vmatpush1.bf16.msra.mxu0 0
    %1098 = vmatprep.subr.bf16.mxu0 0
    %1099 = vmatpush1.bf16.msra.mxu0 0
    %1100 = vmatprep.subr.bf16.mxu0 0
    %1101 = vmatpush1.bf16.msra.mxu0 0
    %1102 = vmatprep.subr.bf16.mxu0 0
    %1103 = vmatpush1.bf16.msra.mxu0 %v537
    %1104 = vmatprep.subr.bf16.mxu0 0
    %1105 = vmatpush1.bf16.msra.mxu0 %v536
    %1106 = vmatprep.subr.bf16.mxu0 0
    %1107 = vmatpush2.bf16.msra.mxu0 0
    %1108 = vmatprep.subr.bf16.mxu0 0
    %1109 = vmatpush2.bf16.msra.mxu0 0
    %1110 = vmatprep.subr.bf16.mxu0 0
    %1111 = vmatpush2.bf16.msra.mxu0 0
    %1112 = vmatprep.subr.bf16.mxu0 0
    %1113 = vmatpush2.bf16.msra.mxu0 0
    %1114 = vmatprep.subr.bf16.mxu0 0
    %1115 = vmatpush2.bf16.msra.mxu0 0
    %1116 = vmatprep.subr.bf16.mxu0 0
    %1117 = vmatpush2.bf16.msra.mxu0 0
    %1118 = vmatprep.subr.bf16.mxu0 0
    %1119 = vmatpush2.bf16.msra.mxu0 0
    %1120 = vmatprep.subr.bf16.mxu0 0
    %1121 = vmatpush2.bf16.msra.mxu0 0
    %1122 = vmatprep.mubr.bf16.mxu0 0
    %1123 = vmatmul.mubr.bf16.gmra.mxu0 %v768
    %v1124 = vpop.f32.mrf.mxu0
    %v1125 = vadd.f32 %v544, %v1124
    %v1126 = vpop.f32.mrf.mxu0
    %v1127 = vpop.f32.mrf.mxu0
    %v1128 = vpop.f32.mrf.mxu0
    %1129 = vdwg.mxu0
    %1130 = vmatprep.subr.bf16.mxu0 0
    %1131 = vmatpush1.bf16.msra.mxu0 0
    %1132 = vmatprep.subr.bf16.mxu0 0
    %1133 = vmatpush1.bf16.msra.mxu0 0
    %1134 = vmatprep.subr.bf16.mxu0 0
    %1135 = vmatpush1.bf16.msra.mxu0 0
    %1136 = vmatprep.subr.bf16.mxu0 0
    %1137 = vmatpush1.bf16.msra.mxu0 0
    %1138 = vmatprep.subr.bf16.mxu0 0
    %1139 = vmatpush1.bf16.msra.mxu0 0
    %1140 = vmatprep.subr.bf16.mxu0 0
    %1141 = vmatpush1.bf16.msra.mxu0 0
    %1142 = vmatprep.subr.bf16.mxu0 0
    %1143 = vmatpush1.bf16.msra.mxu0 %v592
    %1144 = vmatprep.subr.bf16.mxu0 0
    %1145 = vmatpush1.bf16.msra.mxu0 %v591
    %1146 = vmatprep.subr.bf16.mxu0 0
    %1147 = vmatpush2.bf16.msra.mxu0 0
    %1148 = vmatprep.subr.bf16.mxu0 0
    %1149 = vmatpush2.bf16.msra.mxu0 0
    %1150 = vmatprep.subr.bf16.mxu0 0
    %1151 = vmatpush2.bf16.msra.mxu0 0
    %1152 = vmatprep.subr.bf16.mxu0 0
    %1153 = vmatpush2.bf16.msra.mxu0 0
    %1154 = vmatprep.subr.bf16.mxu0 0
    %1155 = vmatpush2.bf16.msra.mxu0 0
    %1156 = vmatprep.subr.bf16.mxu0 0
    %1157 = vmatpush2.bf16.msra.mxu0 0
    %1158 = vmatprep.subr.bf16.mxu0 0
    %1159 = vmatpush2.bf16.msra.mxu0 0
    %1160 = vmatprep.subr.bf16.mxu0 0
    %1161 = vmatpush2.bf16.msra.mxu0 0
    %1162 = vmatprep.mubr.bf16.mxu0 0
    %1163 = vmatmul.mubr.bf16.gmra.mxu0 %v768
    %v1164 = vpop.f32.mrf.mxu0
    %v1165 = vadd.f32 %v599, %v1164
    %v1166 = vpop.f32.mrf.mxu0
    %v1167 = vpop.f32.mrf.mxu0
    %v1168 = vpop.f32.mrf.mxu0
    %1169 = vdwg.mxu0
    %1170 = vmatprep.subr.bf16.mxu0 0
    %1171 = vmatpush1.bf16.msra.mxu0 0
    %1172 = vmatprep.subr.bf16.mxu0 0
    %1173 = vmatpush1.bf16.msra.mxu0 0
    %1174 = vmatprep.subr.bf16.mxu0 0
    %1175 = vmatpush1.bf16.msra.mxu0 0
    %1176 = vmatprep.subr.bf16.mxu0 0
    %1177 = vmatpush1.bf16.msra.mxu0 0
    %1178 = vmatprep.subr.bf16.mxu0 0
    %1179 = vmatpush1.bf16.msra.mxu0 0
    %1180 = vmatprep.subr.bf16.mxu0 0
    %1181 = vmatpush1.bf16.msra.mxu0 0
    %1182 = vmatprep.subr.bf16.mxu0 0
    %1183 = vmatpush1.bf16.msra.mxu0 %v647
    %1184 = vmatprep.subr.bf16.mxu0 0
    %1185 = vmatpush1.bf16.msra.mxu0 %v646
    %1186 = vmatprep.subr.bf16.mxu0 0
    %1187 = vmatpush2.bf16.msra.mxu0 0
    %1188 = vmatprep.subr.bf16.mxu0 0
    %1189 = vmatpush2.bf16.msra.mxu0 0
    %1190 = vmatprep.subr.bf16.mxu0 0
    %1191 = vmatpush2.bf16.msra.mxu0 0
    %1192 = vmatprep.subr.bf16.mxu0 0
    %1193 = vmatpush2.bf16.msra.mxu0 0
    %1194 = vmatprep.subr.bf16.mxu0 0
    %1195 = vmatpush2.bf16.msra.mxu0 0
    %1196 = vmatprep.subr.bf16.mxu0 0
    %1197 = vmatpush2.bf16.msra.mxu0 0
    %1198 = vmatprep.subr.bf16.mxu0 0
    %1199 = vmatpush2.bf16.msra.mxu0 0
    %1200 = vmatprep.subr.bf16.mxu0 0
    %1201 = vmatpush2.bf16.msra.mxu0 0
    %1202 = vmatprep.mubr.bf16.mxu0 0
    %1203 = vmatmul.mubr.bf16.gmra.mxu0 %v768
    %v1204 = vpop.f32.mrf.mxu0
    %v1205 = vadd.f32 %v654, %v1204
    %v1206 = vpop.f32.mrf.mxu0
    %v1207 = vpop.f32.mrf.mxu0
    %v1208 = vpop.f32.mrf.mxu0
    %1209 = vdwg.mxu0
    %1210 = vmatprep.subr.bf16.mxu0 0
    %1211 = vmatpush1.bf16.msra.mxu0 0
    %1212 = vmatprep.subr.bf16.mxu0 0
    %1213 = vmatpush1.bf16.msra.mxu0 0
    %1214 = vmatprep.subr.bf16.mxu0 0
    %1215 = vmatpush1.bf16.msra.mxu0 0
    %1216 = vmatprep.subr.bf16.mxu0 0
    %1217 = vmatpush1.bf16.msra.mxu0 0
    %1218 = vmatprep.subr.bf16.mxu0 0
    %1219 = vmatpush1.bf16.msra.mxu0 0
    %1220 = vmatprep.subr.bf16.mxu0 0
    %1221 = vmatpush1.bf16.msra.mxu0 0
    %1222 = vmatprep.subr.bf16.mxu0 0
    %1223 = vmatpush1.bf16.msra.mxu0 %v702
    %1224 = vmatprep.subr.bf16.mxu0 0
    %1225 = vmatpush1.bf16.msra.mxu0 %v701
    %1226 = vmatprep.subr.bf16.mxu0 0
    %1227 = vmatpush2.bf16.msra.mxu0 0
    %1228 = vmatprep.subr.bf16.mxu0 0
    %1229 = vmatpush2.bf16.msra.mxu0 0
    %1230 = vmatprep.subr.bf16.mxu0 0
    %1231 = vmatpush2.bf16.msra.mxu0 0
    %1232 = vmatprep.subr.bf16.mxu0 0
    %1233 = vmatpush2.bf16.msra.mxu0 0
    %1234 = vmatprep.subr.bf16.mxu0 0
    %1235 = vmatpush2.bf16.msra.mxu0 0
    %1236 = vmatprep.subr.bf16.mxu0 0
    %1237 = vmatpush2.bf16.msra.mxu0 0
    %1238 = vmatprep.subr.bf16.mxu0 0
    %1239 = vmatpush2.bf16.msra.mxu0 0
    %1240 = vmatprep.subr.bf16.mxu0 0
    %1241 = vmatpush2.bf16.msra.mxu0 0
    %1242 = vmatprep.mubr.bf16.mxu0 0
    %1243 = vmatmul.mubr.bf16.gmra.mxu0 %v768
    %v1244 = vpop.f32.mrf.mxu0
    %v1245 = vadd.f32 %v709, %v1244
    %v1246 = vpop.f32.mrf.mxu0
    %v1247 = vpop.f32.mrf.mxu0
    %v1248 = vpop.f32.mrf.mxu0
    %1249 = vdwg.mxu0
    %v1250 = vpack.c.bf16 %v145, %v145
    %v1251 = vpack.c.bf16 %v306, %v306
    %v1252 = vpack.c.bf16 %v471, %v471
    %v1253 = vpack.c.bf16 %v636, %v636
    %v1254 = vpack.c.bf16 %v805, %v805
    %v1255 = vpack.c.bf16 %v925, %v925
    %v1256 = vpack.c.bf16 %v1045, %v1045
    %v1257 = vpack.c.bf16 %v1165, %v1165
    %v1258 = vpack.c.bf16 %v198, %v198
    %v1259 = vpack.c.bf16 %v361, %v361
    %v1260 = vpack.c.bf16 %v526, %v526
    %v1261 = vpack.c.bf16 %v691, %v691
    %v1262 = vpack.c.bf16 %v845, %v845
    %v1263 = vpack.c.bf16 %v965, %v965
    %v1264 = vpack.c.bf16 %v1085, %v1085
    %v1265 = vpack.c.bf16 %v1205, %v1205
    %vm1266 = vcmask 64512
    %v1268 = vsel %vm1266, %v1250, 0
    %v1271 = vsel %vm1266, %v1258, 0
    %1273 = vmatprep.subr.bf16.mxu0 0
    %1274 = vmatpush1.bf16.xpose.msra.mxu0 0
    %1275 = vmatprep.subr.bf16.mxu0 0
    %1276 = vmatpush1.bf16.xpose.msra.mxu0 0
    %1277 = vmatprep.subr.bf16.mxu0 0
    %1278 = vmatpush1.bf16.xpose.msra.mxu0 0
    %1279 = vmatprep.subr.bf16.mxu0 0
    %1280 = vmatpush1.bf16.xpose.msra.mxu0 0
    %1281 = vmatprep.subr.bf16.mxu0 0
    %1282 = vmatpush1.bf16.xpose.msra.mxu0 0
    %1283 = vmatprep.subr.bf16.mxu0 0
    %1284 = vmatpush1.bf16.xpose.msra.mxu0 0
    %1285 = vmatprep.subr.bf16.mxu0 0
    %1286 = vmatpush1.bf16.xpose.msra.mxu0 0
    %1287 = vmatprep.subr.bf16.mxu0 0
    %1288 = vmatpush1.bf16.xpose.msra.mxu0 %v1271
    %1289 = vmatprep.subr.bf16.mxu0 0
    %1290 = vmatpush2.bf16.xpose.msra.mxu0 0
    %1291 = vmatprep.subr.bf16.mxu0 0
    %1292 = vmatpush2.bf16.xpose.msra.mxu0 0
    %1293 = vmatprep.subr.bf16.mxu0 0
    %1294 = vmatpush2.bf16.xpose.msra.mxu0 0
    %1295 = vmatprep.subr.bf16.mxu0 0
    %1296 = vmatpush2.bf16.xpose.msra.mxu0 0
    %1297 = vmatprep.subr.bf16.mxu0 0
    %1298 = vmatpush2.bf16.xpose.msra.mxu0 0
    %1299 = vmatprep.subr.bf16.mxu0 0
    %1300 = vmatpush2.bf16.xpose.msra.mxu0 0
    %1301 = vmatprep.subr.bf16.mxu0 0
    %1302 = vmatpush2.bf16.xpose.msra.mxu0 0
    %1303 = vmatprep.subr.bf16.mxu0 0
    %1304 = vmatpush2.bf16.xpose.msra.mxu0 0
    %1305 = vmatprep.mubr.bf16.mxu0 0
    %1306 = vmatmul.mubr.bf16.gmra.mxu0 %v1268
    %v1307 = vpop.f32.mrf.mxu0
    %v1308 = vadd.f32 0.0, %v1307
    %v1309 = vpop.f32.mrf.mxu0
    %v1310 = vpop.f32.mrf.mxu0
    %v1311 = vpop.f32.mrf.mxu0
    %1312 = vdwg.mxu0
    %v1314 = vsel %vm1266, %v1251, 0
    %v1317 = vsel %vm1266, %v1259, 0
    %1319 = vmatprep.subr.bf16.mxu0 0
    %1320 = vmatpush1.bf16.xpose.msra.mxu0 0
    %1321 = vmatprep.subr.bf16.mxu0 0
    %1322 = vmatpush1.bf16.xpose.msra.mxu0 0
    %1323 = vmatprep.subr.bf16.mxu0 0
    %1324 = vmatpush1.bf16.xpose.msra.mxu0 0
    %1325 = vmatprep.subr.bf16.mxu0 0
    %1326 = vmatpush1.bf16.xpose.msra.mxu0 0
    %1327 = vmatprep.subr.bf16.mxu0 0
    %1328 = vmatpush1.bf16.xpose.msra.mxu0 0
    %1329 = vmatprep.subr.bf16.mxu0 0
    %1330 = vmatpush1.bf16.xpose.msra.mxu0 0
    %1331 = vmatprep.subr.bf16.mxu0 0
    %1332 = vmatpush1.bf16.xpose.msra.mxu0 0
    %1333 = vmatprep.subr.bf16.mxu0 0
    %1334 = vmatpush1.bf16.xpose.msra.mxu0 %v1317
    %1335 = vmatprep.subr.bf16.mxu0 0
    %1336 = vmatpush2.bf16.xpose.msra.mxu0 0
    %1337 = vmatprep.subr.bf16.mxu0 0
    %1338 = vmatpush2.bf16.xpose.msra.mxu0 0
    %1339 = vmatprep.subr.bf16.mxu0 0
    %1340 = vmatpush2.bf16.xpose.msra.mxu0 0
    %1341 = vmatprep.subr.bf16.mxu0 0
    %1342 = vmatpush2.bf16.xpose.msra.mxu0 0
    %1343 = vmatprep.subr.bf16.mxu0 0
    %1344 = vmatpush2.bf16.xpose.msra.mxu0 0
    %1345 = vmatprep.subr.bf16.mxu0 0
    %1346 = vmatpush2.bf16.xpose.msra.mxu0 0
    %1347 = vmatprep.subr.bf16.mxu0 0
    %1348 = vmatpush2.bf16.xpose.msra.mxu0 0
    %1349 = vmatprep.subr.bf16.mxu0 0
    %1350 = vmatpush2.bf16.xpose.msra.mxu0 0
    %1351 = vmatprep.mubr.bf16.mxu0 0
    %1352 = vmatmul.mubr.bf16.gmra.mxu0 %v1314
    %v1353 = vpop.f32.mrf.mxu0
    %v1354 = vadd.f32 0.0, %v1353
    %v1355 = vpop.f32.mrf.mxu0
    %v1356 = vpop.f32.mrf.mxu0
    %v1357 = vpop.f32.mrf.mxu0
    %1358 = vdwg.mxu0
    %v1360 = vsel %vm1266, %v1252, 0
    %v1363 = vsel %vm1266, %v1260, 0
    %1365 = vmatprep.subr.bf16.mxu0 0
    %1366 = vmatpush1.bf16.xpose.msra.mxu0 0
    %1367 = vmatprep.subr.bf16.mxu0 0
    %1368 = vmatpush1.bf16.xpose.msra.mxu0 0
    %1369 = vmatprep.subr.bf16.mxu0 0
    %1370 = vmatpush1.bf16.xpose.msra.mxu0 0
    %1371 = vmatprep.subr.bf16.mxu0 0
    %1372 = vmatpush1.bf16.xpose.msra.mxu0 0
    %1373 = vmatprep.subr.bf16.mxu0 0
    %1374 = vmatpush1.bf16.xpose.msra.mxu0 0
    %1375 = vmatprep.subr.bf16.mxu0 0
    %1376 = vmatpush1.bf16.xpose.msra.mxu0 0
    %1377 = vmatprep.subr.bf16.mxu0 0
    %1378 = vmatpush1.bf16.xpose.msra.mxu0 0
    %1379 = vmatprep.subr.bf16.mxu0 0
    %1380 = vmatpush1.bf16.xpose.msra.mxu0 %v1363
    %1381 = vmatprep.subr.bf16.mxu0 0
    %1382 = vmatpush2.bf16.xpose.msra.mxu0 0
    %1383 = vmatprep.subr.bf16.mxu0 0
    %1384 = vmatpush2.bf16.xpose.msra.mxu0 0
    %1385 = vmatprep.subr.bf16.mxu0 0
    %1386 = vmatpush2.bf16.xpose.msra.mxu0 0
    %1387 = vmatprep.subr.bf16.mxu0 0
    %1388 = vmatpush2.bf16.xpose.msra.mxu0 0
    %1389 = vmatprep.subr.bf16.mxu0 0
    %1390 = vmatpush2.bf16.xpose.msra.mxu0 0
    %1391 = vmatprep.subr.bf16.mxu0 0
    %1392 = vmatpush2.bf16.xpose.msra.mxu0 0
    %1393 = vmatprep.subr.bf16.mxu0 0
    %1394 = vmatpush2.bf16.xpose.msra.mxu0 0
    %1395 = vmatprep.subr.bf16.mxu0 0
    %1396 = vmatpush2.bf16.xpose.msra.mxu0 0
    %1397 = vmatprep.mubr.bf16.mxu0 0
    %1398 = vmatmul.mubr.bf16.gmra.mxu0 %v1360
    %v1399 = vpop.f32.mrf.mxu0
    %v1400 = vadd.f32 0.0, %v1399
    %v1401 = vpop.f32.mrf.mxu0
    %v1402 = vpop.f32.mrf.mxu0
    %v1403 = vpop.f32.mrf.mxu0
    %1404 = vdwg.mxu0
    %v1406 = vsel %vm1266, %v1253, 0
    %v1409 = vsel %vm1266, %v1261, 0
    %1411 = vmatprep.subr.bf16.mxu0 0
    %1412 = vmatpush1.bf16.xpose.msra.mxu0 0
    %1413 = vmatprep.subr.bf16.mxu0 0
    %1414 = vmatpush1.bf16.xpose.msra.mxu0 0
    %1415 = vmatprep.subr.bf16.mxu0 0
    %1416 = vmatpush1.bf16.xpose.msra.mxu0 0
    %1417 = vmatprep.subr.bf16.mxu0 0
    %1418 = vmatpush1.bf16.xpose.msra.mxu0 0
    %1419 = vmatprep.subr.bf16.mxu0 0
    %1420 = vmatpush1.bf16.xpose.msra.mxu0 0
    %1421 = vmatprep.subr.bf16.mxu0 0
    %1422 = vmatpush1.bf16.xpose.msra.mxu0 0
    %1423 = vmatprep.subr.bf16.mxu0 0
    %1424 = vmatpush1.bf16.xpose.msra.mxu0 0
    %1425 = vmatprep.subr.bf16.mxu0 0
    %1426 = vmatpush1.bf16.xpose.msra.mxu0 %v1409
    %1427 = vmatprep.subr.bf16.mxu0 0
    %1428 = vmatpush2.bf16.xpose.msra.mxu0 0
    %1429 = vmatprep.subr.bf16.mxu0 0
    %1430 = vmatpush2.bf16.xpose.msra.mxu0 0
    %1431 = vmatprep.subr.bf16.mxu0 0
    %1432 = vmatpush2.bf16.xpose.msra.mxu0 0
    %1433 = vmatprep.subr.bf16.mxu0 0
    %1434 = vmatpush2.bf16.xpose.msra.mxu0 0
    %1435 = vmatprep.subr.bf16.mxu0 0
    %1436 = vmatpush2.bf16.xpose.msra.mxu0 0
    %1437 = vmatprep.subr.bf16.mxu0 0
    %1438 = vmatpush2.bf16.xpose.msra.mxu0 0
    %1439 = vmatprep.subr.bf16.mxu0 0
    %1440 = vmatpush2.bf16.xpose.msra.mxu0 0
    %1441 = vmatprep.subr.bf16.mxu0 0
    %1442 = vmatpush2.bf16.xpose.msra.mxu0 0
    %1443 = vmatprep.mubr.bf16.mxu0 0
    %1444 = vmatmul.mubr.bf16.gmra.mxu0 %v1406
    %v1445 = vpop.f32.mrf.mxu0
    %v1446 = vadd.f32 0.0, %v1445
    %v1447 = vpop.f32.mrf.mxu0
    %v1448 = vpop.f32.mrf.mxu0
    %v1449 = vpop.f32.mrf.mxu0
    %1450 = vdwg.mxu0
    %v1452 = vsel %vm1266, %v1254, 0
    %v1455 = vsel %vm1266, %v1262, 0
    %1457 = vmatprep.subr.bf16.mxu0 0
    %1458 = vmatpush1.bf16.xpose.msra.mxu0 0
    %1459 = vmatprep.subr.bf16.mxu0 0
    %1460 = vmatpush1.bf16.xpose.msra.mxu0 0
    %1461 = vmatprep.subr.bf16.mxu0 0
    %1462 = vmatpush1.bf16.xpose.msra.mxu0 0
    %1463 = vmatprep.subr.bf16.mxu0 0
    %1464 = vmatpush1.bf16.xpose.msra.mxu0 0
    %1465 = vmatprep.subr.bf16.mxu0 0
    %1466 = vmatpush1.bf16.xpose.msra.mxu0 0
    %1467 = vmatprep.subr.bf16.mxu0 0
    %1468 = vmatpush1.bf16.xpose.msra.mxu0 0
    %1469 = vmatprep.subr.bf16.mxu0 0
    %1470 = vmatpush1.bf16.xpose.msra.mxu0 0
    %1471 = vmatprep.subr.bf16.mxu0 0
    %1472 = vmatpush1.bf16.xpose.msra.mxu0 %v1455
    %1473 = vmatprep.subr.bf16.mxu0 0
    %1474 = vmatpush2.bf16.xpose.msra.mxu0 0
    %1475 = vmatprep.subr.bf16.mxu0 0
    %1476 = vmatpush2.bf16.xpose.msra.mxu0 0
    %1477 = vmatprep.subr.bf16.mxu0 0
    %1478 = vmatpush2.bf16.xpose.msra.mxu0 0
    %1479 = vmatprep.subr.bf16.mxu0 0
    %1480 = vmatpush2.bf16.xpose.msra.mxu0 0
    %1481 = vmatprep.subr.bf16.mxu0 0
    %1482 = vmatpush2.bf16.xpose.msra.mxu0 0
    %1483 = vmatprep.subr.bf16.mxu0 0
    %1484 = vmatpush2.bf16.xpose.msra.mxu0 0
    %1485 = vmatprep.subr.bf16.mxu0 0
    %1486 = vmatpush2.bf16.xpose.msra.mxu0 0
    %1487 = vmatprep.subr.bf16.mxu0 0
    %1488 = vmatpush2.bf16.xpose.msra.mxu0 0
    %1489 = vmatprep.mubr.bf16.mxu0 0
    %1490 = vmatmul.mubr.bf16.gmra.mxu0 %v1452
    %v1491 = vpop.f32.mrf.mxu0
    %v1492 = vadd.f32 0.0, %v1491
    %v1493 = vpop.f32.mrf.mxu0
    %v1494 = vpop.f32.mrf.mxu0
    %v1495 = vpop.f32.mrf.mxu0
    %1496 = vdwg.mxu0
    %v1498 = vsel %vm1266, %v1255, 0
    %v1501 = vsel %vm1266, %v1263, 0
    %1503 = vmatprep.subr.bf16.mxu0 0
    %1504 = vmatpush1.bf16.xpose.msra.mxu0 0
    %1505 = vmatprep.subr.bf16.mxu0 0
    %1506 = vmatpush1.bf16.xpose.msra.mxu0 0
    %1507 = vmatprep.subr.bf16.mxu0 0
    %1508 = vmatpush1.bf16.xpose.msra.mxu0 0
    %1509 = vmatprep.subr.bf16.mxu0 0
    %1510 = vmatpush1.bf16.xpose.msra.mxu0 0
    %1511 = vmatprep.subr.bf16.mxu0 0
    %1512 = vmatpush1.bf16.xpose.msra.mxu0 0
    %1513 = vmatprep.subr.bf16.mxu0 0
    %1514 = vmatpush1.bf16.xpose.msra.mxu0 0
    %1515 = vmatprep.subr.bf16.mxu0 0
    %1516 = vmatpush1.bf16.xpose.msra.mxu0 0
    %1517 = vmatprep.subr.bf16.mxu0 0
    %1518 = vmatpush1.bf16.xpose.msra.mxu0 %v1501
    %1519 = vmatprep.subr.bf16.mxu0 0
    %1520 = vmatpush2.bf16.xpose.msra.mxu0 0
    %1521 = vmatprep.subr.bf16.mxu0 0
    %1522 = vmatpush2.bf16.xpose.msra.mxu0 0
    %1523 = vmatprep.subr.bf16.mxu0 0
    %1524 = vmatpush2.bf16.xpose.msra.mxu0 0
    %1525 = vmatprep.subr.bf16.mxu0 0
    %1526 = vmatpush2.bf16.xpose.msra.mxu0 0
    %1527 = vmatprep.subr.bf16.mxu0 0
    %1528 = vmatpush2.bf16.xpose.msra.mxu0 0
    %1529 = vmatprep.subr.bf16.mxu0 0
    %1530 = vmatpush2.bf16.xpose.msra.mxu0 0
    %1531 = vmatprep.subr.bf16.mxu0 0
    %1532 = vmatpush2.bf16.xpose.msra.mxu0 0
    %1533 = vmatprep.subr.bf16.mxu0 0
    %1534 = vmatpush2.bf16.xpose.msra.mxu0 0
    %1535 = vmatprep.mubr.bf16.mxu0 0
    %1536 = vmatmul.mubr.bf16.gmra.mxu0 %v1498
    %v1537 = vpop.f32.mrf.mxu0
    %v1538 = vadd.f32 0.0, %v1537
    %v1539 = vpop.f32.mrf.mxu0
    %v1540 = vpop.f32.mrf.mxu0
    %v1541 = vpop.f32.mrf.mxu0
    %1542 = vdwg.mxu0
    %v1544 = vsel %vm1266, %v1256, 0
    %v1547 = vsel %vm1266, %v1264, 0
    %1549 = vmatprep.subr.bf16.mxu0 0
    %1550 = vmatpush1.bf16.xpose.msra.mxu0 0
    %1551 = vmatprep.subr.bf16.mxu0 0
    %1552 = vmatpush1.bf16.xpose.msra.mxu0 0
    %1553 = vmatprep.subr.bf16.mxu0 0
    %1554 = vmatpush1.bf16.xpose.msra.mxu0 0
    %1555 = vmatprep.subr.bf16.mxu0 0
    %1556 = vmatpush1.bf16.xpose.msra.mxu0 0
    %1557 = vmatprep.subr.bf16.mxu0 0
    %1558 = vmatpush1.bf16.xpose.msra.mxu0 0
    %1559 = vmatprep.subr.bf16.mxu0 0
    %1560 = vmatpush1.bf16.xpose.msra.mxu0 0
    %1561 = vmatprep.subr.bf16.mxu0 0
    %1562 = vmatpush1.bf16.xpose.msra.mxu0 0
    %1563 = vmatprep.subr.bf16.mxu0 0
    %1564 = vmatpush1.bf16.xpose.msra.mxu0 %v1547
    %1565 = vmatprep.subr.bf16.mxu0 0
    %1566 = vmatpush2.bf16.xpose.msra.mxu0 0
    %1567 = vmatprep.subr.bf16.mxu0 0
    %1568 = vmatpush2.bf16.xpose.msra.mxu0 0
    %1569 = vmatprep.subr.bf16.mxu0 0
    %1570 = vmatpush2.bf16.xpose.msra.mxu0 0
    %1571 = vmatprep.subr.bf16.mxu0 0
    %1572 = vmatpush2.bf16.xpose.msra.mxu0 0
    %1573 = vmatprep.subr.bf16.mxu0 0
    %1574 = vmatpush2.bf16.xpose.msra.mxu0 0
    %1575 = vmatprep.subr.bf16.mxu0 0
    %1576 = vmatpush2.bf16.xpose.msra.mxu0 0
    %1577 = vmatprep.subr.bf16.mxu0 0
    %1578 = vmatpush2.bf16.xpose.msra.mxu0 0
    %1579 = vmatprep.subr.bf16.mxu0 0
    %1580 = vmatpush2.bf16.xpose.msra.mxu0 0
    %1581 = vmatprep.mubr.bf16.mxu0 0
    %1582 = vmatmul.mubr.bf16.gmra.mxu0 %v1544
    %v1583 = vpop.f32.mrf.mxu0
    %v1584 = vadd.f32 0.0, %v1583
    %v1585 = vpop.f32.mrf.mxu0
    %v1586 = vpop.f32.mrf.mxu0
    %v1587 = vpop.f32.mrf.mxu0
    %1588 = vdwg.mxu0
    %v1590 = vsel %vm1266, %v1257, 0
    %v1593 = vsel %vm1266, %v1265, 0
    %1595 = vmatprep.subr.bf16.mxu0 0
    %1596 = vmatpush1.bf16.xpose.msra.mxu0 0
    %1597 = vmatprep.subr.bf16.mxu0 0
    %1598 = vmatpush1.bf16.xpose.msra.mxu0 0
    %1599 = vmatprep.subr.bf16.mxu0 0
    %1600 = vmatpush1.bf16.xpose.msra.mxu0 0
    %1601 = vmatprep.subr.bf16.mxu0 0
    %1602 = vmatpush1.bf16.xpose.msra.mxu0 0
    %1603 = vmatprep.subr.bf16.mxu0 0
    %1604 = vmatpush1.bf16.xpose.msra.mxu0 0
    %1605 = vmatprep.subr.bf16.mxu0 0
    %1606 = vmatpush1.bf16.xpose.msra.mxu0 0
    %1607 = vmatprep.subr.bf16.mxu0 0
    %1608 = vmatpush1.bf16.xpose.msra.mxu0 0
    %1609 = vmatprep.subr.bf16.mxu0 0
    %1610 = vmatpush1.bf16.xpose.msra.mxu0 %v1593
    %1611 = vmatprep.subr.bf16.mxu0 0
    %1612 = vmatpush2.bf16.xpose.msra.mxu0 0
    %1613 = vmatprep.subr.bf16.mxu0 0
    %1614 = vmatpush2.bf16.xpose.msra.mxu0 0
    %1615 = vmatprep.subr.bf16.mxu0 0
    %1616 = vmatpush2.bf16.xpose.msra.mxu0 0
    %1617 = vmatprep.subr.bf16.mxu0 0
    %1618 = vmatpush2.bf16.xpose.msra.mxu0 0
    %1619 = vmatprep.subr.bf16.mxu0 0
    %1620 = vmatpush2.bf16.xpose.msra.mxu0 0
    %1621 = vmatprep.subr.bf16.mxu0 0
    %1622 = vmatpush2.bf16.xpose.msra.mxu0 0
    %1623 = vmatprep.subr.bf16.mxu0 0
    %1624 = vmatpush2.bf16.xpose.msra.mxu0 0
    %1625 = vmatprep.subr.bf16.mxu0 0
    %1626 = vmatpush2.bf16.xpose.msra.mxu0 0
    %1627 = vmatprep.mubr.bf16.mxu0 0
    %1628 = vmatmul.mubr.bf16.gmra.mxu0 %v1590
    %v1629 = vpop.f32.mrf.mxu0
    %v1630 = vadd.f32 0.0, %v1629
    %v1631 = vpop.f32.mrf.mxu0
    %v1632 = vpop.f32.mrf.mxu0
    %v1633 = vpop.f32.mrf.mxu0
    %1634 = vdwg.mxu0
    %v1635 = vmul.f32 %v1308, 0.35355338
    %v1636 = vmul.f32 %v1354, 0.35355338
    %v1637 = vmul.f32 %v1400, 0.35355338
    %v1638 = vmul.f32 %v1446, 0.35355338
    %v1639 = vmul.f32 %v1492, 0.35355338
    %v1640 = vmul.f32 %v1538, 0.35355338
    %v1641 = vmul.f32 %v1584, 0.35355338
    %v1642 = vmul.f32 %v1630, 0.35355338
    %v1643 = vsel %vm1266, %v1635, -inf
    %1644 = vmax.xlane.f32.xlu0 %v1643
    %v1645 = vpop.xlane.xlu0 %1644
    %v1646 = vsel %vm1266, %v1636, -inf
    %1647 = vmax.xlane.f32.xlu0 %v1646
    %v1648 = vpop.xlane.xlu0 %1647
    %v1649 = vsel %vm1266, %v1637, -inf
    %1650 = vmax.xlane.f32.xlu0 %v1649
    %v1651 = vpop.xlane.xlu0 %1650
    %v1652 = vsel %vm1266, %v1638, -inf
    %1653 = vmax.xlane.f32.xlu0 %v1652
    %v1654 = vpop.xlane.xlu0 %1653
    %v1655 = vsel %vm1266, %v1639, -inf
    %1656 = vmax.xlane.f32.xlu0 %v1655
    %v1657 = vpop.xlane.xlu0 %1656
    %v1658 = vsel %vm1266, %v1640, -inf
    %1659 = vmax.xlane.f32.xlu0 %v1658
    %v1660 = vpop.xlane.xlu0 %1659
    %v1661 = vsel %vm1266, %v1641, -inf
    %1662 = vmax.xlane.f32.xlu0 %v1661
    %v1663 = vpop.xlane.xlu0 %1662
    %v1664 = vsel %vm1266, %v1642, -inf
    %1665 = vmax.xlane.f32.xlu0 %v1664
    %v1666 = vpop.xlane.xlu0 %1665
    %v1667 = vsub.f32 %v1635, %v1645
    %v1668 = vsub.f32 %v1636, %v1648
    %v1669 = vsub.f32 %v1637, %v1651
    %v1670 = vsub.f32 %v1638, %v1654
    %v1671 = vsub.f32 %v1639, %v1657
    %v1672 = vsub.f32 %v1640, %v1660
    %v1673 = vsub.f32 %v1641, %v1663
    %v1674 = vsub.f32 %v1642, %v1666
    %v1675 = vmul.f32 %v1667, 1.442695
    %v1676 = vpow.pop %v1675
    %v1677 = vmul.f32 %v1668, 1.442695
    %v1678 = vpow.pop %v1677
    %v1679 = vmul.f32 %v1669, 1.442695
    %v1680 = vpow.pop %v1679
    %v1681 = vmul.f32 %v1670, 1.442695
    %v1682 = vpow.pop %v1681
    %v1683 = vmul.f32 %v1671, 1.442695
    %v1684 = vpow.pop %v1683
    %v1685 = vmul.f32 %v1672, 1.442695
    %v1686 = vpow.pop %v1685
    %v1687 = vmul.f32 %v1673, 1.442695
    %v1688 = vpow.pop %v1687
    %v1689 = vmul.f32 %v1674, 1.442695
    %v1690 = vpow.pop %v1689
    %v1691 = vsel %vm1266, %v1676, 0.0
    %1692 = vadd.xlane.f32.xlu0 %v1691
    %v1693 = vpop.xlane.xlu0 %1692
    %v1694 = vsel %vm1266, %v1678, 0.0
    %1695 = vadd.xlane.f32.xlu0 %v1694
    %v1696 = vpop.xlane.xlu0 %1695
    %v1697 = vsel %vm1266, %v1680, 0.0
    %1698 = vadd.xlane.f32.xlu0 %v1697
    %v1699 = vpop.xlane.xlu0 %1698
    %v1700 = vsel %vm1266, %v1682, 0.0
    %1701 = vadd.xlane.f32.xlu0 %v1700
    %v1702 = vpop.xlane.xlu0 %1701
    %v1703 = vsel %vm1266, %v1684, 0.0
    %1704 = vadd.xlane.f32.xlu0 %v1703
    %v1705 = vpop.xlane.xlu0 %1704
    %v1706 = vsel %vm1266, %v1686, 0.0
    %1707 = vadd.xlane.f32.xlu0 %v1706
    %v1708 = vpop.xlane.xlu0 %1707
    %v1709 = vsel %vm1266, %v1688, 0.0
    %1710 = vadd.xlane.f32.xlu0 %v1709
    %v1711 = vpop.xlane.xlu0 %1710
    %v1712 = vsel %vm1266, %v1690, 0.0
    %1713 = vadd.xlane.f32.xlu0 %v1712
    %v1714 = vpop.xlane.xlu0 %1713
    %v1715 = vrcp.pop %v1693
    %v1716 = vrcp.pop %v1696
    %v1717 = vrcp.pop %v1699
    %v1718 = vrcp.pop %v1702
    %v1719 = vrcp.pop %v1705
    %v1720 = vrcp.pop %v1708
    %v1721 = vrcp.pop %v1711
    %v1722 = vrcp.pop %v1714
    %v1723 = vmul.f32 %v1676, %v1715
    %v1724 = vmul.f32 %v1678, %v1716
    %v1725 = vmul.f32 %v1680, %v1717
    %v1726 = vmul.f32 %v1682, %v1718
    %v1727 = vmul.f32 %v1684, %v1719
    %v1728 = vmul.f32 %v1686, %v1720
    %v1729 = vmul.f32 %v1688, %v1721
    %v1730 = vmul.f32 %v1690, %v1722
    %v1731 = vpack.c.bf16 %v1723, %v1723
    %v1732 = vpack.c.bf16 %v1724, %v1724
    %v1733 = vpack.c.bf16 %v1725, %v1725
    %v1734 = vpack.c.bf16 %v1726, %v1726
    %v1735 = vpack.c.bf16 %v1727, %v1727
    %v1736 = vpack.c.bf16 %v1728, %v1728
    %v1737 = vpack.c.bf16 %v1729, %v1729
    %v1738 = vpack.c.bf16 %v1730, %v1730
    %v1739 = vpack.c.bf16 %v251, %v251
    %v1740 = vpack.c.bf16 %v416, %v416
    %v1741 = vpack.c.bf16 %v581, %v581
    %v1742 = vpack.c.bf16 %v746, %v746
    %v1743 = vpack.c.bf16 %v885, %v885
    %v1744 = vpack.c.bf16 %v1005, %v1005
    %v1745 = vpack.c.bf16 %v1125, %v1125
    %v1746 = vpack.c.bf16 %v1245, %v1245
    %v1748 = vsel %vm1266, %v1731, 0
    %vm1750 = vcmask 1043456
    %v1752 = vsel %vm1750, %v1739, 0
    %1754 = vmatprep.subr.bf16.mxu0 0
    %1755 = vmatpush1.bf16.msra.mxu0 0
    %1756 = vmatprep.subr.bf16.mxu0 0
    %1757 = vmatpush1.bf16.msra.mxu0 0
    %1758 = vmatprep.subr.bf16.mxu0 0
    %1759 = vmatpush1.bf16.msra.mxu0 0
    %1760 = vmatprep.subr.bf16.mxu0 0
    %1761 = vmatpush1.bf16.msra.mxu0 0
    %1762 = vmatprep.subr.bf16.mxu0 0
    %1763 = vmatpush1.bf16.msra.mxu0 0
    %1764 = vmatprep.subr.bf16.mxu0 0
    %1765 = vmatpush1.bf16.msra.mxu0 0
    %1766 = vmatprep.subr.bf16.mxu0 0
    %1767 = vmatpush1.bf16.msra.mxu0 0
    %1768 = vmatprep.subr.bf16.mxu0 0
    %1769 = vmatpush1.bf16.msra.mxu0 %v1752
    %1770 = vmatprep.subr.bf16.mxu0 0
    %1771 = vmatpush2.bf16.msra.mxu0 0
    %1772 = vmatprep.subr.bf16.mxu0 0
    %1773 = vmatpush2.bf16.msra.mxu0 0
    %1774 = vmatprep.subr.bf16.mxu0 0
    %1775 = vmatpush2.bf16.msra.mxu0 0
    %1776 = vmatprep.subr.bf16.mxu0 0
    %1777 = vmatpush2.bf16.msra.mxu0 0
    %1778 = vmatprep.subr.bf16.mxu0 0
    %1779 = vmatpush2.bf16.msra.mxu0 0
    %1780 = vmatprep.subr.bf16.mxu0 0
    %1781 = vmatpush2.bf16.msra.mxu0 0
    %1782 = vmatprep.subr.bf16.mxu0 0
    %1783 = vmatpush2.bf16.msra.mxu0 0
    %1784 = vmatprep.subr.bf16.mxu0 0
    %1785 = vmatpush2.bf16.msra.mxu0 0
    %1786 = vmatprep.mubr.bf16.mxu0 0
    %1787 = vmatmul.mubr.bf16.gmra.mxu0 %v1748
    %v1788 = vpop.f32.mrf.mxu0
    %v1789 = vadd.f32 0.0, %v1788
    %v1790 = vpop.f32.mrf.mxu0
    %v1791 = vpop.f32.mrf.mxu0
    %v1792 = vpop.f32.mrf.mxu0
    %1793 = vdwg.mxu0
    %v1795 = vsel %vm1266, %v1732, 0
    %v1798 = vsel %vm1750, %v1740, 0
    %1800 = vmatprep.subr.bf16.mxu0 0
    %1801 = vmatpush1.bf16.msra.mxu0 0
    %1802 = vmatprep.subr.bf16.mxu0 0
    %1803 = vmatpush1.bf16.msra.mxu0 0
    %1804 = vmatprep.subr.bf16.mxu0 0
    %1805 = vmatpush1.bf16.msra.mxu0 0
    %1806 = vmatprep.subr.bf16.mxu0 0
    %1807 = vmatpush1.bf16.msra.mxu0 0
    %1808 = vmatprep.subr.bf16.mxu0 0
    %1809 = vmatpush1.bf16.msra.mxu0 0
    %1810 = vmatprep.subr.bf16.mxu0 0
    %1811 = vmatpush1.bf16.msra.mxu0 0
    %1812 = vmatprep.subr.bf16.mxu0 0
    %1813 = vmatpush1.bf16.msra.mxu0 0
    %1814 = vmatprep.subr.bf16.mxu0 0
    %1815 = vmatpush1.bf16.msra.mxu0 %v1798
    %1816 = vmatprep.subr.bf16.mxu0 0
    %1817 = vmatpush2.bf16.msra.mxu0 0
    %1818 = vmatprep.subr.bf16.mxu0 0
    %1819 = vmatpush2.bf16.msra.mxu0 0
    %1820 = vmatprep.subr.bf16.mxu0 0
    %1821 = vmatpush2.bf16.msra.mxu0 0
    %1822 = vmatprep.subr.bf16.mxu0 0
    %1823 = vmatpush2.bf16.msra.mxu0 0
    %1824 = vmatprep.subr.bf16.mxu0 0
    %1825 = vmatpush2.bf16.msra.mxu0 0
    %1826 = vmatprep.subr.bf16.mxu0 0
    %1827 = vmatpush2.bf16.msra.mxu0 0
    %1828 = vmatprep.subr.bf16.mxu0 0
    %1829 = vmatpush2.bf16.msra.mxu0 0
    %1830 = vmatprep.subr.bf16.mxu0 0
    %1831 = vmatpush2.bf16.msra.mxu0 0
    %1832 = vmatprep.mubr.bf16.mxu0 0
    %1833 = vmatmul.mubr.bf16.gmra.mxu0 %v1795
    %v1834 = vpop.f32.mrf.mxu0
    %v1835 = vadd.f32 0.0, %v1834
    %v1836 = vpop.f32.mrf.mxu0
    %v1837 = vpop.f32.mrf.mxu0
    %v1838 = vpop.f32.mrf.mxu0
    %1839 = vdwg.mxu0
    %v1841 = vsel %vm1266, %v1733, 0
    %v1844 = vsel %vm1750, %v1741, 0
    %1846 = vmatprep.subr.bf16.mxu0 0
    %1847 = vmatpush1.bf16.msra.mxu0 0
    %1848 = vmatprep.subr.bf16.mxu0 0
    %1849 = vmatpush1.bf16.msra.mxu0 0
    %1850 = vmatprep.subr.bf16.mxu0 0
    %1851 = vmatpush1.bf16.msra.mxu0 0
    %1852 = vmatprep.subr.bf16.mxu0 0
    %1853 = vmatpush1.bf16.msra.mxu0 0
    %1854 = vmatprep.subr.bf16.mxu0 0
    %1855 = vmatpush1.bf16.msra.mxu0 0
    %1856 = vmatprep.subr.bf16.mxu0 0
    %1857 = vmatpush1.bf16.msra.mxu0 0
    %1858 = vmatprep.subr.bf16.mxu0 0
    %1859 = vmatpush1.bf16.msra.mxu0 0
    %1860 = vmatprep.subr.bf16.mxu0 0
    %1861 = vmatpush1.bf16.msra.mxu0 %v1844
    %1862 = vmatprep.subr.bf16.mxu0 0
    %1863 = vmatpush2.bf16.msra.mxu0 0
    %1864 = vmatprep.subr.bf16.mxu0 0
    %1865 = vmatpush2.bf16.msra.mxu0 0
    %1866 = vmatprep.subr.bf16.mxu0 0
    %1867 = vmatpush2.bf16.msra.mxu0 0
    %1868 = vmatprep.subr.bf16.mxu0 0
    %1869 = vmatpush2.bf16.msra.mxu0 0
    %1870 = vmatprep.subr.bf16.mxu0 0
    %1871 = vmatpush2.bf16.msra.mxu0 0
    %1872 = vmatprep.subr.bf16.mxu0 0
    %1873 = vmatpush2.bf16.msra.mxu0 0
    %1874 = vmatprep.subr.bf16.mxu0 0
    %1875 = vmatpush2.bf16.msra.mxu0 0
    %1876 = vmatprep.subr.bf16.mxu0 0
    %1877 = vmatpush2.bf16.msra.mxu0 0
    %1878 = vmatprep.mubr.bf16.mxu0 0
    %1879 = vmatmul.mubr.bf16.gmra.mxu0 %v1841
    %v1880 = vpop.f32.mrf.mxu0
    %v1881 = vadd.f32 0.0, %v1880
    %v1882 = vpop.f32.mrf.mxu0
    %v1883 = vpop.f32.mrf.mxu0
    %v1884 = vpop.f32.mrf.mxu0
    %1885 = vdwg.mxu0
    %v1887 = vsel %vm1266, %v1734, 0
    %v1890 = vsel %vm1750, %v1742, 0
    %1892 = vmatprep.subr.bf16.mxu0 0
    %1893 = vmatpush1.bf16.msra.mxu0 0
    %1894 = vmatprep.subr.bf16.mxu0 0
    %1895 = vmatpush1.bf16.msra.mxu0 0
    %1896 = vmatprep.subr.bf16.mxu0 0
    %1897 = vmatpush1.bf16.msra.mxu0 0
    %1898 = vmatprep.subr.bf16.mxu0 0
    %1899 = vmatpush1.bf16.msra.mxu0 0
    %1900 = vmatprep.subr.bf16.mxu0 0
    %1901 = vmatpush1.bf16.msra.mxu0 0
    %1902 = vmatprep.subr.bf16.mxu0 0
    %1903 = vmatpush1.bf16.msra.mxu0 0
    %1904 = vmatprep.subr.bf16.mxu0 0
    %1905 = vmatpush1.bf16.msra.mxu0 0
    %1906 = vmatprep.subr.bf16.mxu0 0
    %1907 = vmatpush1.bf16.msra.mxu0 %v1890
    %1908 = vmatprep.subr.bf16.mxu0 0
    %1909 = vmatpush2.bf16.msra.mxu0 0
    %1910 = vmatprep.subr.bf16.mxu0 0
    %1911 = vmatpush2.bf16.msra.mxu0 0
    %1912 = vmatprep.subr.bf16.mxu0 0
    %1913 = vmatpush2.bf16.msra.mxu0 0
    %1914 = vmatprep.subr.bf16.mxu0 0
    %1915 = vmatpush2.bf16.msra.mxu0 0
    %1916 = vmatprep.subr.bf16.mxu0 0
    %1917 = vmatpush2.bf16.msra.mxu0 0
    %1918 = vmatprep.subr.bf16.mxu0 0
    %1919 = vmatpush2.bf16.msra.mxu0 0
    %1920 = vmatprep.subr.bf16.mxu0 0
    %1921 = vmatpush2.bf16.msra.mxu0 0
    %1922 = vmatprep.subr.bf16.mxu0 0
    %1923 = vmatpush2.bf16.msra.mxu0 0
    %1924 = vmatprep.mubr.bf16.mxu0 0
    %1925 = vmatmul.mubr.bf16.gmra.mxu0 %v1887
    %v1926 = vpop.f32.mrf.mxu0
    %v1927 = vadd.f32 0.0, %v1926
    %v1928 = vpop.f32.mrf.mxu0
    %v1929 = vpop.f32.mrf.mxu0
    %v1930 = vpop.f32.mrf.mxu0
    %1931 = vdwg.mxu0
    %v1933 = vsel %vm1266, %v1735, 0
    %v1936 = vsel %vm1750, %v1743, 0
    %1938 = vmatprep.subr.bf16.mxu0 0
    %1939 = vmatpush1.bf16.msra.mxu0 0
    %1940 = vmatprep.subr.bf16.mxu0 0
    %1941 = vmatpush1.bf16.msra.mxu0 0
    %1942 = vmatprep.subr.bf16.mxu0 0
    %1943 = vmatpush1.bf16.msra.mxu0 0
    %1944 = vmatprep.subr.bf16.mxu0 0
    %1945 = vmatpush1.bf16.msra.mxu0 0
    %1946 = vmatprep.subr.bf16.mxu0 0
    %1947 = vmatpush1.bf16.msra.mxu0 0
    %1948 = vmatprep.subr.bf16.mxu0 0
    %1949 = vmatpush1.bf16.msra.mxu0 0
    %1950 = vmatprep.subr.bf16.mxu0 0
    %1951 = vmatpush1.bf16.msra.mxu0 0
    %1952 = vmatprep.subr.bf16.mxu0 0
    %1953 = vmatpush1.bf16.msra.mxu0 %v1936
    %1954 = vmatprep.subr.bf16.mxu0 0
    %1955 = vmatpush2.bf16.msra.mxu0 0
    %1956 = vmatprep.subr.bf16.mxu0 0
    %1957 = vmatpush2.bf16.msra.mxu0 0
    %1958 = vmatprep.subr.bf16.mxu0 0
    %1959 = vmatpush2.bf16.msra.mxu0 0
    %1960 = vmatprep.subr.bf16.mxu0 0
    %1961 = vmatpush2.bf16.msra.mxu0 0
    %1962 = vmatprep.subr.bf16.mxu0 0
    %1963 = vmatpush2.bf16.msra.mxu0 0
    %1964 = vmatprep.subr.bf16.mxu0 0
    %1965 = vmatpush2.bf16.msra.mxu0 0
    %1966 = vmatprep.subr.bf16.mxu0 0
    %1967 = vmatpush2.bf16.msra.mxu0 0
    %1968 = vmatprep.subr.bf16.mxu0 0
    %1969 = vmatpush2.bf16.msra.mxu0 0
    %1970 = vmatprep.mubr.bf16.mxu0 0
    %1971 = vmatmul.mubr.bf16.gmra.mxu0 %v1933
    %v1972 = vpop.f32.mrf.mxu0
    %v1973 = vadd.f32 0.0, %v1972
    %v1974 = vpop.f32.mrf.mxu0
    %v1975 = vpop.f32.mrf.mxu0
    %v1976 = vpop.f32.mrf.mxu0
    %1977 = vdwg.mxu0
    %v1979 = vsel %vm1266, %v1736, 0
    %v1982 = vsel %vm1750, %v1744, 0
    %1984 = vmatprep.subr.bf16.mxu0 0
    %1985 = vmatpush1.bf16.msra.mxu0 0
    %1986 = vmatprep.subr.bf16.mxu0 0
    %1987 = vmatpush1.bf16.msra.mxu0 0
    %1988 = vmatprep.subr.bf16.mxu0 0
    %1989 = vmatpush1.bf16.msra.mxu0 0
    %1990 = vmatprep.subr.bf16.mxu0 0
    %1991 = vmatpush1.bf16.msra.mxu0 0
    %1992 = vmatprep.subr.bf16.mxu0 0
    %1993 = vmatpush1.bf16.msra.mxu0 0
    %1994 = vmatprep.subr.bf16.mxu0 0
    %1995 = vmatpush1.bf16.msra.mxu0 0
    %1996 = vmatprep.subr.bf16.mxu0 0
    %1997 = vmatpush1.bf16.msra.mxu0 0
    %1998 = vmatprep.subr.bf16.mxu0 0
    %1999 = vmatpush1.bf16.msra.mxu0 %v1982
    %2000 = vmatprep.subr.bf16.mxu0 0
    %2001 = vmatpush2.bf16.msra.mxu0 0
    %2002 = vmatprep.subr.bf16.mxu0 0
    %2003 = vmatpush2.bf16.msra.mxu0 0
    %2004 = vmatprep.subr.bf16.mxu0 0
    %2005 = vmatpush2.bf16.msra.mxu0 0
    %2006 = vmatprep.subr.bf16.mxu0 0
    %2007 = vmatpush2.bf16.msra.mxu0 0
    %2008 = vmatprep.subr.bf16.mxu0 0
    %2009 = vmatpush2.bf16.msra.mxu0 0
    %2010 = vmatprep.subr.bf16.mxu0 0
    %2011 = vmatpush2.bf16.msra.mxu0 0
    %2012 = vmatprep.subr.bf16.mxu0 0
    %2013 = vmatpush2.bf16.msra.mxu0 0
    %2014 = vmatprep.subr.bf16.mxu0 0
    %2015 = vmatpush2.bf16.msra.mxu0 0
    %2016 = vmatprep.mubr.bf16.mxu0 0
    %2017 = vmatmul.mubr.bf16.gmra.mxu0 %v1979
    %v2018 = vpop.f32.mrf.mxu0
    %v2019 = vadd.f32 0.0, %v2018
    %v2020 = vpop.f32.mrf.mxu0
    %v2021 = vpop.f32.mrf.mxu0
    %v2022 = vpop.f32.mrf.mxu0
    %2023 = vdwg.mxu0
    %v2025 = vsel %vm1266, %v1737, 0
    %v2028 = vsel %vm1750, %v1745, 0
    %2030 = vmatprep.subr.bf16.mxu0 0
    %2031 = vmatpush1.bf16.msra.mxu0 0
    %2032 = vmatprep.subr.bf16.mxu0 0
    %2033 = vmatpush1.bf16.msra.mxu0 0
    %2034 = vmatprep.subr.bf16.mxu0 0
    %2035 = vmatpush1.bf16.msra.mxu0 0
    %2036 = vmatprep.subr.bf16.mxu0 0
    %2037 = vmatpush1.bf16.msra.mxu0 0
    %2038 = vmatprep.subr.bf16.mxu0 0
    %2039 = vmatpush1.bf16.msra.mxu0 0
    %2040 = vmatprep.subr.bf16.mxu0 0
    %2041 = vmatpush1.bf16.msra.mxu0 0
    %2042 = vmatprep.subr.bf16.mxu0 0
    %2043 = vmatpush1.bf16.msra.mxu0 0
    %2044 = vmatprep.subr.bf16.mxu0 0
    %2045 = vmatpush1.bf16.msra.mxu0 %v2028
    %2046 = vmatprep.subr.bf16.mxu0 0
    %2047 = vmatpush2.bf16.msra.mxu0 0
    %2048 = vmatprep.subr.bf16.mxu0 0
    %2049 = vmatpush2.bf16.msra.mxu0 0
    %2050 = vmatprep.subr.bf16.mxu0 0
    %2051 = vmatpush2.bf16.msra.mxu0 0
    %2052 = vmatprep.subr.bf16.mxu0 0
    %2053 = vmatpush2.bf16.msra.mxu0 0
    %2054 = vmatprep.subr.bf16.mxu0 0
    %2055 = vmatpush2.bf16.msra.mxu0 0
    %2056 = vmatprep.subr.bf16.mxu0 0
    %2057 = vmatpush2.bf16.msra.mxu0 0
    %2058 = vmatprep.subr.bf16.mxu0 0
    %2059 = vmatpush2.bf16.msra.mxu0 0
    %2060 = vmatprep.subr.bf16.mxu0 0
    %2061 = vmatpush2.bf16.msra.mxu0 0
    %2062 = vmatprep.mubr.bf16.mxu0 0
    %2063 = vmatmul.mubr.bf16.gmra.mxu0 %v2025
    %v2064 = vpop.f32.mrf.mxu0
    %v2065 = vadd.f32 0.0, %v2064
    %v2066 = vpop.f32.mrf.mxu0
    %v2067 = vpop.f32.mrf.mxu0
    %v2068 = vpop.f32.mrf.mxu0
    %2069 = vdwg.mxu0
    %v2071 = vsel %vm1266, %v1738, 0
    %v2074 = vsel %vm1750, %v1746, 0
    %2076 = vmatprep.subr.bf16.mxu0 0
    %2077 = vmatpush1.bf16.msra.mxu0 0
    %2078 = vmatprep.subr.bf16.mxu0 0
    %2079 = vmatpush1.bf16.msra.mxu0 0
    %2080 = vmatprep.subr.bf16.mxu0 0
    %2081 = vmatpush1.bf16.msra.mxu0 0
    %2082 = vmatprep.subr.bf16.mxu0 0
    %2083 = vmatpush1.bf16.msra.mxu0 0
    %2084 = vmatprep.subr.bf16.mxu0 0
    %2085 = vmatpush1.bf16.msra.mxu0 0
    %2086 = vmatprep.subr.bf16.mxu0 0
    %2087 = vmatpush1.bf16.msra.mxu0 0
    %2088 = vmatprep.subr.bf16.mxu0 0
    %2089 = vmatpush1.bf16.msra.mxu0 0
    %2090 = vmatprep.subr.bf16.mxu0 0
    %2091 = vmatpush1.bf16.msra.mxu0 %v2074
    %2092 = vmatprep.subr.bf16.mxu0 0
    %2093 = vmatpush2.bf16.msra.mxu0 0
    %2094 = vmatprep.subr.bf16.mxu0 0
    %2095 = vmatpush2.bf16.msra.mxu0 0
    %2096 = vmatprep.subr.bf16.mxu0 0
    %2097 = vmatpush2.bf16.msra.mxu0 0
    %2098 = vmatprep.subr.bf16.mxu0 0
    %2099 = vmatpush2.bf16.msra.mxu0 0
    %2100 = vmatprep.subr.bf16.mxu0 0
    %2101 = vmatpush2.bf16.msra.mxu0 0
    %2102 = vmatprep.subr.bf16.mxu0 0
    %2103 = vmatpush2.bf16.msra.mxu0 0
    %2104 = vmatprep.subr.bf16.mxu0 0
    %2105 = vmatpush2.bf16.msra.mxu0 0
    %2106 = vmatprep.subr.bf16.mxu0 0
    %2107 = vmatpush2.bf16.msra.mxu0 0
    %2108 = vmatprep.mubr.bf16.mxu0 0
    %2109 = vmatmul.mubr.bf16.gmra.mxu0 %v2071
    %v2110 = vpop.f32.mrf.mxu0
    %v2111 = vadd.f32 0.0, %v2110
    %v2112 = vpop.f32.mrf.mxu0
    %v2113 = vpop.f32.mrf.mxu0
    %v2114 = vpop.f32.mrf.mxu0
    %2115 = vdwg.mxu0
    %v2116 = vld [vmem:[%s10] sm:$0x1]
    %v2117 = vpack.c.bf16 %v1789, %v1789
    %v2118 = vld [vmem:[%s9] sm:$0xff]
    %v2119 = vpack.c.bf16 %v2118, %v2118
    %v2121 = vsel %vm1266, %v2117, 0
    %v2124 = vsel %vm1750, %v2119, 0
    %2126 = vmatprep.subr.bf16.mxu0 0
    %2127 = vmatpush1.bf16.msra.mxu0 0
    %2128 = vmatprep.subr.bf16.mxu0 0
    %2129 = vmatpush1.bf16.msra.mxu0 0
    %2130 = vmatprep.subr.bf16.mxu0 0
    %2131 = vmatpush1.bf16.msra.mxu0 0
    %2132 = vmatprep.subr.bf16.mxu0 0
    %2133 = vmatpush1.bf16.msra.mxu0 0
    %2134 = vmatprep.subr.bf16.mxu0 0
    %2135 = vmatpush1.bf16.msra.mxu0 0
    %2136 = vmatprep.subr.bf16.mxu0 0
    %2137 = vmatpush1.bf16.msra.mxu0 0
    %2138 = vmatprep.subr.bf16.mxu0 0
    %2139 = vmatpush1.bf16.msra.mxu0 0
    %2140 = vmatprep.subr.bf16.mxu0 0
    %2141 = vmatpush1.bf16.msra.mxu0 %v2124
    %2142 = vmatprep.subr.bf16.mxu0 0
    %2143 = vmatpush2.bf16.msra.mxu0 0
    %2144 = vmatprep.subr.bf16.mxu0 0
    %2145 = vmatpush2.bf16.msra.mxu0 0
    %2146 = vmatprep.subr.bf16.mxu0 0
    %2147 = vmatpush2.bf16.msra.mxu0 0
    %2148 = vmatprep.subr.bf16.mxu0 0
    %2149 = vmatpush2.bf16.msra.mxu0 0
    %2150 = vmatprep.subr.bf16.mxu0 0
    %2151 = vmatpush2.bf16.msra.mxu0 0
    %2152 = vmatprep.subr.bf16.mxu0 0
    %2153 = vmatpush2.bf16.msra.mxu0 0
    %2154 = vmatprep.subr.bf16.mxu0 0
    %2155 = vmatpush2.bf16.msra.mxu0 0
    %2156 = vmatprep.subr.bf16.mxu0 0
    %2157 = vmatpush2.bf16.msra.mxu0 0
    %2158 = vmatprep.mubr.bf16.mxu0 0
    %2159 = vmatmul.mubr.bf16.gmra.mxu0 %v2121
    %v2160 = vpop.f32.mrf.mxu0
    %v2161 = vadd.f32 0.0, %v2160
    %v2162 = vpop.f32.mrf.mxu0
    %v2163 = vpop.f32.mrf.mxu0
    %v2164 = vpop.f32.mrf.mxu0
    %2165 = vdwg.mxu0
    %v2167 = vlaneseq
    %v2168 = vshrl.u32 %v2167, 7
    %v2169 = vsub.s32 0, %v2168
    %v2170 = vrot.slane %v2116, %v2169
    %v2172 = vadd.f32 %v2170, %v2161
    %v2173 = vpack.c.bf16 %v1835, %v1835
    %s2174 = scalar_lea.vmem %s9, 8
    %v2175 = vld [vmem:[%s2174] sm:$0xff]
    %v2176 = vpack.c.bf16 %v2175, %v2175
    %v2178 = vsel %vm1266, %v2173, 0
    %v2181 = vsel %vm1750, %v2176, 0
    %2183 = vmatprep.subr.bf16.mxu0 0
    %2184 = vmatpush1.bf16.msra.mxu0 0
    %2185 = vmatprep.subr.bf16.mxu0 0
    %2186 = vmatpush1.bf16.msra.mxu0 0
    %2187 = vmatprep.subr.bf16.mxu0 0
    %2188 = vmatpush1.bf16.msra.mxu0 0
    %2189 = vmatprep.subr.bf16.mxu0 0
    %2190 = vmatpush1.bf16.msra.mxu0 0
    %2191 = vmatprep.subr.bf16.mxu0 0
    %2192 = vmatpush1.bf16.msra.mxu0 0
    %2193 = vmatprep.subr.bf16.mxu0 0
    %2194 = vmatpush1.bf16.msra.mxu0 0
    %2195 = vmatprep.subr.bf16.mxu0 0
    %2196 = vmatpush1.bf16.msra.mxu0 0
    %2197 = vmatprep.subr.bf16.mxu0 0
    %2198 = vmatpush1.bf16.msra.mxu0 %v2181
    %2199 = vmatprep.subr.bf16.mxu0 0
    %2200 = vmatpush2.bf16.msra.mxu0 0
    %2201 = vmatprep.subr.bf16.mxu0 0
    %2202 = vmatpush2.bf16.msra.mxu0 0
    %2203 = vmatprep.subr.bf16.mxu0 0
    %2204 = vmatpush2.bf16.msra.mxu0 0
    %2205 = vmatprep.subr.bf16.mxu0 0
    %2206 = vmatpush2.bf16.msra.mxu0 0
    %2207 = vmatprep.subr.bf16.mxu0 0
    %2208 = vmatpush2.bf16.msra.mxu0 0
    %2209 = vmatprep.subr.bf16.mxu0 0
    %2210 = vmatpush2.bf16.msra.mxu0 0
    %2211 = vmatprep.subr.bf16.mxu0 0
    %2212 = vmatpush2.bf16.msra.mxu0 0
    %2213 = vmatprep.subr.bf16.mxu0 0
    %2214 = vmatpush2.bf16.msra.mxu0 0
    %2215 = vmatprep.mubr.bf16.mxu0 0
    %2216 = vmatmul.mubr.bf16.gmra.mxu0 %v2178
    %v2217 = vpop.f32.mrf.mxu0
    %v2218 = vadd.f32 0.0, %v2217
    %v2219 = vpop.f32.mrf.mxu0
    %v2220 = vpop.f32.mrf.mxu0
    %v2221 = vpop.f32.mrf.mxu0
    %2222 = vdwg.mxu0
    %v2223 = vadd.f32 %v2172, %v2218
    %v2224 = vpack.c.bf16 %v1881, %v1881
    %s2225 = scalar_lea.vmem %s9, 16
    %v2226 = vld [vmem:[%s2225] sm:$0xff]
    %v2227 = vpack.c.bf16 %v2226, %v2226
    %v2229 = vsel %vm1266, %v2224, 0
    %v2232 = vsel %vm1750, %v2227, 0
    %2234 = vmatprep.subr.bf16.mxu0 0
    %2235 = vmatpush1.bf16.msra.mxu0 0
    %2236 = vmatprep.subr.bf16.mxu0 0
    %2237 = vmatpush1.bf16.msra.mxu0 0
    %2238 = vmatprep.subr.bf16.mxu0 0
    %2239 = vmatpush1.bf16.msra.mxu0 0
    %2240 = vmatprep.subr.bf16.mxu0 0
    %2241 = vmatpush1.bf16.msra.mxu0 0
    %2242 = vmatprep.subr.bf16.mxu0 0
    %2243 = vmatpush1.bf16.msra.mxu0 0
    %2244 = vmatprep.subr.bf16.mxu0 0
    %2245 = vmatpush1.bf16.msra.mxu0 0
    %2246 = vmatprep.subr.bf16.mxu0 0
    %2247 = vmatpush1.bf16.msra.mxu0 0
    %2248 = vmatprep.subr.bf16.mxu0 0
    %2249 = vmatpush1.bf16.msra.mxu0 %v2232
    %2250 = vmatprep.subr.bf16.mxu0 0
    %2251 = vmatpush2.bf16.msra.mxu0 0
    %2252 = vmatprep.subr.bf16.mxu0 0
    %2253 = vmatpush2.bf16.msra.mxu0 0
    %2254 = vmatprep.subr.bf16.mxu0 0
    %2255 = vmatpush2.bf16.msra.mxu0 0
    %2256 = vmatprep.subr.bf16.mxu0 0
    %2257 = vmatpush2.bf16.msra.mxu0 0
    %2258 = vmatprep.subr.bf16.mxu0 0
    %2259 = vmatpush2.bf16.msra.mxu0 0
    %2260 = vmatprep.subr.bf16.mxu0 0
    %2261 = vmatpush2.bf16.msra.mxu0 0
    %2262 = vmatprep.subr.bf16.mxu0 0
    %2263 = vmatpush2.bf16.msra.mxu0 0
    %2264 = vmatprep.subr.bf16.mxu0 0
    %2265 = vmatpush2.bf16.msra.mxu0 0
    %2266 = vmatprep.mubr.bf16.mxu0 0
    %2267 = vmatmul.mubr.bf16.gmra.mxu0 %v2229
    %v2268 = vpop.f32.mrf.mxu0
    %v2269 = vadd.f32 0.0, %v2268
    %v2270 = vpop.f32.mrf.mxu0
    %v2271 = vpop.f32.mrf.mxu0
    %v2272 = vpop.f32.mrf.mxu0
    %2273 = vdwg.mxu0
    %v2274 = vadd.f32 %v2223, %v2269
    %v2275 = vpack.c.bf16 %v1927, %v1927
    %s2276 = scalar_lea.vmem %s9, 24
    %v2277 = vld [vmem:[%s2276] sm:$0xff]
    %v2278 = vpack.c.bf16 %v2277, %v2277
    %v2280 = vsel %vm1266, %v2275, 0
    %v2283 = vsel %vm1750, %v2278, 0
    %2285 = vmatprep.subr.bf16.mxu0 0
    %2286 = vmatpush1.bf16.msra.mxu0 0
    %2287 = vmatprep.subr.bf16.mxu0 0
    %2288 = vmatpush1.bf16.msra.mxu0 0
    %2289 = vmatprep.subr.bf16.mxu0 0
    %2290 = vmatpush1.bf16.msra.mxu0 0
    %2291 = vmatprep.subr.bf16.mxu0 0
    %2292 = vmatpush1.bf16.msra.mxu0 0
    %2293 = vmatprep.subr.bf16.mxu0 0
    %2294 = vmatpush1.bf16.msra.mxu0 0
    %2295 = vmatprep.subr.bf16.mxu0 0
    %2296 = vmatpush1.bf16.msra.mxu0 0
    %2297 = vmatprep.subr.bf16.mxu0 0
    %2298 = vmatpush1.bf16.msra.mxu0 0
    %2299 = vmatprep.subr.bf16.mxu0 0
    %2300 = vmatpush1.bf16.msra.mxu0 %v2283
    %2301 = vmatprep.subr.bf16.mxu0 0
    %2302 = vmatpush2.bf16.msra.mxu0 0
    %2303 = vmatprep.subr.bf16.mxu0 0
    %2304 = vmatpush2.bf16.msra.mxu0 0
    %2305 = vmatprep.subr.bf16.mxu0 0
    %2306 = vmatpush2.bf16.msra.mxu0 0
    %2307 = vmatprep.subr.bf16.mxu0 0
    %2308 = vmatpush2.bf16.msra.mxu0 0
    %2309 = vmatprep.subr.bf16.mxu0 0
    %2310 = vmatpush2.bf16.msra.mxu0 0
    %2311 = vmatprep.subr.bf16.mxu0 0
    %2312 = vmatpush2.bf16.msra.mxu0 0
    %2313 = vmatprep.subr.bf16.mxu0 0
    %2314 = vmatpush2.bf16.msra.mxu0 0
    %2315 = vmatprep.subr.bf16.mxu0 0
    %2316 = vmatpush2.bf16.msra.mxu0 0
    %2317 = vmatprep.mubr.bf16.mxu0 0
    %2318 = vmatmul.mubr.bf16.gmra.mxu0 %v2280
    %v2319 = vpop.f32.mrf.mxu0
    %v2320 = vadd.f32 0.0, %v2319
    %v2321 = vpop.f32.mrf.mxu0
    %v2322 = vpop.f32.mrf.mxu0
    %v2323 = vpop.f32.mrf.mxu0
    %2324 = vdwg.mxu0
    %v2325 = vadd.f32 %v2274, %v2320
    %v2326 = vadd.f32 %v58, %v2325
    %v2327 = vsel %vm64, %v2326, 0.0
    %2328 = vadd.xlane.f32.xlu0 %v2327
    %v2329 = vpop.xlane.xlu0 %2328
    %v2330 = vmul.f32 %v2329, %v68
    %v2331 = vsub.f32 %v2326, %v2330
    %v2332 = vmul.f32 %v2331, %v2331
    %v2333 = vsel %vm64, %v2332, 0.0
    %2334 = vadd.xlane.f32.xlu0 %v2333
    %v2335 = vpop.xlane.xlu0 %2334
    %v2336 = vmul.f32 %v2335, %v68
    %v2337 = vadd.f32 %v2336, 1e-05
    %v2338 = vrsqrt.pop %v2337
    %v2339 = vmul.f32 %v2331, %v2338
    %v2341 = vlaneseq
    %v2342 = vshrl.u32 %v2341, 7
    %v2343 = vsub.s32 0, %v2342
    %v2344 = vrot.slane %v62, %v2343
    %v2346 = vmul.f32 %v2339, %v2344
    %v2348 = vlaneseq
    %v2349 = vshrl.u32 %v2348, 7
    %v2350 = vsub.s32 0, %v2349
    %v2351 = vrot.slane %v63, %v2350
    %v2353 = vadd.f32 %v2346, %v2351
    %v2354 = vpack.c.bf16 %v2353, %v2353
    %v2355 = vld [vmem:[%s13] sm:$0xff]
    %v2356 = vld [vmem:[%s13 + $0x8] sm:$0xff]
    %v2357 = vld [vmem:[%s13 + $0x10] sm:$0xff]
    %v2358 = vld [vmem:[%s13 + $0x18] sm:$0xff]
    %v2359 = vpack.c.bf16 %v2356, %v2355
    %v2360 = vpack.c.bf16 %v2358, %v2357
    %v2361 = vld [vmem:[%s14] sm:$0x1]
    %v2363 = vlaneseq
    %v2364 = vshrl.u32 %v2363, 7
    %v2365 = vsub.s32 0, %v2364
    %v2366 = vrot.slane %v2361, %v2365
    %v2369 = vsel %vm64, %v2354, 0
    %2371 = vmatprep.subr.bf16.mxu0 0
    %2372 = vmatpush1.bf16.msra.mxu0 0
    %2373 = vmatprep.subr.bf16.mxu0 0
    %2374 = vmatpush1.bf16.msra.mxu0 0
    %2375 = vmatprep.subr.bf16.mxu0 0
    %2376 = vmatpush1.bf16.msra.mxu0 0
    %2377 = vmatprep.subr.bf16.mxu0 0
    %2378 = vmatpush1.bf16.msra.mxu0 0
    %2379 = vmatprep.subr.bf16.mxu0 0
    %2380 = vmatpush1.bf16.msra.mxu0 0
    %2381 = vmatprep.subr.bf16.mxu0 0
    %2382 = vmatpush1.bf16.msra.mxu0 0
    %2383 = vmatprep.subr.bf16.mxu0 0
    %2384 = vmatpush1.bf16.msra.mxu0 %v2360
    %2385 = vmatprep.subr.bf16.mxu0 0
    %2386 = vmatpush1.bf16.msra.mxu0 %v2359
    %2387 = vmatprep.subr.bf16.mxu0 0
    %2388 = vmatpush2.bf16.msra.mxu0 0
    %2389 = vmatprep.subr.bf16.mxu0 0
    %2390 = vmatpush2.bf16.msra.mxu0 0
    %2391 = vmatprep.subr.bf16.mxu0 0
    %2392 = vmatpush2.bf16.msra.mxu0 0
    %2393 = vmatprep.subr.bf16.mxu0 0
    %2394 = vmatpush2.bf16.msra.mxu0 0
    %2395 = vmatprep.subr.bf16.mxu0 0
    %2396 = vmatpush2.bf16.msra.mxu0 0
    %2397 = vmatprep.subr.bf16.mxu0 0
    %2398 = vmatpush2.bf16.msra.mxu0 0
    %2399 = vmatprep.subr.bf16.mxu0 0
    %2400 = vmatpush2.bf16.msra.mxu0 0
    %2401 = vmatprep.subr.bf16.mxu0 0
    %2402 = vmatpush2.bf16.msra.mxu0 0
    %2403 = vmatprep.mubr.bf16.mxu0 0
    %2404 = vmatmul.mubr.bf16.gmra.mxu0 %v2369
    %v2405 = vpop.f32.mrf.mxu0
    %v2406 = vadd.f32 %v2366, %v2405
    %v2407 = vpop.f32.mrf.mxu0
    %v2408 = vpop.f32.mrf.mxu0
    %v2409 = vpop.f32.mrf.mxu0
    %2410 = vdwg.mxu0
    %v2411 = vmul.f32 %v2406, %v2406
    %v2412 = vmul.f32 %v2406, %v2411
    %v2413 = vmul.f32 %v2412, 0.044715
    %v2414 = vadd.f32 %v2406, %v2413
    %v2415 = vmul.f32 %v2414, 0.7978846
    %v2416 = vtanh.pop %v2415
    %v2417 = vadd.f32 %v2416, 1.0
    %v2418 = vmul.f32 %v2417, 0.5
    %v2419 = vmul.f32 %v2406, %v2418
    %v2420 = vpack.c.bf16 %v2419, %v2419
    %v2421 = vld [vmem:[%s15] sm:$0xff]
    %v2422 = vld [vmem:[%s15 + $0x8] sm:$0xff]
    %v2423 = vld [vmem:[%s15 + $0x10] sm:$0xff]
    %v2424 = vld [vmem:[%s15 + $0x18] sm:$0xff]
    %v2425 = vld [vmem:[%s15 + $0x20] sm:$0xff]
    %v2426 = vld [vmem:[%s15 + $0x28] sm:$0xff]
    %v2427 = vld [vmem:[%s15 + $0x30] sm:$0xff]
    %v2428 = vld [vmem:[%s15 + $0x38] sm:$0xff]
    %v2429 = vld [vmem:[%s15 + $0x40] sm:$0xff]
    %v2430 = vld [vmem:[%s15 + $0x48] sm:$0xff]
    %v2431 = vld [vmem:[%s15 + $0x50] sm:$0xff]
    %v2432 = vld [vmem:[%s15 + $0x58] sm:$0xff]
    %v2433 = vld [vmem:[%s15 + $0x60] sm:$0xff]
    %v2434 = vld [vmem:[%s15 + $0x68] sm:$0xff]
    %v2435 = vld [vmem:[%s15 + $0x70] sm:$0xff]
    %v2436 = vld [vmem:[%s15 + $0x78] sm:$0xff]
    %v2437 = vpack.c.bf16 %v2422, %v2421
    %v2438 = vpack.c.bf16 %v2424, %v2423
    %v2439 = vpack.c.bf16 %v2426, %v2425
    %v2440 = vpack.c.bf16 %v2428, %v2427
    %v2441 = vpack.c.bf16 %v2430, %v2429
    %v2442 = vpack.c.bf16 %v2432, %v2431
    %v2443 = vpack.c.bf16 %v2434, %v2433
    %v2444 = vpack.c.bf16 %v2436, %v2435
    %v2445 = vld [vmem:[%s16] sm:$0x1]
    %v2447 = vlaneseq
    %v2448 = vshrl.u32 %v2447, 7
    %v2449 = vsub.s32 0, %v2448
    %v2450 = vrot.slane %v2445, %v2449
    %2452 = vmatprep.subr.bf16.mxu0 0
    %2453 = vmatpush1.bf16.msra.mxu0 %v2444
    %2454 = vmatprep.subr.bf16.mxu0 0
    %2455 = vmatpush1.bf16.msra.mxu0 %v2443
    %2456 = vmatprep.subr.bf16.mxu0 0
    %2457 = vmatpush1.bf16.msra.mxu0 %v2442
    %2458 = vmatprep.subr.bf16.mxu0 0
    %2459 = vmatpush1.bf16.msra.mxu0 %v2441
    %2460 = vmatprep.subr.bf16.mxu0 0
    %2461 = vmatpush1.bf16.msra.mxu0 %v2440
    %2462 = vmatprep.subr.bf16.mxu0 0
    %2463 = vmatpush1.bf16.msra.mxu0 %v2439
    %2464 = vmatprep.subr.bf16.mxu0 0
    %2465 = vmatpush1.bf16.msra.mxu0 %v2438
    %2466 = vmatprep.subr.bf16.mxu0 0
    %2467 = vmatpush1.bf16.msra.mxu0 %v2437
    %2468 = vmatprep.subr.bf16.mxu0 0
    %2469 = vmatpush2.bf16.msra.mxu0 0
    %2470 = vmatprep.subr.bf16.mxu0 0
    %2471 = vmatpush2.bf16.msra.mxu0 0
    %2472 = vmatprep.subr.bf16.mxu0 0
    %2473 = vmatpush2.bf16.msra.mxu0 0
    %2474 = vmatprep.subr.bf16.mxu0 0
    %2475 = vmatpush2.bf16.msra.mxu0 0
    %2476 = vmatprep.subr.bf16.mxu0 0
    %2477 = vmatpush2.bf16.msra.mxu0 0
    %2478 = vmatprep.subr.bf16.mxu0 0
    %2479 = vmatpush2.bf16.msra.mxu0 0
    %2480 = vmatprep.subr.bf16.mxu0 0
    %2481 = vmatpush2.bf16.msra.mxu0 0
    %2482 = vmatprep.subr.bf16.mxu0 0
    %2483 = vmatpush2.bf16.msra.mxu0 0
    %2484 = vmatprep.mubr.bf16.mxu0 0
    %2485 = vmatmul.mubr.bf16.gmra.mxu0 %v2420
    %v2486 = vpop.f32.mrf.mxu0
    %v2487 = vadd.f32 %v2450, %v2486
    %v2488 = vpop.f32.mrf.mxu0
    %v2489 = vpop.f32.mrf.mxu0
    %v2490 = vpop.f32.mrf.mxu0
    %2491 = vdwg.mxu0
    %v2492 = vadd.f32 %v2326, %v2487
    %v2493 = vpack.c.bf16 %v1973, %v1973
    %v2495 = vsel %vm1266, %v2493, 0
    %2497 = vmatprep.subr.bf16.mxu0 0
    %2498 = vmatpush1.bf16.msra.mxu0 0
    %2499 = vmatprep.subr.bf16.mxu0 0
    %2500 = vmatpush1.bf16.msra.mxu0 0
    %2501 = vmatprep.subr.bf16.mxu0 0
    %2502 = vmatpush1.bf16.msra.mxu0 0
    %2503 = vmatprep.subr.bf16.mxu0 0
    %2504 = vmatpush1.bf16.msra.mxu0 0
    %2505 = vmatprep.subr.bf16.mxu0 0
    %2506 = vmatpush1.bf16.msra.mxu0 0
    %2507 = vmatprep.subr.bf16.mxu0 0
    %2508 = vmatpush1.bf16.msra.mxu0 0
    %2509 = vmatprep.subr.bf16.mxu0 0
    %2510 = vmatpush1.bf16.msra.mxu0 0
    %2511 = vmatprep.subr.bf16.mxu0 0
    %2512 = vmatpush1.bf16.msra.mxu0 %v2124
    %2513 = vmatprep.subr.bf16.mxu0 0
    %2514 = vmatpush2.bf16.msra.mxu0 0
    %2515 = vmatprep.subr.bf16.mxu0 0
    %2516 = vmatpush2.bf16.msra.mxu0 0
    %2517 = vmatprep.subr.bf16.mxu0 0
    %2518 = vmatpush2.bf16.msra.mxu0 0
    %2519 = vmatprep.subr.bf16.mxu0 0
    %2520 = vmatpush2.bf16.msra.mxu0 0
    %2521 = vmatprep.subr.bf16.mxu0 0
    %2522 = vmatpush2.bf16.msra.mxu0 0
    %2523 = vmatprep.subr.bf16.mxu0 0
    %2524 = vmatpush2.bf16.msra.mxu0 0
    %2525 = vmatprep.subr.bf16.mxu0 0
    %2526 = vmatpush2.bf16.msra.mxu0 0
    %2527 = vmatprep.subr.bf16.mxu0 0
    %2528 = vmatpush2.bf16.msra.mxu0 0
    %2529 = vmatprep.mubr.bf16.mxu0 0
    %2530 = vmatmul.mubr.bf16.gmra.mxu0 %v2495
    %v2531 = vpop.f32.mrf.mxu0
    %v2532 = vadd.f32 0.0, %v2531
    %v2533 = vpop.f32.mrf.mxu0
    %v2534 = vpop.f32.mrf.mxu0
    %v2535 = vpop.f32.mrf.mxu0
    %2536 = vdwg.mxu0
    %v2537 = vadd.f32 %v2170, %v2532
    %v2538 = vpack.c.bf16 %v2019, %v2019
    %v2540 = vsel %vm1266, %v2538, 0
    %2542 = vmatprep.subr.bf16.mxu0 0
    %2543 = vmatpush1.bf16.msra.mxu0 0
    %2544 = vmatprep.subr.bf16.mxu0 0
    %2545 = vmatpush1.bf16.msra.mxu0 0
    %2546 = vmatprep.subr.bf16.mxu0 0
    %2547 = vmatpush1.bf16.msra.mxu0 0
    %2548 = vmatprep.subr.bf16.mxu0 0
    %2549 = vmatpush1.bf16.msra.mxu0 0
    %2550 = vmatprep.subr.bf16.mxu0 0
    %2551 = vmatpush1.bf16.msra.mxu0 0
    %2552 = vmatprep.subr.bf16.mxu0 0
    %2553 = vmatpush1.bf16.msra.mxu0 0
    %2554 = vmatprep.subr.bf16.mxu0 0
    %2555 = vmatpush1.bf16.msra.mxu0 0
    %2556 = vmatprep.subr.bf16.mxu0 0
    %2557 = vmatpush1.bf16.msra.mxu0 %v2181
    %2558 = vmatprep.subr.bf16.mxu0 0
    %2559 = vmatpush2.bf16.msra.mxu0 0
    %2560 = vmatprep.subr.bf16.mxu0 0
    %2561 = vmatpush2.bf16.msra.mxu0 0
    %2562 = vmatprep.subr.bf16.mxu0 0
    %2563 = vmatpush2.bf16.msra.mxu0 0
    %2564 = vmatprep.subr.bf16.mxu0 0
    %2565 = vmatpush2.bf16.msra.mxu0 0
    %2566 = vmatprep.subr.bf16.mxu0 0
    %2567 = vmatpush2.bf16.msra.mxu0 0
    %2568 = vmatprep.subr.bf16.mxu0 0
    %2569 = vmatpush2.bf16.msra.mxu0 0
    %2570 = vmatprep.subr.bf16.mxu0 0
    %2571 = vmatpush2.bf16.msra.mxu0 0
    %2572 = vmatprep.subr.bf16.mxu0 0
    %2573 = vmatpush2.bf16.msra.mxu0 0
    %2574 = vmatprep.mubr.bf16.mxu0 0
    %2575 = vmatmul.mubr.bf16.gmra.mxu0 %v2540
    %v2576 = vpop.f32.mrf.mxu0
    %v2577 = vadd.f32 0.0, %v2576
    %v2578 = vpop.f32.mrf.mxu0
    %v2579 = vpop.f32.mrf.mxu0
    %v2580 = vpop.f32.mrf.mxu0
    %2581 = vdwg.mxu0
    %v2582 = vadd.f32 %v2537, %v2577
    %v2583 = vpack.c.bf16 %v2065, %v2065
    %v2585 = vsel %vm1266, %v2583, 0
    %2587 = vmatprep.subr.bf16.mxu0 0
    %2588 = vmatpush1.bf16.msra.mxu0 0
    %2589 = vmatprep.subr.bf16.mxu0 0
    %2590 = vmatpush1.bf16.msra.mxu0 0
    %2591 = vmatprep.subr.bf16.mxu0 0
    %2592 = vmatpush1.bf16.msra.mxu0 0
    %2593 = vmatprep.subr.bf16.mxu0 0
    %2594 = vmatpush1.bf16.msra.mxu0 0
    %2595 = vmatprep.subr.bf16.mxu0 0
    %2596 = vmatpush1.bf16.msra.mxu0 0
    %2597 = vmatprep.subr.bf16.mxu0 0
    %2598 = vmatpush1.bf16.msra.mxu0 0
    %2599 = vmatprep.subr.bf16.mxu0 0
    %2600 = vmatpush1.bf16.msra.mxu0 0
    %2601 = vmatprep.subr.bf16.mxu0 0
    %2602 = vmatpush1.bf16.msra.mxu0 %v2232
    %2603 = vmatprep.subr.bf16.mxu0 0
    %2604 = vmatpush2.bf16.msra.mxu0 0
    %2605 = vmatprep.subr.bf16.mxu0 0
    %2606 = vmatpush2.bf16.msra.mxu0 0
    %2607 = vmatprep.subr.bf16.mxu0 0
    %2608 = vmatpush2.bf16.msra.mxu0 0
    %2609 = vmatprep.subr.bf16.mxu0 0
    %2610 = vmatpush2.bf16.msra.mxu0 0
    %2611 = vmatprep.subr.bf16.mxu0 0
    %2612 = vmatpush2.bf16.msra.mxu0 0
    %2613 = vmatprep.subr.bf16.mxu0 0
    %2614 = vmatpush2.bf16.msra.mxu0 0
    %2615 = vmatprep.subr.bf16.mxu0 0
    %2616 = vmatpush2.bf16.msra.mxu0 0
    %2617 = vmatprep.subr.bf16.mxu0 0
    %2618 = vmatpush2.bf16.msra.mxu0 0
    %2619 = vmatprep.mubr.bf16.mxu0 0
    %2620 = vmatmul.mubr.bf16.gmra.mxu0 %v2585
    %v2621 = vpop.f32.mrf.mxu0
    %v2622 = vadd.f32 0.0, %v2621
    %v2623 = vpop.f32.mrf.mxu0
    %v2624 = vpop.f32.mrf.mxu0
    %v2625 = vpop.f32.mrf.mxu0
    %2626 = vdwg.mxu0
    %v2627 = vadd.f32 %v2582, %v2622
    %v2628 = vpack.c.bf16 %v2111, %v2111
    %v2630 = vsel %vm1266, %v2628, 0
    %2632 = vmatprep.subr.bf16.mxu0 0
    %2633 = vmatpush1.bf16.msra.mxu0 0
    %2634 = vmatprep.subr.bf16.mxu0 0
    %2635 = vmatpush1.bf16.msra.mxu0 0
    %2636 = vmatprep.subr.bf16.mxu0 0
    %2637 = vmatpush1.bf16.msra.mxu0 0
    %2638 = vmatprep.subr.bf16.mxu0 0
    %2639 = vmatpush1.bf16.msra.mxu0 0
    %2640 = vmatprep.subr.bf16.mxu0 0
    %2641 = vmatpush1.bf16.msra.mxu0 0
    %2642 = vmatprep.subr.bf16.mxu0 0
    %2643 = vmatpush1.bf16.msra.mxu0 0
    %2644 = vmatprep.subr.bf16.mxu0 0
    %2645 = vmatpush1.bf16.msra.mxu0 0
    %2646 = vmatprep.subr.bf16.mxu0 0
    %2647 = vmatpush1.bf16.msra.mxu0 %v2283
    %2648 = vmatprep.subr.bf16.mxu0 0
    %2649 = vmatpush2.bf16.msra.mxu0 0
    %2650 = vmatprep.subr.bf16.mxu0 0
    %2651 = vmatpush2.bf16.msra.mxu0 0
    %2652 = vmatprep.subr.bf16.mxu0 0
    %2653 = vmatpush2.bf16.msra.mxu0 0
    %2654 = vmatprep.subr.bf16.mxu0 0
    %2655 = vmatpush2.bf16.msra.mxu0 0
    %2656 = vmatprep.subr.bf16.mxu0 0
    %2657 = vmatpush2.bf16.msra.mxu0 0
    %2658 = vmatprep.subr.bf16.mxu0 0
    %2659 = vmatpush2.bf16.msra.mxu0 0
    %2660 = vmatprep.subr.bf16.mxu0 0
    %2661 = vmatpush2.bf16.msra.mxu0 0
    %2662 = vmatprep.subr.bf16.mxu0 0
    %2663 = vmatpush2.bf16.msra.mxu0 0
    %2664 = vmatprep.mubr.bf16.mxu0 0
    %2665 = vmatmul.mubr.bf16.gmra.mxu0 %v2630
    %v2666 = vpop.f32.mrf.mxu0
    %v2667 = vadd.f32 0.0, %v2666
    %v2668 = vpop.f32.mrf.mxu0
    %v2669 = vpop.f32.mrf.mxu0
    %v2670 = vpop.f32.mrf.mxu0
    %2671 = vdwg.mxu0
    %v2672 = vadd.f32 %v2627, %v2667
    %v2673 = vadd.f32 %v59, %v2672
    %v2674 = vsel %vm64, %v2673, 0.0
    %2675 = vadd.xlane.f32.xlu0 %v2674
    %v2676 = vpop.xlane.xlu0 %2675
    %v2677 = vmul.f32 %v2676, %v68
    %v2678 = vsub.f32 %v2673, %v2677
    %v2679 = vmul.f32 %v2678, %v2678
    %v2680 = vsel %vm64, %v2679, 0.0
    %2681 = vadd.xlane.f32.xlu0 %v2680
    %v2682 = vpop.xlane.xlu0 %2681
    %v2683 = vmul.f32 %v2682, %v68
    %v2684 = vadd.f32 %v2683, 1e-05
    %v2685 = vrsqrt.pop %v2684
    %v2686 = vmul.f32 %v2678, %v2685
    %v2687 = vmul.f32 %v2686, %v2344
    %v2688 = vadd.f32 %v2687, %v2351
    %v2689 = vpack.c.bf16 %v2688, %v2688
    %v2691 = vsel %vm64, %v2689, 0
    %2693 = vmatprep.subr.bf16.mxu0 0
    %2694 = vmatpush1.bf16.msra.mxu0 0
    %2695 = vmatprep.subr.bf16.mxu0 0
    %2696 = vmatpush1.bf16.msra.mxu0 0
    %2697 = vmatprep.subr.bf16.mxu0 0
    %2698 = vmatpush1.bf16.msra.mxu0 0
    %2699 = vmatprep.subr.bf16.mxu0 0
    %2700 = vmatpush1.bf16.msra.mxu0 0
    %2701 = vmatprep.subr.bf16.mxu0 0
    %2702 = vmatpush1.bf16.msra.mxu0 0
    %2703 = vmatprep.subr.bf16.mxu0 0
    %2704 = vmatpush1.bf16.msra.mxu0 0
    %2705 = vmatprep.subr.bf16.mxu0 0
    %2706 = vmatpush1.bf16.msra.mxu0 %v2360
    %2707 = vmatprep.subr.bf16.mxu0 0
    %2708 = vmatpush1.bf16.msra.mxu0 %v2359
    %2709 = vmatprep.subr.bf16.mxu0 0
    %2710 = vmatpush2.bf16.msra.mxu0 0
    %2711 = vmatprep.subr.bf16.mxu0 0
    %2712 = vmatpush2.bf16.msra.mxu0 0
    %2713 = vmatprep.subr.bf16.mxu0 0
    %2714 = vmatpush2.bf16.msra.mxu0 0
    %2715 = vmatprep.subr.bf16.mxu0 0
    %2716 = vmatpush2.bf16.msra.mxu0 0
    %2717 = vmatprep.subr.bf16.mxu0 0
    %2718 = vmatpush2.bf16.msra.mxu0 0
    %2719 = vmatprep.subr.bf16.mxu0 0
    %2720 = vmatpush2.bf16.msra.mxu0 0
    %2721 = vmatprep.subr.bf16.mxu0 0
    %2722 = vmatpush2.bf16.msra.mxu0 0
    %2723 = vmatprep.subr.bf16.mxu0 0
    %2724 = vmatpush2.bf16.msra.mxu0 0
    %2725 = vmatprep.mubr.bf16.mxu0 0
    %2726 = vmatmul.mubr.bf16.gmra.mxu0 %v2691
    %v2727 = vpop.f32.mrf.mxu0
    %v2728 = vadd.f32 %v2366, %v2727
    %v2729 = vpop.f32.mrf.mxu0
    %v2730 = vpop.f32.mrf.mxu0
    %v2731 = vpop.f32.mrf.mxu0
    %2732 = vdwg.mxu0
    %v2733 = vmul.f32 %v2728, %v2728
    %v2734 = vmul.f32 %v2728, %v2733
    %v2735 = vmul.f32 %v2734, 0.044715
    %v2736 = vadd.f32 %v2728, %v2735
    %v2737 = vmul.f32 %v2736, 0.7978846
    %v2738 = vtanh.pop %v2737
    %v2739 = vadd.f32 %v2738, 1.0
    %v2740 = vmul.f32 %v2739, 0.5
    %v2741 = vmul.f32 %v2728, %v2740
    %v2742 = vpack.c.bf16 %v2741, %v2741
    %2743 = vmatprep.subr.bf16.mxu0 0
    %2744 = vmatpush1.bf16.msra.mxu0 %v2444
    %2745 = vmatprep.subr.bf16.mxu0 0
    %2746 = vmatpush1.bf16.msra.mxu0 %v2443
    %2747 = vmatprep.subr.bf16.mxu0 0
    %2748 = vmatpush1.bf16.msra.mxu0 %v2442
    %2749 = vmatprep.subr.bf16.mxu0 0
    %2750 = vmatpush1.bf16.msra.mxu0 %v2441
    %2751 = vmatprep.subr.bf16.mxu0 0
    %2752 = vmatpush1.bf16.msra.mxu0 %v2440
    %2753 = vmatprep.subr.bf16.mxu0 0
    %2754 = vmatpush1.bf16.msra.mxu0 %v2439
    %2755 = vmatprep.subr.bf16.mxu0 0
    %2756 = vmatpush1.bf16.msra.mxu0 %v2438
    %2757 = vmatprep.subr.bf16.mxu0 0
    %2758 = vmatpush1.bf16.msra.mxu0 %v2437
    %2759 = vmatprep.subr.bf16.mxu0 0
    %2760 = vmatpush2.bf16.msra.mxu0 0
    %2761 = vmatprep.subr.bf16.mxu0 0
    %2762 = vmatpush2.bf16.msra.mxu0 0
    %2763 = vmatprep.subr.bf16.mxu0 0
    %2764 = vmatpush2.bf16.msra.mxu0 0
    %2765 = vmatprep.subr.bf16.mxu0 0
    %2766 = vmatpush2.bf16.msra.mxu0 0
    %2767 = vmatprep.subr.bf16.mxu0 0
    %2768 = vmatpush2.bf16.msra.mxu0 0
    %2769 = vmatprep.subr.bf16.mxu0 0
    %2770 = vmatpush2.bf16.msra.mxu0 0
    %2771 = vmatprep.subr.bf16.mxu0 0
    %2772 = vmatpush2.bf16.msra.mxu0 0
    %2773 = vmatprep.subr.bf16.mxu0 0
    %2774 = vmatpush2.bf16.msra.mxu0 0
    %2775 = vmatprep.mubr.bf16.mxu0 0
    %2776 = vmatmul.mubr.bf16.gmra.mxu0 %v2742
    %v2777 = vpop.f32.mrf.mxu0
    %v2778 = vadd.f32 %v2450, %v2777
    %v2779 = vpop.f32.mrf.mxu0
    %v2780 = vpop.f32.mrf.mxu0
    %v2781 = vpop.f32.mrf.mxu0
    %2782 = vdwg.mxu0
    %v2783 = vadd.f32 %v2673, %v2778
    %2784 = vst.msk [vmem:[#allocation2] sm:$0xff] %vm64, %v2492
    %2785 = vst.msk [vmem:[#allocation2 + $0x8] sm:$0xff] %vm64, %v2783
    // Predicated region
    $region70: #{tpu_custom_call.1} parent=1 // pred_check
      _
    $region71: #{tpu_custom_call.1} parent=1 // pred_check_branch
      %2787 = sbr.rel (0) target = $region73
    $region72: #{tpu_custom_call.1} parent=1 // pred_region
      %s2789 = ssub.s32 256, 256
      %2790 = vsyncadd [#allocation3], %s2789
      %s2791 = sshll.u32 [#allocation2], 4
      %s2792 = int_to_ptr.vmem [resolvable:$true] %s2791
      %2797 = dma.vmem_to_hbm [thread:$0]  %s2792, 256, %s17, [#allocation3], 128, 128, 8
    $region73: #{tpu_custom_call.1} parent=1 // pred_fallthru
      _
    // Predicated region
    $region74: #{tpu_custom_call.1} parent=1 // pred_check
      _
    $region75: #{tpu_custom_call.1} parent=1 // pred_check_branch
      %2799 = sbr.rel (0) target = $region77
    $region76: #{tpu_custom_call.1} parent=1 // pred_region
      %2800 = dma.done [#allocation3], 256
    $region77: #{tpu_custom_call.1} parent=1 // pred_fallthru
      _
    %2801 = vsyncpa [#allocation3], 1

</llo_original>
